<compile_context>
chip_gen: v7x
topology: tpu7x:2x2x1
jax: 0.10.0
libtpu: 0.0.40
codegen_flags: <defaults>
</compile_context>

<pallas_src>
import functools

import jax
import jax.numpy as jnp
import numpy as np
from jax import lax
from jax.experimental import pallas as pl
from jax.experimental.pallas import tpu as pltpu

EPS = 1e-5  # torch.nn.LayerNorm default eps


# ---------------------------------------------------------------------------
# Generation-aware VMEM cap
# ---------------------------------------------------------------------------
def _vmem_limit_bytes():
    """~75% of physical VMEM (96 MiB on 128 MiB v5e/v6e, 48 MiB on 64 MiB v7x)."""
    try:
        cap = pltpu.get_tpu_info().vmem_capacity_bytes
        return min(int(cap * 3 // 4), 100 * 1024 * 1024)
    except Exception:
        return 48 * 1024 * 1024  # conservative (safe on v7x)


VMEM_LIMIT = _vmem_limit_bytes()


# ---------------------------------------------------------------------------
# Tiling helpers
# ---------------------------------------------------------------------------
def _row_tile(rows, target=512):
    """Largest multiple-of-8 divisor of `rows` <= target, preferring >= 4 grid
    steps (>= 2 per TensorCore on dual-TC chips)."""
    cap = min(target, rows)
    if rows >= 32:
        cap = min(cap, rows // 4)
    for cand in range(cap, 7, -1):
        if rows % cand == 0 and cand % 8 == 0:
            return cand
    # TODO(synk): pad ragged row counts to a multiple of 8 instead of one full block.
    return rows


def _frame_tile(nframes, hw):
    """Frames per attention program: >= 4 grid steps when possible, modest
    per-step activation / per-head score footprint."""
    best = 1
    for g in range(1, nframes + 1):
        if nframes % g:
            continue
        rows_ok = g * hw <= 512
        score_ok = g * hw * hw * 4 <= 8 * 1024 * 1024   # one head's f32 scores
        steps_ok = (nframes // g) >= 4 or g == 1
        if rows_ok and score_ok and steps_ok:
            best = g
    return best


def _hidden_tile(hidden, target=2048):
    """Tile the MLP hidden (4C) dim so resident weights stay small on v7x."""
    if hidden <= target:
        return hidden
    for cand in range(target, 127, -128):
        if hidden % cand == 0:
            return cand
    return hidden


def _const_spec(shape, grid_ndim):
    """BlockSpec for true constants: same block every step -> single-buffered."""
    if grid_ndim == 1:
        idx = lambda i: (0,) * len(shape)
    else:
        idx = lambda i, k: (0,) * len(shape)
    try:
        return pl.BlockSpec(shape, idx, pipeline_mode=pl.Buffered(1))
    except TypeError:  # older Pallas without pipeline_mode
        return pl.BlockSpec(shape, idx)


# ---------------------------------------------------------------------------
# Kernels
# ---------------------------------------------------------------------------
def _attn_block_kernel(x_ref, ln1w_ref, ln1b_ref, wqkv_ref, bqkv_ref,
                       wout_ref, bout_ref, o_ref, *, num_heads):
    """Fused LN1 + qkv + multi-head softmax attention + out_proj + residual
    for a block of G frames.

    x_ref/o_ref: (G, HW, C) bf16. wqkv_ref: (C, 3C) bf16 (pre-transposed,
    q columns pre-scaled). wout_ref: (C, C) bf16. Biases f32.
    """
    G, HW, C = x_ref.shape
    hd = C // num_heads

    x = x_ref[...].reshape(G * HW, C).astype(jnp.float32)       # residual (f32)
    mu = jnp.mean(x, axis=-1, keepdims=True)
    var = jnp.mean((x - mu) ** 2, axis=-1, keepdims=True)
    xn = (x - mu) * lax.rsqrt(var + EPS)
    xn = xn * ln1w_ref[...] + ln1b_ref[...]

    qkv = jnp.dot(xn.astype(wqkv_ref.dtype), wqkv_ref[...],
                  preferred_element_type=jnp.float32) + bqkv_ref[...]  # (G*HW, 3C)
    qkv = qkv.reshape(G, HW, 3 * C)

    heads = []
    for h in range(num_heads):                   # static loop, all data in VMEM
        lo = h * hd
        qh = qkv[..., lo:lo + hd].astype(jnp.bfloat16)                  # pre-scaled
        kh = qkv[..., C + lo:C + lo + hd].astype(jnp.bfloat16)
        vh = qkv[..., 2 * C + lo:2 * C + lo + hd].astype(jnp.bfloat16)
        s = jnp.einsum('gqd,gkd->gqk', qh, kh,
                       preferred_element_type=jnp.float32)              # (G,HW,HW)
        m = jnp.max(s, axis=-1, keepdims=True)
        e = jnp.exp(s - m)
        p = e * pl.reciprocal(jnp.sum(e, axis=-1, keepdims=True), approx=True)
        heads.append(jnp.einsum('gqk,gkd->gqd', p.astype(jnp.bfloat16), vh,
                                preferred_element_type=jnp.float32))
    att = jnp.concatenate(heads, axis=-1).reshape(G * HW, C)   # lane-dense (.., C)

    y = jnp.dot(att.astype(wout_ref.dtype), wout_ref[...],
                preferred_element_type=jnp.float32) + bout_ref[...]
    o_ref[...] = (x + y).reshape(G, HW, C).astype(o_ref.dtype)


def _mlp_block_kernel(x_ref, ln2w_ref, ln2b_ref, wfc_ref, bfc_ref,
                      wproj_ref, bproj_ref, o_ref, acc_ref, xn_ref):
    """LN2 + c_fc + QuickGELU + c_proj + residual on a (TM, C) row tile, with a
    reduction grid axis over the hidden (4C) dim.

    x_ref/o_ref: (TM, C) bf16. wfc_ref: (C, TH) bf16. wproj_ref: (TH, C) bf16.
    acc_ref: (TM, C) f32 scratch. xn_ref: (TM, C) bf16 scratch.
    """
    kk = pl.program_id(1)

    @pl.when(kk == 0)
    def _():
        x = x_ref[...].astype(jnp.float32)
        mu = jnp.mean(x, axis=-1, keepdims=True)
        var = jnp.mean((x - mu) ** 2, axis=-1, keepdims=True)
        xn = (x - mu) * lax.rsqrt(var + EPS)
        xn = xn * ln2w_ref[...] + ln2b_ref[...]
        xn_ref[...] = xn.astype(xn_ref.dtype)
        acc_ref[...] = x + bproj_ref[...]          # residual + c_proj bias

    h = jnp.dot(xn_ref[...], wfc_ref[...],
                preferred_element_type=jnp.float32) + bfc_ref[...]
    h = h * jax.nn.sigmoid(1.702 * h)              # QuickGELU (f32)
    acc_ref[...] += jnp.dot(h.astype(wproj_ref.dtype), wproj_ref[...],
                            preferred_element_type=jnp.float32)

    @pl.when(kk == pl.num_programs(1) - 1)
    def _():
        o_ref[...] = acc_ref[...].astype(o_ref.dtype)


# ---------------------------------------------------------------------------
# pallas_call wrappers
# ---------------------------------------------------------------------------
def _attn_block(x3, p, num_heads):
    nframes, HW, C = x3.shape
    G = _frame_tile(nframes, HW)
    kern = functools.partial(_attn_block_kernel, num_heads=num_heads)
    return pl.pallas_call(
        kern,
        out_shape=jax.ShapeDtypeStruct((nframes, HW, C), jnp.bfloat16),
        grid_spec=pltpu.PrefetchScalarGridSpec(
            num_scalar_prefetch=0,
            grid=(nframes // G,),
            in_specs=[
                pl.BlockSpec((G, HW, C), lambda i: (i, 0, 0)),
                _const_spec((1, C), 1),
                _const_spec((1, C), 1),
                _const_spec((C, 3 * C), 1),
                _const_spec((1, 3 * C), 1),
                _const_spec((C, C), 1),
                _const_spec((1, C), 1),
            ],
            out_specs=pl.BlockSpec((G, HW, C), lambda i: (i, 0, 0)),
        ),
        compiler_params=pltpu.CompilerParams(
            dimension_semantics=("parallel",),
            vmem_limit_bytes=VMEM_LIMIT),
    )(x3, p["ln1_w"], p["ln1_b"], p["wqkv_t"], p["bqkv"], p["wout_t"], p["bout"])


def _mlp_block(x2, p):
    rows, C = x2.shape
    hidden = p["wfc_t"].shape[1]
    TM = _row_tile(rows)
    TH = _hidden_tile(hidden)
    nK = hidden // TH

    def wspec(shape, idx):
        # Weights that do not vary over the grid can be single-buffered.
        if nK == 1:
            try:
                return pl.BlockSpec(shape, idx, pipeline_mode=pl.Buffered(1))
            except TypeError:
                pass
        return pl.BlockSpec(shape, idx)

    return pl.pallas_call(
        _mlp_block_kernel,
        out_shape=jax.ShapeDtypeStruct((rows, C), jnp.bfloat16),
        grid_spec=pltpu.PrefetchScalarGridSpec(
            num_scalar_prefetch=0,
            grid=(rows // TM, nK),
            in_specs=[
                pl.BlockSpec((TM, C), lambda i, k: (i, 0)),
                _const_spec((1, C), 2),
                _const_spec((1, C), 2),
                wspec((C, TH), lambda i, k: (0, k)),
                wspec((1, TH), lambda i, k: (0, k)),
                wspec((TH, C), lambda i, k: (k, 0)),
                _const_spec((1, C), 2),
            ],
            out_specs=pl.BlockSpec((TM, C), lambda i, k: (i, 0)),
            scratch_shapes=[pltpu.VMEM((TM, C), jnp.float32),
                            pltpu.VMEM((TM, C), jnp.bfloat16)],
        ),
        compiler_params=pltpu.CompilerParams(
            dimension_semantics=("parallel", "arbitrary"),
            vmem_limit_bytes=VMEM_LIMIT),
    )(x2, p["ln2_w"], p["ln2_b"], p["wfc_t"], p["bfc"], p["wproj_t"], p["bproj"])


# ---------------------------------------------------------------------------
# Layer / transformer forward
# ---------------------------------------------------------------------------
def _layer_forward(x3, p, num_heads):
    nframes, HW, C = x3.shape
    y3 = _attn_block(x3, p, num_heads)                 # (nframes, HW, C) bf16
    y2 = _mlp_block(y3.reshape(nframes * HW, C), p)    # (rows, C) bf16
    return y2.reshape(nframes, HW, C)


def transformer_forward(x, params, *, size, num_heads):
    """Equivalent of Transformer.forward(x, size) with attn_type='2d'."""
    B, N, C = x.shape
    T, H, W = size
    HW = H * W
    assert N == T * HW and C % num_heads == 0
    # bf16 residual stream in HBM; the reshapes below are metadata-only.
    x3 = x.astype(jnp.bfloat16).reshape(B * T, HW, C)
    for p in params:
        x3 = _layer_forward(x3, p, num_heads)
    return x3.reshape(B, N, C).astype(jnp.float32)


# ---------------------------------------------------------------------------
# Parameters (raw f32 in torch shapes) and kernel-ready preparation
# ---------------------------------------------------------------------------
def init_params(key, width, layers):
    params = []
    for l in range(layers):
        ks = jax.random.split(jax.random.fold_in(key, l), 8)
        limit = (6.0 / (width + 3 * width)) ** 0.5              # xavier_uniform_
        params.append(dict(
            ln1_w=jnp.ones((width,), jnp.float32),
            ln1_b=jnp.zeros((width,), jnp.float32),
            wqkv=jax.random.uniform(ks[0], (3 * width, width), jnp.float32, -limit, limit),
            bqkv=jnp.zeros((3 * width,), jnp.float32),
            wout=jax.random.normal(ks[1], (width, width), jnp.float32) * 0.02,
            bout=jax.random.normal(ks[2], (width,), jnp.float32) * 0.02,
            ln2_w=jnp.ones((width,), jnp.float32),
            ln2_b=jnp.zeros((width,), jnp.float32),
            wfc=jax.random.normal(ks[3], (4 * width, width), jnp.float32) * 0.02,
            bfc=jax.random.normal(ks[4], (4 * width,), jnp.float32) * 0.02,
            wproj=jax.random.normal(ks[5], (width, 4 * width), jnp.float32) * 0.02,
            bproj=jax.random.normal(ks[6], (width,), jnp.float32) * 0.02,
        ))
    return params


def prepare_params(params, num_heads):
    """Kernel-ready params: pre-transposed, bf16 weights, attention scale folded
    into the q columns of the qkv projection (done once on the host)."""
    prepped = []
    for p in params:
        C = p["wout"].shape[0]
        scale = (C // num_heads) ** (-0.5)
        sc = jnp.concatenate([jnp.full((C,), scale, jnp.float32),
                              jnp.ones((2 * C,), jnp.float32)])
        prepped.append(dict(
            ln1_w=p["ln1_w"].reshape(1, C),
            ln1_b=p["ln1_b"].reshape(1, C),
            wqkv_t=(p["wqkv"].T * sc[None, :]).astype(jnp.bfloat16),   # (C, 3C)
            bqkv=(p["bqkv"] * sc).reshape(1, 3 * C),
            wout_t=p["wout"].T.astype(jnp.bfloat16),                   # (C, C)
            bout=p["bout"].reshape(1, C),
            ln2_w=p["ln2_w"].reshape(1, C),
            ln2_b=p["ln2_b"].reshape(1, C),
            wfc_t=p["wfc"].T.astype(jnp.bfloat16),                     # (C, 4C)
            bfc=p["bfc"].reshape(1, 4 * C),
            wproj_t=p["wproj"].T.astype(jnp.bfloat16),                 # (4C, C)
            bproj=p["bproj"].reshape(1, C),
        ))
    return prepped


# ---------------------------------------------------------------------------
# Pure-JAX f32 reference (mirrors the PyTorch math) for correctness checking
# ---------------------------------------------------------------------------
def ref_forward(x, size, params, num_heads):
    T, H, W = size
    B, N, C = x.shape
    hd = C // num_heads
    scale = hd ** (-0.5)

    def ln(v, w, b):
        mu = v.mean(-1, keepdims=True)
        var = ((v - mu) ** 2).mean(-1, keepdims=True)
        return (v - mu) / jnp.sqrt(var + EPS) * w + b

    for p in params:
        xn = ln(x, p["ln1_w"], p["ln1_b"])
        qkv = xn @ p["wqkv"].T + p["bqkv"]
        qkv = qkv.reshape(B * T, H * W, 3, num_heads, hd)
        q, k, v = qkv[:, :, 0], qkv[:, :, 1], qkv[:, :, 2]
        a = jnp.einsum("bqhd,bkhd->bhqk", q * scale, k)
        a = jax.nn.softmax(a, axis=-1)
        o = jnp.einsum("bhqk,bkhd->bqhd", a, v).reshape(B * T, H * W, C)
        o = o @ p["wout"].T + p["bout"]
        x = x + o.reshape(B, N, C)

        xn = ln(x, p["ln2_w"], p["ln2_b"])
        h = xn @ p["wfc"].T + p["bfc"]
        h = h * jax.nn.sigmoid(1.702 * h)
        x = x + (h @ p["wproj"].T + p["bproj"])
    return x


if __name__ == "__main__":
    B, T, H, W = 2, 2, 8, 8                  # N = T*H*W = 128 tokens per sample
    width, heads, layers = 128, 4, 2         # head_dim = 32
    size = (T, H, W)

    key = jax.random.PRNGKey(0)
    raw_params = init_params(key, width, layers)
    params = prepare_params(raw_params, heads)
    x = jax.random.normal(jax.random.fold_in(key, 999),
                          (B, T * H * W, width), jnp.float32)

    fwd = jax.jit(functools.partial(transformer_forward, size=size, num_heads=heads))
    out = jax.block_until_ready(fwd(x, params))

    ref = ref_forward(x, size, raw_params, heads)
    assert out.shape == (B, T * H * W, width)
    # bf16 weights / activations / residual stream vs f32 torch-style reference.
    np.testing.assert_allclose(np.asarray(out), np.asarray(ref), atol=3e-2, rtol=3e-2)

    print("KERNEL_OK")
</pallas_src>

<mosaic_0001>
module attributes {stable_mosaic.version = 11 : i64} {
  func.func @_mlp_block_kernel(%arg0: i32, %arg1: i32, %arg2: memref<64x128xbf16, #tpu.memory_space<vmem>>, %arg3: memref<1x128xf32, #tpu.memory_space<vmem>>, %arg4: memref<1x128xf32, #tpu.memory_space<vmem>>, %arg5: memref<128x512xbf16, #tpu.memory_space<vmem>>, %arg6: memref<1x512xf32, #tpu.memory_space<vmem>>, %arg7: memref<512x128xbf16, #tpu.memory_space<vmem>>, %arg8: memref<1x128xf32, #tpu.memory_space<vmem>>, %arg9: memref<64x128xbf16, #tpu.memory_space<vmem>>, %arg10: memref<64x128xf32, #tpu.memory_space<vmem>>, %arg11: memref<64x128xbf16, #tpu.memory_space<vmem>>) attributes {dimension_semantics = [#tpu.dimension_semantics<parallel>, #tpu.dimension_semantics<arbitrary>], iteration_bounds = array<i64: 4, 1>, scalar_prefetch = 0 : i64, scratch_operands = 2 : i64, tpu.core_type = #tpu.core_type<tc>, window_params = [{transform_indices = @transform_0, window_bounds = array<i64: 64, 128>}, {pipeline_mode = #tpu.pipeline_mode<synchronous>, transform_indices = @transform_1, window_bounds = array<i64: 1, 128>}, {pipeline_mode = #tpu.pipeline_mode<synchronous>, transform_indices = @transform_2, window_bounds = array<i64: 1, 128>}, {pipeline_mode = #tpu.pipeline_mode<synchronous>, transform_indices = @transform_3, window_bounds = array<i64: 128, 512>}, {pipeline_mode = #tpu.pipeline_mode<synchronous>, transform_indices = @transform_4, window_bounds = array<i64: 1, 512>}, {pipeline_mode = #tpu.pipeline_mode<synchronous>, transform_indices = @transform_5, window_bounds = array<i64: 512, 128>}, {pipeline_mode = #tpu.pipeline_mode<synchronous>, transform_indices = @transform_6, window_bounds = array<i64: 1, 128>}, {transform_indices = @transform_7, window_bounds = array<i64: 64, 128>}]} {
    %c0_i32 = arith.constant 0 : i32
    %0 = arith.cmpi eq, %arg1, %c0_i32 : i32
    %1 = arith.extui %0 : i1 to i32
    %c0_i32_0 = arith.constant 0 : i32
    %2 = arith.cmpi ne, %1, %c0_i32_0 : i32
    scf.if %2 {
      %c0_17 = arith.constant 0 : index
      %c0_18 = arith.constant 0 : index
      %26 = vector.load %arg2[%c0_17, %c0_18] : memref<64x128xbf16, #tpu.memory_space<vmem>>, vector<64x128xbf16>
      %27 = arith.extf %26 : vector<64x128xbf16> to vector<64x128xf32>
      %cst_19 = arith.constant dense<0.000000e+00> : vector<64xf32>
      %28 = vector.multi_reduction <add>, %27, %cst_19 [1] : vector<64x128xf32> to vector<64xf32>
      %29 = vector.shape_cast %28 : vector<64xf32> to vector<64x1xf32>
      %cst_20 = arith.constant 1.280000e+02 : f32
      %30 = vector.broadcast %cst_20 : f32 to vector<64x1xf32>
      %31 = arith.divf %29, %30 : vector<64x1xf32>
      %32 = vector.broadcast %31 : vector<64x1xf32> to vector<64x128xf32>
      %33 = arith.subf %27, %32 : vector<64x128xf32>
      %34 = arith.mulf %33, %33 : vector<64x128xf32>
      %cst_21 = arith.constant dense<0.000000e+00> : vector<64xf32>
      %35 = vector.multi_reduction <add>, %34, %cst_21 [1] : vector<64x128xf32> to vector<64xf32>
      %36 = vector.shape_cast %35 : vector<64xf32> to vector<64x1xf32>
      %cst_22 = arith.constant 1.280000e+02 : f32
      %37 = vector.broadcast %cst_22 : f32 to vector<64x1xf32>
      %38 = arith.divf %36, %37 : vector<64x1xf32>
      %39 = vector.broadcast %31 : vector<64x1xf32> to vector<64x128xf32>
      %40 = arith.subf %27, %39 : vector<64x128xf32>
      %cst_23 = arith.constant 9.99999974E-6 : f32
      %41 = vector.broadcast %cst_23 : f32 to vector<64x1xf32>
      %42 = arith.addf %38, %41 : vector<64x1xf32>
      %43 = math.rsqrt %42 : vector<64x1xf32>
      %44 = vector.broadcast %43 : vector<64x1xf32> to vector<64x128xf32>
      %45 = arith.mulf %40, %44 : vector<64x128xf32>
      %c0_24 = arith.constant 0 : index
      %c0_25 = arith.constant 0 : index
      %46 = vector.load %arg3[%c0_24, %c0_25] : memref<1x128xf32, #tpu.memory_space<vmem>>, vector<1x128xf32>
      %47 = vector.broadcast %46 : vector<1x128xf32> to vector<64x128xf32>
      %48 = arith.mulf %45, %47 : vector<64x128xf32>
      %c0_26 = arith.constant 0 : index
      %c0_27 = arith.constant 0 : index
      %49 = vector.load %arg4[%c0_26, %c0_27] : memref<1x128xf32, #tpu.memory_space<vmem>>, vector<1x128xf32>
      %50 = vector.broadcast %49 : vector<1x128xf32> to vector<64x128xf32>
      %51 = arith.addf %48, %50 : vector<64x128xf32>
      %52 = arith.truncf %51 : vector<64x128xf32> to vector<64x128xbf16>
      %c0_28 = arith.constant 0 : index
      %c0_29 = arith.constant 0 : index
      %53 = vector.load %arg11[%c0_28, %c0_29] : memref<64x128xbf16, #tpu.memory_space<vmem>>, vector<64x128xbf16>
      tpu.vector_store %arg11[%c0_28, %c0_29], %52 {strides = array<i32>} : memref<64x128xbf16, #tpu.memory_space<vmem>>, vector<64x128xbf16>,
      %c0_30 = arith.constant 0 : index
      %c0_31 = arith.constant 0 : index
      %54 = vector.load %arg8[%c0_30, %c0_31] : memref<1x128xf32, #tpu.memory_space<vmem>>, vector<1x128xf32>
      %55 = vector.broadcast %54 : vector<1x128xf32> to vector<64x128xf32>
      %56 = arith.addf %27, %55 : vector<64x128xf32>
      %c0_32 = arith.constant 0 : index
      %c0_33 = arith.constant 0 : index
      %57 = vector.load %arg10[%c0_32, %c0_33] : memref<64x128xf32, #tpu.memory_space<vmem>>, vector<64x128xf32>
      tpu.vector_store %arg10[%c0_32, %c0_33], %56 {strides = array<i32>} : memref<64x128xf32, #tpu.memory_space<vmem>>, vector<64x128xf32>,
    } else {
    }
    %c0 = arith.constant 0 : index
    %c0_1 = arith.constant 0 : index
    %3 = vector.load %arg11[%c0, %c0_1] : memref<64x128xbf16, #tpu.memory_space<vmem>>, vector<64x128xbf16>
    %c0_2 = arith.constant 0 : index
    %c0_3 = arith.constant 0 : index
    %4 = vector.load %arg5[%c0_2, %c0_3] : memref<128x512xbf16, #tpu.memory_space<vmem>>, vector<128x512xbf16>
    %cst = arith.constant dense<0.000000e+00> : vector<64x512xf32>
    %5 = tpu.matmul %3, %4, %cst {dimension_numbers = #tpu.dot_dimension_numbers<[1], [0], [0], [1], [0, 0, 1, 1], [], []>} : vector<64x128xbf16>, vector<128x512xbf16>, vector<64x512xf32> -> vector<64x512xf32>
    %c0_4 = arith.constant 0 : index
    %c0_5 = arith.constant 0 : index
    %6 = vector.load %arg6[%c0_4, %c0_5] : memref<1x512xf32, #tpu.memory_space<vmem>>, vector<1x512xf32>
    %7 = vector.broadcast %6 : vector<1x512xf32> to vector<64x512xf32>
    %8 = arith.addf %5, %7 : vector<64x512xf32>
    %cst_6 = arith.constant 1.702000e+00 : f32
    %9 = vector.broadcast %cst_6 : f32 to vector<64x512xf32>
    %10 = arith.mulf %9, %8 : vector<64x512xf32>
    %11 = arith.negf %10 : vector<64x512xf32>
    %12 = math.exp %11 : vector<64x512xf32>
    %cst_7 = arith.constant 1.000000e+00 : f32
    %13 = vector.broadcast %cst_7 : f32 to vector<64x512xf32>
    %14 = arith.addf %13, %12 : vector<64x512xf32>
    %15 = arith.divf %13, %14 : vector<64x512xf32>
    %16 = arith.mulf %8, %15 : vector<64x512xf32>
    %c0_8 = arith.constant 0 : index
    %c0_9 = arith.constant 0 : index
    %17 = vector.load %arg10[%c0_8, %c0_9] : memref<64x128xf32, #tpu.memory_space<vmem>>, vector<64x128xf32>
    %18 = arith.truncf %16 : vector<64x512xf32> to vector<64x512xbf16>
    %c0_10 = arith.constant 0 : index
    %c0_11 = arith.constant 0 : index
    %19 = vector.load %arg7[%c0_10, %c0_11] : memref<512x128xbf16, #tpu.memory_space<vmem>>, vector<512x128xbf16>
    %cst_12 = arith.constant dense<0.000000e+00> : vector<64x128xf32>
    %20 = tpu.matmul %18, %19, %cst_12 {dimension_numbers = #tpu.dot_dimension_numbers<[1], [0], [0], [1], [0, 0, 1, 1], [], []>} : vector<64x512xbf16>, vector<512x128xbf16>, vector<64x128xf32> -> vector<64x128xf32>
    %21 = arith.addf %17, %20 : vector<64x128xf32>
    %c0_13 = arith.constant 0 : index
    %c0_14 = arith.constant 0 : index
    %22 = vector.load %arg10[%c0_13, %c0_14] : memref<64x128xf32, #tpu.memory_space<vmem>>, vector<64x128xf32>
    tpu.vector_store %arg10[%c0_13, %c0_14], %21 {strides = array<i32>} : memref<64x128xf32, #tpu.memory_space<vmem>>, vector<64x128xf32>,
    %c0_i32_15 = arith.constant 0 : i32
    %23 = arith.cmpi eq, %arg1, %c0_i32_15 : i32
    %24 = arith.extui %23 : i1 to i32
    %c0_i32_16 = arith.constant 0 : i32
    %25 = arith.cmpi ne, %24, %c0_i32_16 : i32
    scf.if %25 {
      %c0_17 = arith.constant 0 : index
      %c0_18 = arith.constant 0 : index
      %26 = vector.load %arg10[%c0_17, %c0_18] : memref<64x128xf32, #tpu.memory_space<vmem>>, vector<64x128xf32>
      %27 = arith.truncf %26 : vector<64x128xf32> to vector<64x128xbf16>
      %c0_19 = arith.constant 0 : index
      %c0_20 = arith.constant 0 : index
      %28 = vector.load %arg9[%c0_19, %c0_20] : memref<64x128xbf16, #tpu.memory_space<vmem>>, vector<64x128xbf16>
      tpu.vector_store %arg9[%c0_19, %c0_20], %27 {strides = array<i32>} : memref<64x128xbf16, #tpu.memory_space<vmem>>, vector<64x128xbf16>,
    } else {
    }
    return
  }
  func.func @transform_0(%arg0: i32, %arg1: i32) -> (i32, i32) {
    %c0_i32 = arith.constant 0 : i32
    %c0_i32_0 = arith.constant 0 : i32
    return %arg0, %c0_i32 : i32, i32
  }
  func.func @transform_1(%arg0: i32, %arg1: i32) -> (i32, i32) {
    %c0_i32 = arith.constant 0 : i32
    %c0_i32_0 = arith.constant 0 : i32
    %c0_i32_1 = arith.constant 0 : i32
    return %c0_i32, %c0_i32_0 : i32, i32
  }
  func.func @transform_2(%arg0: i32, %arg1: i32) -> (i32, i32) {
    %c0_i32 = arith.constant 0 : i32
    %c0_i32_0 = arith.constant 0 : i32
    %c0_i32_1 = arith.constant 0 : i32
    return %c0_i32, %c0_i32_0 : i32, i32
  }
  func.func @transform_3(%arg0: i32, %arg1: i32) -> (i32, i32) {
    %c0_i32 = arith.constant 0 : i32
    %c0_i32_0 = arith.constant 0 : i32
    return %c0_i32, %arg1 : i32, i32
  }
  func.func @transform_4(%arg0: i32, %arg1: i32) -> (i32, i32) {
    %c0_i32 = arith.constant 0 : i32
    %c0_i32_0 = arith.constant 0 : i32
    return %c0_i32, %arg1 : i32, i32
  }
  func.func @transform_5(%arg0: i32, %arg1: i32) -> (i32, i32) {
    %c0_i32 = arith.constant 0 : i32
    %c0_i32_0 = arith.constant 0 : i32
    return %arg1, %c0_i32 : i32, i32
  }
  func.func @transform_6(%arg0: i32, %arg1: i32) -> (i32, i32) {
    %c0_i32 = arith.constant 0 : i32
    %c0_i32_0 = arith.constant 0 : i32
    %c0_i32_1 = arith.constant 0 : i32
    return %c0_i32, %c0_i32_0 : i32, i32
  }
  func.func @transform_7(%arg0: i32, %arg1: i32) -> (i32, i32) {
    %c0_i32 = arith.constant 0 : i32
    %c0_i32_0 = arith.constant 0 : i32
    return %arg0, %c0_i32 : i32, i32
  }
}

module attributes {stable_mosaic.version = 11 : i64} {
  func.func @_attn_block_kernel(%arg0: i32, %arg1: memref<1x64x128xbf16, #tpu.memory_space<vmem>>, %arg2: memref<1x128xf32, #tpu.memory_space<vmem>>, %arg3: memref<1x128xf32, #tpu.memory_space<vmem>>, %arg4: memref<128x384xbf16, #tpu.memory_space<vmem>>, %arg5: memref<1x384xf32, #tpu.memory_space<vmem>>, %arg6: memref<128x128xbf16, #tpu.memory_space<vmem>>, %arg7: memref<1x128xf32, #tpu.memory_space<vmem>>, %arg8: memref<1x64x128xbf16, #tpu.memory_space<vmem>>) attributes {dimension_semantics = [#tpu.dimension_semantics<parallel>], iteration_bounds = array<i64: 4>, scalar_prefetch = 0 : i64, scratch_operands = 0 : i64, tpu.core_type = #tpu.core_type<tc>, window_params = [{transform_indices = @transform_0, window_bounds = array<i64: 1, 64, 128>}, {pipeline_mode = #tpu.pipeline_mode<synchronous>, transform_indices = @transform_1, window_bounds = array<i64: 1, 128>}, {pipeline_mode = #tpu.pipeline_mode<synchronous>, transform_indices = @transform_2, window_bounds = array<i64: 1, 128>}, {pipeline_mode = #tpu.pipeline_mode<synchronous>, transform_indices = @transform_3, window_bounds = array<i64: 128, 384>}, {pipeline_mode = #tpu.pipeline_mode<synchronous>, transform_indices = @transform_4, window_bounds = array<i64: 1, 384>}, {pipeline_mode = #tpu.pipeline_mode<synchronous>, transform_indices = @transform_5, window_bounds = array<i64: 128, 128>}, {pipeline_mode = #tpu.pipeline_mode<synchronous>, transform_indices = @transform_6, window_bounds = array<i64: 1, 128>}, {transform_indices = @transform_7, window_bounds = array<i64: 1, 64, 128>}]} {
    %c0 = arith.constant 0 : index
    %c0_0 = arith.constant 0 : index
    %c0_1 = arith.constant 0 : index
    %0 = vector.load %arg1[%c0, %c0_0, %c0_1] : memref<1x64x128xbf16, #tpu.memory_space<vmem>>, vector<1x64x128xbf16>
    %1 = vector.shape_cast %0 : vector<1x64x128xbf16> to vector<64x128xbf16>
    %2 = arith.extf %1 : vector<64x128xbf16> to vector<64x128xf32>
    %cst = arith.constant dense<0.000000e+00> : vector<64xf32>
    %3 = vector.multi_reduction <add>, %2, %cst [1] : vector<64x128xf32> to vector<64xf32>
    %4 = vector.shape_cast %3 : vector<64xf32> to vector<64x1xf32>
    %cst_2 = arith.constant 1.280000e+02 : f32
    %5 = vector.broadcast %cst_2 : f32 to vector<64x1xf32>
    %6 = arith.divf %4, %5 : vector<64x1xf32>
    %7 = vector.broadcast %6 : vector<64x1xf32> to vector<64x128xf32>
    %8 = arith.subf %2, %7 : vector<64x128xf32>
    %9 = arith.mulf %8, %8 : vector<64x128xf32>
    %cst_3 = arith.constant dense<0.000000e+00> : vector<64xf32>
    %10 = vector.multi_reduction <add>, %9, %cst_3 [1] : vector<64x128xf32> to vector<64xf32>
    %11 = vector.shape_cast %10 : vector<64xf32> to vector<64x1xf32>
    %cst_4 = arith.constant 1.280000e+02 : f32
    %12 = vector.broadcast %cst_4 : f32 to vector<64x1xf32>
    %13 = arith.divf %11, %12 : vector<64x1xf32>
    %14 = vector.broadcast %6 : vector<64x1xf32> to vector<64x128xf32>
    %15 = arith.subf %2, %14 : vector<64x128xf32>
    %cst_5 = arith.constant 9.99999974E-6 : f32
    %16 = vector.broadcast %cst_5 : f32 to vector<64x1xf32>
    %17 = arith.addf %13, %16 : vector<64x1xf32>
    %18 = math.rsqrt %17 : vector<64x1xf32>
    %19 = vector.broadcast %18 : vector<64x1xf32> to vector<64x128xf32>
    %20 = arith.mulf %15, %19 : vector<64x128xf32>
    %c0_6 = arith.constant 0 : index
    %c0_7 = arith.constant 0 : index
    %21 = vector.load %arg2[%c0_6, %c0_7] : memref<1x128xf32, #tpu.memory_space<vmem>>, vector<1x128xf32>
    %22 = vector.broadcast %21 : vector<1x128xf32> to vector<64x128xf32>
    %23 = arith.mulf %20, %22 : vector<64x128xf32>
    %c0_8 = arith.constant 0 : index
    %c0_9 = arith.constant 0 : index
    %24 = vector.load %arg3[%c0_8, %c0_9] : memref<1x128xf32, #tpu.memory_space<vmem>>, vector<1x128xf32>
    %25 = vector.broadcast %24 : vector<1x128xf32> to vector<64x128xf32>
    %26 = arith.addf %23, %25 : vector<64x128xf32>
    %27 = arith.truncf %26 : vector<64x128xf32> to vector<64x128xbf16>
    %c0_10 = arith.constant 0 : index
    %c0_11 = arith.constant 0 : index
    %28 = vector.load %arg4[%c0_10, %c0_11] : memref<128x384xbf16, #tpu.memory_space<vmem>>, vector<128x384xbf16>
    %cst_12 = arith.constant dense<0.000000e+00> : vector<64x384xf32>
    %29 = tpu.matmul %27, %28, %cst_12 {dimension_numbers = #tpu.dot_dimension_numbers<[1], [0], [0], [1], [0, 0, 1, 1], [], []>} : vector<64x128xbf16>, vector<128x384xbf16>, vector<64x384xf32> -> vector<64x384xf32>
    %c0_13 = arith.constant 0 : index
    %c0_14 = arith.constant 0 : index
    %30 = vector.load %arg5[%c0_13, %c0_14] : memref<1x384xf32, #tpu.memory_space<vmem>>, vector<1x384xf32>
    %31 = vector.broadcast %30 : vector<1x384xf32> to vector<64x384xf32>
    %32 = arith.addf %29, %31 : vector<64x384xf32>
    %33 = vector.shape_cast %32 : vector<64x384xf32> to vector<1x64x384xf32>
    %34 = vector.extract_strided_slice %33 {offsets = [0, 0, 0], sizes = [1, 64, 32], strides = [1, 1, 1]} : vector<1x64x384xf32> to vector<1x64x32xf32>
    %35 = arith.truncf %34 : vector<1x64x32xf32> to vector<1x64x32xbf16>
    %36 = vector.extract_strided_slice %33 {offsets = [0, 0, 128], sizes = [1, 64, 32], strides = [1, 1, 1]} : vector<1x64x384xf32> to vector<1x64x32xf32>
    %37 = arith.truncf %36 : vector<1x64x32xf32> to vector<1x64x32xbf16>
    %38 = vector.extract_strided_slice %33 {offsets = [0, 0, 256], sizes = [1, 64, 32], strides = [1, 1, 1]} : vector<1x64x384xf32> to vector<1x64x32xf32>
    %39 = arith.truncf %38 : vector<1x64x32xf32> to vector<1x64x32xbf16>
    "tpu.trace_start"() <{level = 10 : i32, message = "gqd,gkd->gqk"}> : () -> ()
    %cst_15 = arith.constant dense<0.000000e+00> : vector<1x64x64xf32>
    %40 = tpu.matmul %35, %37, %cst_15 {dimension_numbers = #tpu.dot_dimension_numbers<[2], [2], [1], [1], [0, 0, 0, 1, 1, 1], [0], [0]>} : vector<1x64x32xbf16>, vector<1x64x32xbf16>, vector<1x64x64xf32> -> vector<1x64x64xf32>
    "tpu.trace_stop"() : () -> ()
    %cst_16 = arith.constant dense<0xFF800000> : vector<1x64xf32>
    %41 = vector.multi_reduction <maximumf>, %40, %cst_16 [2] : vector<1x64x64xf32> to vector<1x64xf32>
    %42 = vector.shape_cast %41 : vector<1x64xf32> to vector<1x64x1xf32>
    %43 = vector.broadcast %42 : vector<1x64x1xf32> to vector<1x64x64xf32>
    %44 = arith.subf %40, %43 : vector<1x64x64xf32>
    %45 = math.exp %44 : vector<1x64x64xf32>
    %cst_17 = arith.constant dense<0.000000e+00> : vector<1x64xf32>
    %46 = vector.multi_reduction <add>, %45, %cst_17 [2] : vector<1x64x64xf32> to vector<1x64xf32>
    %47 = vector.shape_cast %46 : vector<1x64xf32> to vector<1x64x1xf32>
    %48 = tpu.reciprocal %47 {approx = true} : vector<1x64x1xf32> -> vector<1x64x1xf32>
    %49 = vector.broadcast %48 : vector<1x64x1xf32> to vector<1x64x64xf32>
    %50 = arith.mulf %45, %49 : vector<1x64x64xf32>
    %51 = arith.truncf %50 : vector<1x64x64xf32> to vector<1x64x64xbf16>
    "tpu.trace_start"() <{level = 10 : i32, message = "gqk,gkd->gqd"}> : () -> ()
    %cst_18 = arith.constant dense<0.000000e+00> : vector<1x64x32xf32>
    %52 = tpu.matmul %51, %39, %cst_18 {dimension_numbers = #tpu.dot_dimension_numbers<[2], [1], [1], [2], [0, 0, 0, 1, 1, 2], [0], [0]>} : vector<1x64x64xbf16>, vector<1x64x32xbf16>, vector<1x64x32xf32> -> vector<1x64x32xf32>
    "tpu.trace_stop"() : () -> ()
    %53 = vector.extract_strided_slice %33 {offsets = [0, 0, 32], sizes = [1, 64, 32], strides = [1, 1, 1]} : vector<1x64x384xf32> to vector<1x64x32xf32>
    %54 = arith.truncf %53 : vector<1x64x32xf32> to vector<1x64x32xbf16>
    %55 = vector.extract_strided_slice %33 {offsets = [0, 0, 160], sizes = [1, 64, 32], strides = [1, 1, 1]} : vector<1x64x384xf32> to vector<1x64x32xf32>
    %56 = arith.truncf %55 : vector<1x64x32xf32> to vector<1x64x32xbf16>
    %57 = vector.extract_strided_slice %33 {offsets = [0, 0, 288], sizes = [1, 64, 32], strides = [1, 1, 1]} : vector<1x64x384xf32> to vector<1x64x32xf32>
    %58 = arith.truncf %57 : vector<1x64x32xf32> to vector<1x64x32xbf16>
    "tpu.trace_start"() <{level = 10 : i32, message = "gqd,gkd->gqk"}> : () -> ()
    %cst_19 = arith.constant dense<0.000000e+00> : vector<1x64x64xf32>
    %59 = tpu.matmul %54, %56, %cst_19 {dimension_numbers = #tpu.dot_dimension_numbers<[2], [2], [1], [1], [0, 0, 0, 1, 1, 1], [0], [0]>} : vector<1x64x32xbf16>, vector<1x64x32xbf16>, vector<1x64x64xf32> -> vector<1x64x64xf32>
    "tpu.trace_stop"() : () -> ()
    %cst_20 = arith.constant dense<0xFF800000> : vector<1x64xf32>
    %60 = vector.multi_reduction <maximumf>, %59, %cst_20 [2] : vector<1x64x64xf32> to vector<1x64xf32>
    %61 = vector.shape_cast %60 : vector<1x64xf32> to vector<1x64x1xf32>
    %62 = vector.broadcast %61 : vector<1x64x1xf32> to vector<1x64x64xf32>
    %63 = arith.subf %59, %62 : vector<1x64x64xf32>
    %64 = math.exp %63 : vector<1x64x64xf32>
    %cst_21 = arith.constant dense<0.000000e+00> : vector<1x64xf32>
    %65 = vector.multi_reduction <add>, %64, %cst_21 [2] : vector<1x64x64xf32> to vector<1x64xf32>
    %66 = vector.shape_cast %65 : vector<1x64xf32> to vector<1x64x1xf32>
    %67 = tpu.reciprocal %66 {approx = true} : vector<1x64x1xf32> -> vector<1x64x1xf32>
    %68 = vector.broadcast %67 : vector<1x64x1xf32> to vector<1x64x64xf32>
    %69 = arith.mulf %64, %68 : vector<1x64x64xf32>
    %70 = arith.truncf %69 : vector<1x64x64xf32> to vector<1x64x64xbf16>
    "tpu.trace_start"() <{level = 10 : i32, message = "gqk,gkd->gqd"}> : () -> ()
    %cst_22 = arith.constant dense<0.000000e+00> : vector<1x64x32xf32>
    %71 = tpu.matmul %70, %58, %cst_22 {dimension_numbers = #tpu.dot_dimension_numbers<[2], [1], [1], [2], [0, 0, 0, 1, 1, 2], [0], [0]>} : vector<1x64x64xbf16>, vector<1x64x32xbf16>, vector<1x64x32xf32> -> vector<1x64x32xf32>
    "tpu.trace_stop"() : () -> ()
    %72 = vector.extract_strided_slice %33 {offsets = [0, 0, 64], sizes = [1, 64, 32], strides = [1, 1, 1]} : vector<1x64x384xf32> to vector<1x64x32xf32>
    %73 = arith.truncf %72 : vector<1x64x32xf32> to vector<1x64x32xbf16>
    %74 = vector.extract_strided_slice %33 {offsets = [0, 0, 192], sizes = [1, 64, 32], strides = [1, 1, 1]} : vector<1x64x384xf32> to vector<1x64x32xf32>
    %75 = arith.truncf %74 : vector<1x64x32xf32> to vector<1x64x32xbf16>
    %76 = vector.extract_strided_slice %33 {offsets = [0, 0, 320], sizes = [1, 64, 32], strides = [1, 1, 1]} : vector<1x64x384xf32> to vector<1x64x32xf32>
    %77 = arith.truncf %76 : vector<1x64x32xf32> to vector<1x64x32xbf16>
    "tpu.trace_start"() <{level = 10 : i32, message = "gqd,gkd->gqk"}> : () -> ()
    %cst_23 = arith.constant dense<0.000000e+00> : vector<1x64x64xf32>
    %78 = tpu.matmul %73, %75, %cst_23 {dimension_numbers = #tpu.dot_dimension_numbers<[2], [2], [1], [1], [0, 0, 0, 1, 1, 1], [0], [0]>} : vector<1x64x32xbf16>, vector<1x64x32xbf16>, vector<1x64x64xf32> -> vector<1x64x64xf32>
    "tpu.trace_stop"() : () -> ()
    %cst_24 = arith.constant dense<0xFF800000> : vector<1x64xf32>
    %79 = vector.multi_reduction <maximumf>, %78, %cst_24 [2] : vector<1x64x64xf32> to vector<1x64xf32>
    %80 = vector.shape_cast %79 : vector<1x64xf32> to vector<1x64x1xf32>
    %81 = vector.broadcast %80 : vector<1x64x1xf32> to vector<1x64x64xf32>
    %82 = arith.subf %78, %81 : vector<1x64x64xf32>
    %83 = math.exp %82 : vector<1x64x64xf32>
    %cst_25 = arith.constant dense<0.000000e+00> : vector<1x64xf32>
    %84 = vector.multi_reduction <add>, %83, %cst_25 [2] : vector<1x64x64xf32> to vector<1x64xf32>
    %85 = vector.shape_cast %84 : vector<1x64xf32> to vector<1x64x1xf32>
    %86 = tpu.reciprocal %85 {approx = true} : vector<1x64x1xf32> -> vector<1x64x1xf32>
    %87 = vector.broadcast %86 : vector<1x64x1xf32> to vector<1x64x64xf32>
    %88 = arith.mulf %83, %87 : vector<1x64x64xf32>
    %89 = arith.truncf %88 : vector<1x64x64xf32> to vector<1x64x64xbf16>
    "tpu.trace_start"() <{level = 10 : i32, message = "gqk,gkd->gqd"}> : () -> ()
    %cst_26 = arith.constant dense<0.000000e+00> : vector<1x64x32xf32>
    %90 = tpu.matmul %89, %77, %cst_26 {dimension_numbers = #tpu.dot_dimension_numbers<[2], [1], [1], [2], [0, 0, 0, 1, 1, 2], [0], [0]>} : vector<1x64x64xbf16>, vector<1x64x32xbf16>, vector<1x64x32xf32> -> vector<1x64x32xf32>
    "tpu.trace_stop"() : () -> ()
    %91 = vector.extract_strided_slice %33 {offsets = [0, 0, 96], sizes = [1, 64, 32], strides = [1, 1, 1]} : vector<1x64x384xf32> to vector<1x64x32xf32>
    %92 = arith.truncf %91 : vector<1x64x32xf32> to vector<1x64x32xbf16>
    %93 = vector.extract_strided_slice %33 {offsets = [0, 0, 224], sizes = [1, 64, 32], strides = [1, 1, 1]} : vector<1x64x384xf32> to vector<1x64x32xf32>
    %94 = arith.truncf %93 : vector<1x64x32xf32> to vector<1x64x32xbf16>
    %95 = vector.extract_strided_slice %33 {offsets = [0, 0, 352], sizes = [1, 64, 32], strides = [1, 1, 1]} : vector<1x64x384xf32> to vector<1x64x32xf32>
    %96 = arith.truncf %95 : vector<1x64x32xf32> to vector<1x64x32xbf16>
    "tpu.trace_start"() <{level = 10 : i32, message = "gqd,gkd->gqk"}> : () -> ()
    %cst_27 = arith.constant dense<0.000000e+00> : vector<1x64x64xf32>
    %97 = tpu.matmul %92, %94, %cst_27 {dimension_numbers = #tpu.dot_dimension_numbers<[2], [2], [1], [1], [0, 0, 0, 1, 1, 1], [0], [0]>} : vector<1x64x32xbf16>, vector<1x64x32xbf16>, vector<1x64x64xf32> -> vector<1x64x64xf32>
    "tpu.trace_stop"() : () -> ()
    %cst_28 = arith.constant dense<0xFF800000> : vector<1x64xf32>
    %98 = vector.multi_reduction <maximumf>, %97, %cst_28 [2] : vector<1x64x64xf32> to vector<1x64xf32>
    %99 = vector.shape_cast %98 : vector<1x64xf32> to vector<1x64x1xf32>
    %100 = vector.broadcast %99 : vector<1x64x1xf32> to vector<1x64x64xf32>
    %101 = arith.subf %97, %100 : vector<1x64x64xf32>
    %102 = math.exp %101 : vector<1x64x64xf32>
    %cst_29 = arith.constant dense<0.000000e+00> : vector<1x64xf32>
    %103 = vector.multi_reduction <add>, %102, %cst_29 [2] : vector<1x64x64xf32> to vector<1x64xf32>
    %104 = vector.shape_cast %103 : vector<1x64xf32> to vector<1x64x1xf32>
    %105 = tpu.reciprocal %104 {approx = true} : vector<1x64x1xf32> -> vector<1x64x1xf32>
    %106 = vector.broadcast %105 : vector<1x64x1xf32> to vector<1x64x64xf32>
    %107 = arith.mulf %102, %106 : vector<1x64x64xf32>
    %108 = arith.truncf %107 : vector<1x64x64xf32> to vector<1x64x64xbf16>
    "tpu.trace_start"() <{level = 10 : i32, message = "gqk,gkd->gqd"}> : () -> ()
    %cst_30 = arith.constant dense<0.000000e+00> : vector<1x64x32xf32>
    %109 = tpu.matmul %108, %96, %cst_30 {dimension_numbers = #tpu.dot_dimension_numbers<[2], [1], [1], [2], [0, 0, 0, 1, 1, 2], [0], [0]>} : vector<1x64x64xbf16>, vector<1x64x32xbf16>, vector<1x64x32xf32> -> vector<1x64x32xf32>
    "tpu.trace_stop"() : () -> ()
    %110 = tpu.concatenate %52, %71, %90, %109 in 2 : vector<1x64x32xf32>, vector<1x64x32xf32>, vector<1x64x32xf32>, vector<1x64x32xf32> -> vector<1x64x128xf32>
    %111 = vector.shape_cast %110 : vector<1x64x128xf32> to vector<64x128xf32>
    %112 = arith.truncf %111 : vector<64x128xf32> to vector<64x128xbf16>
    %c0_31 = arith.constant 0 : index
    %c0_32 = arith.constant 0 : index
    %113 = vector.load %arg6[%c0_31, %c0_32] : memref<128x128xbf16, #tpu.memory_space<vmem>>, vector<128x128xbf16>
    %cst_33 = arith.constant dense<0.000000e+00> : vector<64x128xf32>
    %114 = tpu.matmul %112, %113, %cst_33 {dimension_numbers = #tpu.dot_dimension_numbers<[1], [0], [0], [1], [0, 0, 1, 1], [], []>} : vector<64x128xbf16>, vector<128x128xbf16>, vector<64x128xf32> -> vector<64x128xf32>
    %c0_34 = arith.constant 0 : index
    %c0_35 = arith.constant 0 : index
    %115 = vector.load %arg7[%c0_34, %c0_35] : memref<1x128xf32, #tpu.memory_space<vmem>>, vector<1x128xf32>
    %116 = vector.broadcast %115 : vector<1x128xf32> to vector<64x128xf32>
    %117 = arith.addf %114, %116 : vector<64x128xf32>
    %118 = arith.addf %2, %117 : vector<64x128xf32>
    %119 = vector.shape_cast %118 : vector<64x128xf32> to vector<1x64x128xf32>
    %120 = arith.truncf %119 : vector<1x64x128xf32> to vector<1x64x128xbf16>
    %c0_36 = arith.constant 0 : index
    %c0_37 = arith.constant 0 : index
    %c0_38 = arith.constant 0 : index
    %121 = vector.load %arg8[%c0_36, %c0_37, %c0_38] : memref<1x64x128xbf16, #tpu.memory_space<vmem>>, vector<1x64x128xbf16>
    tpu.vector_store %arg8[%c0_36, %c0_37, %c0_38], %120 {strides = array<i32>} : memref<1x64x128xbf16, #tpu.memory_space<vmem>>, vector<1x64x128xbf16>,
    return
  }
  func.func @transform_0(%arg0: i32) -> (i32, i32, i32) {
    %c0_i32 = arith.constant 0 : i32
    %c0_i32_0 = arith.constant 0 : i32
    %c0_i32_1 = arith.constant 0 : i32
    return %arg0, %c0_i32, %c0_i32_0 : i32, i32, i32
  }
  func.func @transform_1(%arg0: i32) -> (i32, i32) {
    %c0_i32 = arith.constant 0 : i32
    %c0_i32_0 = arith.constant 0 : i32
    %c0_i32_1 = arith.constant 0 : i32
    return %c0_i32, %c0_i32_0 : i32, i32
  }
  func.func @transform_2(%arg0: i32) -> (i32, i32) {
    %c0_i32 = arith.constant 0 : i32
    %c0_i32_0 = arith.constant 0 : i32
    %c0_i32_1 = arith.constant 0 : i32
    return %c0_i32, %c0_i32_0 : i32, i32
  }
  func.func @transform_3(%arg0: i32) -> (i32, i32) {
    %c0_i32 = arith.constant 0 : i32
    %c0_i32_0 = arith.constant 0 : i32
    %c0_i32_1 = arith.constant 0 : i32
    return %c0_i32, %c0_i32_0 : i32, i32
  }
  func.func @transform_4(%arg0: i32) -> (i32, i32) {
    %c0_i32 = arith.constant 0 : i32
    %c0_i32_0 = arith.constant 0 : i32
    %c0_i32_1 = arith.constant 0 : i32
    return %c0_i32, %c0_i32_0 : i32, i32
  }
  func.func @transform_5(%arg0: i32) -> (i32, i32) {
    %c0_i32 = arith.constant 0 : i32
    %c0_i32_0 = arith.constant 0 : i32
    %c0_i32_1 = arith.constant 0 : i32
    return %c0_i32, %c0_i32_0 : i32, i32
  }
  func.func @transform_6(%arg0: i32) -> (i32, i32) {
    %c0_i32 = arith.constant 0 : i32
    %c0_i32_0 = arith.constant 0 : i32
    %c0_i32_1 = arith.constant 0 : i32
    return %c0_i32, %c0_i32_0 : i32, i32
  }
  func.func @transform_7(%arg0: i32) -> (i32, i32, i32) {
    %c0_i32 = arith.constant 0 : i32
    %c0_i32_0 = arith.constant 0 : i32
    %c0_i32_1 = arith.constant 0 : i32
    return %arg0, %c0_i32, %c0_i32_0 : i32, i32, i32
  }
}

</mosaic_0001>

<llo_original>
// kernel: transformer_forward.5
$region0: #{transformer_forward.5}
  #allocation0 [shape = 'u32[]', space=smem, size = 0x4, offset = 0x4, fixed_abs, tag = 'smem constant byte address 0x4 - core index']
  #allocation1 [shape = 'u32[144,128]{1,0:T(1,128)}', space=vmem, size = 0x12000, scoped, tag = 'internal scratch']
  #allocation2 [shape = 'f32[64,128]{1,0:T(8,128)}', space=vmem, size = 0x8000, scoped, tag = 'scratch operand']
  #allocation3 [shape = 'bf16[64,128]{1,0:T(16,128)(2,1)}', space=vmem, size = 0x4000, scoped, tag = 'scratch operand']
  %s0 = inlined_call_operand.vmem [shape: bf16[256,128], index: 0, kind: input, shape index: {}]
  %s1 = inlined_call_operand.vmem [shape: f32[1,128], index: 1, kind: input, shape index: {}]
  %s2 = inlined_call_operand.vmem [shape: f32[1,128], index: 2, kind: input, shape index: {}]
  %s3 = inlined_call_operand.vmem [shape: bf16[128,512], index: 3, kind: input, shape index: {}]
  %s4 = inlined_call_operand.vmem [shape: f32[1,512], index: 4, kind: input, shape index: {}]
  %s5 = inlined_call_operand.vmem [shape: bf16[512,128], index: 5, kind: input, shape index: {}]
  %s6 = inlined_call_operand.vmem [shape: f32[1,128], index: 6, kind: input, shape index: {}]
  %s7 = inlined_call_operand.vmem [shape: bf16[256,128], index: 7, kind: output, shape index: {}]
  %s8 = sld [smem:[#allocation0]]
  $region69: #{transformer_forward.5} parent=0
    _
  %s10 = ssub.s32 1, %s8
  %s11 = scalar_select 0, %s10, %s8
  loop: start=0, step=1, limit=6
  $region2: #{transformer_forward.5} parent=0 // loop_pre_header
    _
  $region3: #{transformer_forward.5} parent=0 // loop_header
    %s13 = sphi 0, %s17
    %p14 = scmp.ge.s32.totalorder %s13, 6
    %s20 = sphi 0, %s32
    %s21 = sphi 0, %s28
    %s22 = sphi 0, %s20
    %s23 = sphi 0, %s21
    %s24 = sphi 0, %s22
    %s25 = sphi 0, %s23
    %s35 = sphi 0, %s37
    %s38 = sphi 0, %s35
    %s39 = sphi 0, %s38
    %s55 = sphi 0, %s39
    %s59 = sphi 0, %s59
    %s61 = sphi 0, %s59
    %s62 = sphi 0, %s61
    %s76 = sphi 0, %s62
    %s80 = sphi 0, %s80
    %s82 = sphi 0, %s80
    %s83 = sphi 0, %s82
    %s97 = sphi 0, %s83
    %s103 = sphi 0, %s105
    %s106 = sphi 0, %s103
    %s107 = sphi 0, %s106
    %s123 = sphi 0, %s107
    %s129 = sphi 0, %s131
    %s132 = sphi 0, %s129
    %s133 = sphi 0, %s132
    %s149 = sphi 0, %s133
    %s155 = sphi 0, %s157
    %s158 = sphi 0, %s155
    %s159 = sphi 0, %s158
    %s175 = sphi 0, %s159
    %s179 = sphi 0, %s179
    %s181 = sphi 0, %s179
    %s182 = sphi 0, %s181
    %s196 = sphi 0, %s182
    %s202 = sphi 0, %s204
    %s205 = sphi 0, %s202
    %s206 = sphi 0, %s205
    %s222 = sphi 0, %s206
  $region4: #{transformer_forward.5} parent=0 // loop_header_branch
    %16 = sbr.rel (%p14) target = $region8
  $region5: #{transformer_forward.5} parent=0 // loop_body
    %s18 = ssub.s32 %s13, 1
    %s19 = ssub.s32 %s13, 2
    %s26 = sadd.s32 1, %s21
    %p27 = scmp.ge.s32.totalorder %s26, 1
    %s28 = scalar_select %p27, 0, %s26
    %s29 = sadd.s32 1, %s20
    %s30 = scalar_select %p27, %s29, %s20
    %p31 = scmp.ge.s32.totalorder %s30, 4
    %s32 = scalar_select %p31, 0, %s30
    %s33 = ssub.s32 %s20, %s32
    %p34 = scmp.eq.s32.totalorder %s33, 0
    %s36 = sadd.s32 %s35, 1
    %s37 = scalar_select %p34, %s35, %s36
    %p40 = pneg %p34
    %p41 = scmp.eq.s32.totalorder %s13, 3
    %p42 = por %p40, %p41
    %p43 = scmp.ne.s32.totalorder %s35, %s38
    %p44 = scmp.eq.s32.totalorder %s13, 0
    %p45 = por %p43, %p44
    %p46 = scmp.ne.s32.totalorder %s35, %s38
    %p47 = scmp.eq.s32.totalorder %s18, 3
    %p48 = por %p46, %p47
    %p49 = scmp.ne.s32.totalorder %s38, %s39
    %p50 = scmp.eq.s32.totalorder %s18, 0
    %p51 = por %p49, %p50
    %p52 = scmp.ne.s32.totalorder %s38, %s39
    %p53 = scmp.eq.s32.totalorder %s19, 3
    %p54 = por %p52, %p53
    %p56 = scmp.ne.s32.totalorder %s39, %s55
    %p57 = scmp.eq.s32.totalorder %s19, 0
    %p58 = por %p56, %p57
    %s60 = sadd.s32 %s59, 1
    %p63 = scmp.eq.s32.totalorder %s13, 3
    %p64 = scmp.ne.s32.totalorder %s59, %s61
    %p65 = scmp.eq.s32.totalorder %s13, 0
    %p66 = por %p64, %p65
    %p67 = scmp.ne.s32.totalorder %s59, %s61
    %p68 = scmp.eq.s32.totalorder %s18, 3
    %p69 = por %p67, %p68
    %p70 = scmp.ne.s32.totalorder %s61, %s62
    %p71 = scmp.eq.s32.totalorder %s18, 0
    %p72 = por %p70, %p71
    %p73 = scmp.ne.s32.totalorder %s61, %s62
    %p74 = scmp.eq.s32.totalorder %s19, 3
    %p75 = por %p73, %p74
    %p77 = scmp.ne.s32.totalorder %s62, %s76
    %p78 = scmp.eq.s32.totalorder %s19, 0
    %p79 = por %p77, %p78
    %s81 = sadd.s32 %s80, 1
    %p84 = scmp.eq.s32.totalorder %s13, 3
    %p85 = scmp.ne.s32.totalorder %s80, %s82
    %p86 = scmp.eq.s32.totalorder %s13, 0
    %p87 = por %p85, %p86
    %p88 = scmp.ne.s32.totalorder %s80, %s82
    %p89 = scmp.eq.s32.totalorder %s18, 3
    %p90 = por %p88, %p89
    %p91 = scmp.ne.s32.totalorder %s82, %s83
    %p92 = scmp.eq.s32.totalorder %s18, 0
    %p93 = por %p91, %p92
    %p94 = scmp.ne.s32.totalorder %s82, %s83
    %p95 = scmp.eq.s32.totalorder %s19, 3
    %p96 = por %p94, %p95
    %p98 = scmp.ne.s32.totalorder %s83, %s97
    %p99 = scmp.eq.s32.totalorder %s19, 0
    %p100 = por %p98, %p99
    %s101 = ssub.s32 %s21, %s28
    %p102 = scmp.eq.s32.totalorder %s101, 0
    %s104 = sadd.s32 %s103, 1
    %s105 = scalar_select %p102, %s103, %s104
    %p108 = pneg %p102
    %p109 = scmp.eq.s32.totalorder %s13, 3
    %p110 = por %p108, %p109
    %p111 = scmp.ne.s32.totalorder %s103, %s106
    %p112 = scmp.eq.s32.totalorder %s13, 0
    %p113 = por %p111, %p112
    %p114 = scmp.ne.s32.totalorder %s103, %s106
    %p115 = scmp.eq.s32.totalorder %s18, 3
    %p116 = por %p114, %p115
    %p117 = scmp.ne.s32.totalorder %s106, %s107
    %p118 = scmp.eq.s32.totalorder %s18, 0
    %p119 = por %p117, %p118
    %p120 = scmp.ne.s32.totalorder %s106, %s107
    %p121 = scmp.eq.s32.totalorder %s19, 3
    %p122 = por %p120, %p121
    %p124 = scmp.ne.s32.totalorder %s107, %s123
    %p125 = scmp.eq.s32.totalorder %s19, 0
    %p126 = por %p124, %p125
    %s127 = ssub.s32 %s21, %s28
    %p128 = scmp.eq.s32.totalorder %s127, 0
    %s130 = sadd.s32 %s129, 1
    %s131 = scalar_select %p128, %s129, %s130
    %p134 = pneg %p128
    %p135 = scmp.eq.s32.totalorder %s13, 3
    %p136 = por %p134, %p135
    %p137 = scmp.ne.s32.totalorder %s129, %s132
    %p138 = scmp.eq.s32.totalorder %s13, 0
    %p139 = por %p137, %p138
    %p140 = scmp.ne.s32.totalorder %s129, %s132
    %p141 = scmp.eq.s32.totalorder %s18, 3
    %p142 = por %p140, %p141
    %p143 = scmp.ne.s32.totalorder %s132, %s133
    %p144 = scmp.eq.s32.totalorder %s18, 0
    %p145 = por %p143, %p144
    %p146 = scmp.ne.s32.totalorder %s132, %s133
    %p147 = scmp.eq.s32.totalorder %s19, 3
    %p148 = por %p146, %p147
    %p150 = scmp.ne.s32.totalorder %s133, %s149
    %p151 = scmp.eq.s32.totalorder %s19, 0
    %p152 = por %p150, %p151
    %s153 = ssub.s32 %s21, %s28
    %p154 = scmp.eq.s32.totalorder %s153, 0
    %s156 = sadd.s32 %s155, 1
    %s157 = scalar_select %p154, %s155, %s156
    %p160 = pneg %p154
    %p161 = scmp.eq.s32.totalorder %s13, 3
    %p162 = por %p160, %p161
    %p163 = scmp.ne.s32.totalorder %s155, %s158
    %p164 = scmp.eq.s32.totalorder %s13, 0
    %p165 = por %p163, %p164
    %p166 = scmp.ne.s32.totalorder %s155, %s158
    %p167 = scmp.eq.s32.totalorder %s18, 3
    %p168 = por %p166, %p167
    %p169 = scmp.ne.s32.totalorder %s158, %s159
    %p170 = scmp.eq.s32.totalorder %s18, 0
    %p171 = por %p169, %p170
    %p172 = scmp.ne.s32.totalorder %s158, %s159
    %p173 = scmp.eq.s32.totalorder %s19, 3
    %p174 = por %p172, %p173
    %p176 = scmp.ne.s32.totalorder %s159, %s175
    %p177 = scmp.eq.s32.totalorder %s19, 0
    %p178 = por %p176, %p177
    %s180 = sadd.s32 %s179, 1
    %p183 = scmp.eq.s32.totalorder %s13, 3
    %p184 = scmp.ne.s32.totalorder %s179, %s181
    %p185 = scmp.eq.s32.totalorder %s13, 0
    %p186 = por %p184, %p185
    %p187 = scmp.ne.s32.totalorder %s179, %s181
    %p188 = scmp.eq.s32.totalorder %s18, 3
    %p189 = por %p187, %p188
    %p190 = scmp.ne.s32.totalorder %s181, %s182
    %p191 = scmp.eq.s32.totalorder %s18, 0
    %p192 = por %p190, %p191
    %p193 = scmp.ne.s32.totalorder %s181, %s182
    %p194 = scmp.eq.s32.totalorder %s19, 3
    %p195 = por %p193, %p194
    %p197 = scmp.ne.s32.totalorder %s182, %s196
    %p198 = scmp.eq.s32.totalorder %s19, 0
    %p199 = por %p197, %p198
    %s200 = ssub.s32 %s20, %s32
    %p201 = scmp.eq.s32.totalorder %s200, 0
    %s203 = sadd.s32 %s202, 1
    %s204 = scalar_select %p201, %s202, %s203
    %p207 = pneg %p201
    %p208 = scmp.eq.s32.totalorder %s13, 3
    %p209 = por %p207, %p208
    %p210 = scmp.ne.s32.totalorder %s202, %s205
    %p211 = scmp.eq.s32.totalorder %s13, 0
    %p212 = por %p210, %p211
    %p213 = scmp.ne.s32.totalorder %s202, %s205
    %p214 = scmp.eq.s32.totalorder %s18, 3
    %p215 = por %p213, %p214
    %p216 = scmp.ne.s32.totalorder %s205, %s206
    %p217 = scmp.eq.s32.totalorder %s18, 0
    %p218 = por %p216, %p217
    %p219 = scmp.ne.s32.totalorder %s205, %s206
    %p220 = scmp.eq.s32.totalorder %s19, 3
    %p221 = por %p219, %p220
    %p223 = scmp.ne.s32.totalorder %s206, %s222
    %p224 = scmp.eq.s32.totalorder %s19, 0
    %p225 = por %p223, %p224
    %p226 = scmp.le.s32.totalorder 1, %s13
    %p227 = scmp.lt.s32.totalorder %s13, 5
    %p228 = pnand %p226, %p227
    %p229 = pneg %p228
    // Predicated region
    $region9: #{transformer_forward.5} parent=5 // pred_check
      _
    $region10: #{transformer_forward.5} parent=5 // pred_check_branch
      %231 = sbr.rel (%p228) target = $region12
    $region11: #{transformer_forward.5} parent=5 // pred_region
      %s232 = ssub.s32 %s13, 1
      // Predicated region
      $region13: #{transformer_forward.5} parent=11 // pred_check
        %p233 = pneg %p72
      $region14: #{transformer_forward.5} parent=11 // pred_check_branch
        %235 = sbr.rel (%p233) target = $region16
      $region15: #{transformer_forward.5} parent=11 // pred_region
        _
      $region16: #{transformer_forward.5} parent=11 // pred_fallthru
        _
      // Predicated region
      $region17: #{transformer_forward.5} parent=11 // pred_check
        %p236 = pneg %p93
      $region18: #{transformer_forward.5} parent=11 // pred_check_branch
        %238 = sbr.rel (%p236) target = $region20
      $region19: #{transformer_forward.5} parent=11 // pred_region
        _
      $region20: #{transformer_forward.5} parent=11 // pred_fallthru
        _
      // Predicated region
      $region21: #{transformer_forward.5} parent=11 // pred_check
        %p239 = pneg %p119
      $region22: #{transformer_forward.5} parent=11 // pred_check_branch
        %241 = sbr.rel (%p239) target = $region24
      $region23: #{transformer_forward.5} parent=11 // pred_region
        %s242 = smul.u32 4, %s23
        %p243 = scmp.lt.s32.totalorder %s242, 3
        %s244 = scalar_select %p243, %s242, 3
        %s245 = smul.addr %s244, 4
        %s246 = scalar_lea.vmem %s3, %s245
        %s247 = smul.u32 4, %s23
      $region24: #{transformer_forward.5} parent=11 // pred_fallthru
        _
      // Predicated region
      $region25: #{transformer_forward.5} parent=11 // pred_check
        %p248 = pneg %p145
      $region26: #{transformer_forward.5} parent=11 // pred_check_branch
        %250 = sbr.rel (%p248) target = $region28
      $region27: #{transformer_forward.5} parent=11 // pred_region
        %s251 = smul.u32 4, %s23
        %p252 = scmp.lt.s32.totalorder %s251, 3
        %s253 = scalar_select %p252, %s251, 3
        %s254 = scalar_lea.vmem %s4, %s253
        %s255 = smul.u32 4, %s23
      $region28: #{transformer_forward.5} parent=11 // pred_fallthru
        _
      // Predicated region
      $region29: #{transformer_forward.5} parent=11 // pred_check
        %p256 = pneg %p171
      $region30: #{transformer_forward.5} parent=11 // pred_check_branch
        %258 = sbr.rel (%p256) target = $region32
      $region31: #{transformer_forward.5} parent=11 // pred_region
        %s259 = smul.u32 64, %s23
        %p260 = scmp.lt.s32.totalorder %s259, 63
        %s261 = scalar_select %p260, %s259, 63
        %s262 = smul.addr %s261, 4
        %s263 = scalar_lea.vmem %s5, %s262
        %s264 = smul.u32 64, %s23
      $region32: #{transformer_forward.5} parent=11 // pred_fallthru
        _
      // Predicated region
      $region33: #{transformer_forward.5} parent=11 // pred_check
        %p265 = pneg %p192
      $region34: #{transformer_forward.5} parent=11 // pred_check_branch
        %267 = sbr.rel (%p265) target = $region36
      $region35: #{transformer_forward.5} parent=11 // pred_region
        _
      $region36: #{transformer_forward.5} parent=11 // pred_fallthru
        _
    $region12: #{transformer_forward.5} parent=5 // pred_fallthru
      _
    %p268 = scmp.lt.s32.totalorder %s13, 4
    // Predicated region
    $region37: #{transformer_forward.5} parent=5 // pred_check
      %p269 = pneg %p268
    $region38: #{transformer_forward.5} parent=5 // pred_check_branch
      %271 = sbr.rel (%p269) target = $region40
    $region39: #{transformer_forward.5} parent=5 // pred_region
      // Predicated region
      $region41: #{transformer_forward.5} parent=39 // pred_check
        %p272 = pneg %p45
      $region42: #{transformer_forward.5} parent=39 // pred_check_branch
        %274 = sbr.rel (%p272) target = $region44
      $region43: #{transformer_forward.5} parent=39 // pred_region
        %s275 = smul.u32 8, %s20
        %p276 = scmp.lt.s32.totalorder %s275, 31
        %s277 = scalar_select %p276, %s275, 31
        %s278 = smul.addr %s277, 4
        %s279 = scalar_lea.vmem %s0, %s278
        %s280 = smul.u32 8, %s20
      $region44: #{transformer_forward.5} parent=39 // pred_fallthru
        _
    $region40: #{transformer_forward.5} parent=5 // pred_fallthru
      _
    %p281 = scmp.le.s32.totalorder 1, %s13
    %p282 = scmp.lt.s32.totalorder %s13, 5
    %p283 = pnand %p281, %p282
    %p284 = pneg %p283
    // Predicated region
    $region45: #{transformer_forward.5} parent=5 // pred_check
      _
    $region46: #{transformer_forward.5} parent=5 // pred_check_branch
      %286 = sbr.rel (%p283) target = $region48
    $region47: #{transformer_forward.5} parent=5 // pred_region
      %s287 = ssub.s32 %s13, 1
      %s288 = smul.u32 8, %s22
      %p289 = scmp.lt.s32.totalorder %s288, 31
      %s290 = scalar_select %p289, %s288, 31
      %s291 = smul.addr %s290, 4
      %s292 = scalar_lea.vmem %s0, %s291
      %p293 = pneg %p51
      %p294 = pneg %p48
      %p295 = pneg %p72
      %p296 = pneg %p69
      %p297 = pneg %p93
      %p298 = pneg %p90
      %s299 = smul.u32 4, %s23
      %p300 = scmp.lt.s32.totalorder %s299, 3
      %s301 = scalar_select %p300, %s299, 3
      %s302 = smul.addr %s301, 4
      %s303 = scalar_lea.vmem %s3, %s302
      %p304 = pneg %p119
      %p305 = pneg %p116
      %s306 = smul.u32 4, %s23
      %p307 = scmp.lt.s32.totalorder %s306, 3
      %s308 = scalar_select %p307, %s306, 3
      %s309 = scalar_lea.vmem %s4, %s308
      %p310 = pneg %p145
      %p311 = pneg %p142
      %s312 = smul.u32 64, %s23
      %p313 = scmp.lt.s32.totalorder %s312, 63
      %s314 = scalar_select %p313, %s312, 63
      %s315 = smul.addr %s314, 4
      %s316 = scalar_lea.vmem %s5, %s315
      %p317 = pneg %p171
      %p318 = pneg %p168
      %p319 = pneg %p192
      %p320 = pneg %p189
      %p321 = pneg %p218
      %p322 = pneg %p215
      %s323 = smul.u32 8, %s22
      %p324 = scmp.lt.s32.totalorder %s323, 31
      %s325 = scalar_select %p324, %s323, 31
      %s326 = smul.addr %s325, 4
      %s327 = scalar_lea.vmem %s7, %s326
      %s328 = smul.u32 8, %s22
      %p329 = scmp.lt.s32.totalorder %s328, 31
      %s330 = scalar_select %p329, %s328, 31
      %s331 = smul.addr %s330, 4
      %s332 = scalar_lea.vmem %s0, %s331
      %s333 = smul.u32 8, %s22
      %s334 = smul.u32 4, %s23
      %p335 = scmp.lt.s32.totalorder %s334, 3
      %s336 = scalar_select %p335, %s334, 3
      %s337 = smul.addr %s336, 4
      %s338 = scalar_lea.vmem %s3, %s337
      %s339 = smul.u32 4, %s23
      %s340 = smul.u32 4, %s23
      %p341 = scmp.lt.s32.totalorder %s340, 3
      %s342 = scalar_select %p341, %s340, 3
      %s343 = scalar_lea.vmem %s4, %s342
      %s344 = smul.u32 4, %s23
      %s345 = smul.u32 64, %s23
      %p346 = scmp.lt.s32.totalorder %s345, 63
      %s347 = scalar_select %p346, %s345, 63
      %s348 = smul.addr %s347, 4
      %s349 = scalar_lea.vmem %s5, %s348
      %s350 = smul.u32 64, %s23
      %s351 = smul.u32 8, %s22
      %p352 = scmp.lt.s32.totalorder %s351, 31
      %s353 = scalar_select %p352, %s351, 31
      %s354 = smul.addr %s353, 4
      %s355 = scalar_lea.vmem %s7, %s354
      %s356 = smul.u32 8, %s22
      %p358 = scmp.eq.s32.totalorder %s23, 0
      // Predicated region
      $region49: #{transformer_forward.5} parent=47 // pred_check
        %p359 = pneg %p358
      $region50: #{transformer_forward.5} parent=47 // pred_check_branch
        %361 = sbr.rel (%p359) target = $region52
      $region51: #{transformer_forward.5} parent=47 // pred_region
        %v362 = vld [vmem:[%s332] sm:$0xf]
        %v363 = vld [vmem:[%s332 + $0x4] sm:$0xf]
        %v364 = vld [vmem:[%s332 + $0x8] sm:$0xf]
        %v365 = vld [vmem:[%s332 + $0xc] sm:$0xf]
        %v366 = vld [vmem:[%s332 + $0x10] sm:$0xf]
        %v367 = vld [vmem:[%s332 + $0x14] sm:$0xf]
        %v368 = vld [vmem:[%s332 + $0x18] sm:$0xf]
        %v369 = vld [vmem:[%s332 + $0x1c] sm:$0xf]
        %v370 = vunpack.c.l.bf16 %v362
        %v371 = vunpack.c.l.bf16 %v363
        %v372 = vunpack.c.l.bf16 %v364
        %v373 = vunpack.c.l.bf16 %v365
        %v374 = vunpack.c.l.bf16 %v366
        %v375 = vunpack.c.l.bf16 %v367
        %v376 = vunpack.c.l.bf16 %v368
        %v377 = vunpack.c.l.bf16 %v369
        %378 = vadd.xlane.f32.xlu0 %v370
        %v379 = vpop.xlane.xlu0 %378
        %380 = vadd.xlane.f32.xlu0 %v371
        %v381 = vpop.xlane.xlu0 %380
        %382 = vadd.xlane.f32.xlu0 %v372
        %v383 = vpop.xlane.xlu0 %382
        %384 = vadd.xlane.f32.xlu0 %v373
        %v385 = vpop.xlane.xlu0 %384
        %386 = vadd.xlane.f32.xlu0 %v374
        %v387 = vpop.xlane.xlu0 %386
        %388 = vadd.xlane.f32.xlu0 %v375
        %v389 = vpop.xlane.xlu0 %388
        %390 = vadd.xlane.f32.xlu0 %v376
        %v391 = vpop.xlane.xlu0 %390
        %392 = vadd.xlane.f32.xlu0 %v377
        %v393 = vpop.xlane.xlu0 %392
        %v394 = vrcp.pop 128.0
        %v395 = vmul.f32 %v379, %v394
        %v396 = vmul.f32 %v381, %v394
        %v397 = vmul.f32 %v383, %v394
        %v398 = vmul.f32 %v385, %v394
        %v399 = vmul.f32 %v387, %v394
        %v400 = vmul.f32 %v389, %v394
        %v401 = vmul.f32 %v391, %v394
        %v402 = vmul.f32 %v393, %v394
        %v403 = vsub.f32 %v370, %v395
        %v404 = vsub.f32 %v371, %v396
        %v405 = vsub.f32 %v372, %v397
        %v406 = vsub.f32 %v373, %v398
        %v407 = vsub.f32 %v374, %v399
        %v408 = vsub.f32 %v375, %v400
        %v409 = vsub.f32 %v376, %v401
        %v410 = vsub.f32 %v377, %v402
        %v411 = vmul.f32 %v403, %v403
        %v412 = vmul.f32 %v404, %v404
        %v413 = vmul.f32 %v405, %v405
        %v414 = vmul.f32 %v406, %v406
        %v415 = vmul.f32 %v407, %v407
        %v416 = vmul.f32 %v408, %v408
        %v417 = vmul.f32 %v409, %v409
        %v418 = vmul.f32 %v410, %v410
        %419 = vadd.xlane.f32.xlu0 %v411
        %v420 = vpop.xlane.xlu0 %419
        %421 = vadd.xlane.f32.xlu0 %v412
        %v422 = vpop.xlane.xlu0 %421
        %423 = vadd.xlane.f32.xlu0 %v413
        %v424 = vpop.xlane.xlu0 %423
        %425 = vadd.xlane.f32.xlu0 %v414
        %v426 = vpop.xlane.xlu0 %425
        %427 = vadd.xlane.f32.xlu0 %v415
        %v428 = vpop.xlane.xlu0 %427
        %429 = vadd.xlane.f32.xlu0 %v416
        %v430 = vpop.xlane.xlu0 %429
        %431 = vadd.xlane.f32.xlu0 %v417
        %v432 = vpop.xlane.xlu0 %431
        %433 = vadd.xlane.f32.xlu0 %v418
        %v434 = vpop.xlane.xlu0 %433
        %v435 = vmul.f32 %v420, %v394
        %v436 = vmul.f32 %v422, %v394
        %v437 = vmul.f32 %v424, %v394
        %v438 = vmul.f32 %v426, %v394
        %v439 = vmul.f32 %v428, %v394
        %v440 = vmul.f32 %v430, %v394
        %v441 = vmul.f32 %v432, %v394
        %v442 = vmul.f32 %v434, %v394
        %v443 = vadd.f32 %v435, 1e-05
        %v444 = vadd.f32 %v436, 1e-05
        %v445 = vadd.f32 %v437, 1e-05
        %v446 = vadd.f32 %v438, 1e-05
        %v447 = vadd.f32 %v439, 1e-05
        %v448 = vadd.f32 %v440, 1e-05
        %v449 = vadd.f32 %v441, 1e-05
        %v450 = vadd.f32 %v442, 1e-05
        %v451 = vrsqrt.pop %v443
        %v452 = vrsqrt.pop %v444
        %v453 = vrsqrt.pop %v445
        %v454 = vrsqrt.pop %v446
        %v455 = vrsqrt.pop %v447
        %v456 = vrsqrt.pop %v448
        %v457 = vrsqrt.pop %v449
        %v458 = vrsqrt.pop %v450
        %v459 = vmul.f32 %v403, %v451
        %v460 = vmul.f32 %v404, %v452
        %v461 = vmul.f32 %v405, %v453
        %v462 = vmul.f32 %v406, %v454
        %v463 = vmul.f32 %v407, %v455
        %v464 = vmul.f32 %v408, %v456
        %v465 = vmul.f32 %v409, %v457
        %v466 = vmul.f32 %v410, %v458
        %v467 = vld [vmem:[%s1] sm:$0x1]
        %v469 = vlaneseq
        %v470 = vshrl.u32 %v469, 7
        %v471 = vsub.s32 0, %v470
        %v472 = vrot.slane %v467, %v471
        %v474 = vmul.f32 %v459, %v472
        %v475 = vmul.f32 %v460, %v472
        %v476 = vmul.f32 %v461, %v472
        %v477 = vmul.f32 %v462, %v472
        %v478 = vmul.f32 %v463, %v472
        %v479 = vmul.f32 %v464, %v472
        %v480 = vmul.f32 %v465, %v472
        %v481 = vmul.f32 %v466, %v472
        %v482 = vld [vmem:[%s2] sm:$0x1]
        %v484 = vlaneseq
        %v485 = vshrl.u32 %v484, 7
        %v486 = vsub.s32 0, %v485
        %v487 = vrot.slane %v482, %v486
        %v489 = vadd.f32 %v474, %v487
        %v490 = vadd.f32 %v475, %v487
        %v491 = vadd.f32 %v476, %v487
        %v492 = vadd.f32 %v477, %v487
        %v493 = vadd.f32 %v478, %v487
        %v494 = vadd.f32 %v479, %v487
        %v495 = vadd.f32 %v480, %v487
        %v496 = vadd.f32 %v481, %v487
        %v497 = vpack.c.bf16 %v490, %v489
        %v498 = vpack.c.bf16 %v492, %v491
        %v499 = vpack.c.bf16 %v494, %v493
        %v500 = vpack.c.bf16 %v496, %v495
        %501 = vst [vmem:[#allocation3] sm:$0xff] %v497
        %502 = vst [vmem:[#allocation3 + $0x8] sm:$0xff] %v498
        %503 = vst [vmem:[#allocation3 + $0x10] sm:$0xff] %v499
        %504 = vst [vmem:[#allocation3 + $0x18] sm:$0xff] %v500
        %v505 = vld [vmem:[%s6] sm:$0x1]
        %v507 = vlaneseq
        %v508 = vshrl.u32 %v507, 7
        %v509 = vsub.s32 0, %v508
        %v510 = vrot.slane %v505, %v509
        %v512 = vadd.f32 %v370, %v510
        %v513 = vadd.f32 %v371, %v510
        %v514 = vadd.f32 %v372, %v510
        %v515 = vadd.f32 %v373, %v510
        %v516 = vadd.f32 %v374, %v510
        %v517 = vadd.f32 %v375, %v510
        %v518 = vadd.f32 %v376, %v510
        %v519 = vadd.f32 %v377, %v510
        %520 = vst [vmem:[#allocation2] sm:$0xff] %v512
        %521 = vst [vmem:[#allocation2 + $0x8] sm:$0xff] %v513
        %522 = vst [vmem:[#allocation2 + $0x10] sm:$0xff] %v514
        %523 = vst [vmem:[#allocation2 + $0x18] sm:$0xff] %v515
        %524 = vst [vmem:[#allocation2 + $0x20] sm:$0xff] %v516
        %525 = vst [vmem:[#allocation2 + $0x28] sm:$0xff] %v517
        %526 = vst [vmem:[#allocation2 + $0x30] sm:$0xff] %v518
        %527 = vst [vmem:[#allocation2 + $0x38] sm:$0xff] %v519
      $region52: #{transformer_forward.5} parent=47 // pred_fallthru
        _
      %v528 = vld [vmem:[#allocation3] sm:$0xff]
      %v529 = vld [vmem:[#allocation3 + $0x8] sm:$0xff]
      %v530 = vld [vmem:[#allocation3 + $0x10] sm:$0xff]
      %v531 = vld [vmem:[#allocation3 + $0x18] sm:$0xff]
      %v532 = vld [vmem:[%s338] sm:$0xff]
      %v533 = vld [vmem:[%s338 + $0x8] sm:$0xff]
      %v534 = vld [vmem:[%s338 + $0x10] sm:$0xff]
      %v535 = vld [vmem:[%s338 + $0x18] sm:$0xff]
      %v536 = vld [vmem:[%s338 + $0x20] sm:$0xff]
      %v537 = vld [vmem:[%s338 + $0x28] sm:$0xff]
      %v538 = vld [vmem:[%s338 + $0x30] sm:$0xff]
      %v539 = vld [vmem:[%s338 + $0x38] sm:$0xff]
      %v540 = vld [vmem:[%s338 + $0x40] sm:$0xff]
      %v541 = vld [vmem:[%s338 + $0x48] sm:$0xff]
      %v542 = vld [vmem:[%s338 + $0x50] sm:$0xff]
      %v543 = vld [vmem:[%s338 + $0x58] sm:$0xff]
      %v544 = vld [vmem:[%s338 + $0x60] sm:$0xff]
      %v545 = vld [vmem:[%s338 + $0x68] sm:$0xff]
      %v546 = vld [vmem:[%s338 + $0x70] sm:$0xff]
      %v547 = vld [vmem:[%s338 + $0x78] sm:$0xff]
      %v548 = vld [vmem:[%s338 + $0x80] sm:$0xff]
      %v549 = vld [vmem:[%s338 + $0x88] sm:$0xff]
      %v550 = vld [vmem:[%s338 + $0x90] sm:$0xff]
      %v551 = vld [vmem:[%s338 + $0x98] sm:$0xff]
      %v552 = vld [vmem:[%s338 + $0xa0] sm:$0xff]
      %v553 = vld [vmem:[%s338 + $0xa8] sm:$0xff]
      %v554 = vld [vmem:[%s338 + $0xb0] sm:$0xff]
      %v555 = vld [vmem:[%s338 + $0xb8] sm:$0xff]
      %v556 = vld [vmem:[%s338 + $0xc0] sm:$0xff]
      %v557 = vld [vmem:[%s338 + $0xc8] sm:$0xff]
      %v558 = vld [vmem:[%s338 + $0xd0] sm:$0xff]
      %v559 = vld [vmem:[%s338 + $0xd8] sm:$0xff]
      %v560 = vld [vmem:[%s338 + $0xe0] sm:$0xff]
      %v561 = vld [vmem:[%s338 + $0xe8] sm:$0xff]
      %v562 = vld [vmem:[%s338 + $0xf0] sm:$0xff]
      %v563 = vld [vmem:[%s338 + $0xf8] sm:$0xff]
      %v564 = vld [vmem:[%s343] sm:$0xf]
      %v566 = vlaneseq
      %v567 = vshrl.u32 %v566, 7
      %v568 = vsub.s32 0, %v567
      %v569 = vrot.slane %v564, %v568
      %v570 = vlaneseq
      %v571 = vshrl.u32 %v570, 7
      %v572 = vsub.s32 1, %v571
      %v573 = vrot.slane %v564, %v572
      %v574 = vlaneseq
      %v575 = vshrl.u32 %v574, 7
      %v576 = vsub.s32 2, %v575
      %v577 = vrot.slane %v564, %v576
      %v578 = vlaneseq
      %v579 = vshrl.u32 %v578, 7
      %v580 = vsub.s32 3, %v579
      %v581 = vrot.slane %v564, %v580
      %v618 = vunpack.c.l.b16 %v532
      %v619 = vunpack.c.h.b16 %v532
      %v620 = vunpack.c.l.b16 %v533
      %v621 = vunpack.c.h.b16 %v533
      %v622 = vunpack.c.l.b16 %v534
      %v623 = vunpack.c.h.b16 %v534
      %v624 = vunpack.c.l.b16 %v535
      %v625 = vunpack.c.h.b16 %v535
      %v626 = vunpack.c.l.b16 %v536
      %v627 = vunpack.c.h.b16 %v536
      %v628 = vunpack.c.l.b16 %v537
      %v629 = vunpack.c.h.b16 %v537
      %v630 = vunpack.c.l.b16 %v538
      %v631 = vunpack.c.h.b16 %v538
      %v632 = vunpack.c.l.b16 %v539
      %v633 = vunpack.c.h.b16 %v539
      %v634 = vunpack.c.l.b16 %v540
      %v635 = vunpack.c.h.b16 %v540
      %v636 = vunpack.c.l.b16 %v541
      %v637 = vunpack.c.h.b16 %v541
      %v638 = vunpack.c.l.b16 %v542
      %v639 = vunpack.c.h.b16 %v542
      %v640 = vunpack.c.l.b16 %v543
      %v641 = vunpack.c.h.b16 %v543
      %v642 = vunpack.c.l.b16 %v544
      %v643 = vunpack.c.h.b16 %v544
      %v644 = vunpack.c.l.b16 %v545
      %v645 = vunpack.c.h.b16 %v545
      %v646 = vunpack.c.l.b16 %v546
      %v647 = vunpack.c.h.b16 %v546
      %v648 = vunpack.c.l.b16 %v547
      %v649 = vunpack.c.h.b16 %v547
      %v650 = vunpack.c.l.b16 %v548
      %v651 = vunpack.c.h.b16 %v548
      %v652 = vunpack.c.l.b16 %v549
      %v653 = vunpack.c.h.b16 %v549
      %v654 = vunpack.c.l.b16 %v550
      %v655 = vunpack.c.h.b16 %v550
      %v656 = vunpack.c.l.b16 %v551
      %v657 = vunpack.c.h.b16 %v551
      %v658 = vunpack.c.l.b16 %v552
      %v659 = vunpack.c.h.b16 %v552
      %v660 = vunpack.c.l.b16 %v553
      %v661 = vunpack.c.h.b16 %v553
      %v662 = vunpack.c.l.b16 %v554
      %v663 = vunpack.c.h.b16 %v554
      %v664 = vunpack.c.l.b16 %v555
      %v665 = vunpack.c.h.b16 %v555
      %v666 = vunpack.c.l.b16 %v556
      %v667 = vunpack.c.h.b16 %v556
      %v668 = vunpack.c.l.b16 %v557
      %v669 = vunpack.c.h.b16 %v557
      %v670 = vunpack.c.l.b16 %v558
      %v671 = vunpack.c.h.b16 %v558
      %v672 = vunpack.c.l.b16 %v559
      %v673 = vunpack.c.h.b16 %v559
      %v674 = vunpack.c.l.b16 %v560
      %v675 = vunpack.c.h.b16 %v560
      %v676 = vunpack.c.l.b16 %v561
      %v677 = vunpack.c.h.b16 %v561
      %v678 = vunpack.c.l.b16 %v562
      %v679 = vunpack.c.h.b16 %v562
      %v680 = vunpack.c.l.b16 %v563
      %v681 = vunpack.c.h.b16 %v563
      %v682 = vpack.c.b16 %v622, %v618
      %v683 = vpack.c.b16 %v623, %v619
      %v684 = vpack.c.b16 %v624, %v620
      %v685 = vpack.c.b16 %v625, %v621
      %v686 = vpack.c.b16 %v630, %v626
      %v687 = vpack.c.b16 %v631, %v627
      %v688 = vpack.c.b16 %v632, %v628
      %v689 = vpack.c.b16 %v633, %v629
      %v690 = vpack.c.b16 %v638, %v634
      %v691 = vpack.c.b16 %v639, %v635
      %v692 = vpack.c.b16 %v640, %v636
      %v693 = vpack.c.b16 %v641, %v637
      %v694 = vpack.c.b16 %v646, %v642
      %v695 = vpack.c.b16 %v647, %v643
      %v696 = vpack.c.b16 %v648, %v644
      %v697 = vpack.c.b16 %v649, %v645
      %v698 = vpack.c.b16 %v654, %v650
      %v699 = vpack.c.b16 %v655, %v651
      %v700 = vpack.c.b16 %v656, %v652
      %v701 = vpack.c.b16 %v657, %v653
      %v702 = vpack.c.b16 %v662, %v658
      %v703 = vpack.c.b16 %v663, %v659
      %v704 = vpack.c.b16 %v664, %v660
      %v705 = vpack.c.b16 %v665, %v661
      %v706 = vpack.c.b16 %v670, %v666
      %v707 = vpack.c.b16 %v671, %v667
      %v708 = vpack.c.b16 %v672, %v668
      %v709 = vpack.c.b16 %v673, %v669
      %v710 = vpack.c.b16 %v678, %v674
      %v711 = vpack.c.b16 %v679, %v675
      %v712 = vpack.c.b16 %v680, %v676
      %v713 = vpack.c.b16 %v681, %v677
      %746 = vmatprep.subr.bf16.mxu0 %v683
      %747 = vmatpush1.bf16.msra.mxu0 %v682
      %748 = vmatprep.subr.bf16.mxu0 %v687
      %749 = vmatpush1.bf16.msra.mxu0 %v686
      %750 = vmatprep.subr.bf16.mxu0 %v691
      %751 = vmatpush1.bf16.msra.mxu0 %v690
      %752 = vmatprep.subr.bf16.mxu0 %v695
      %753 = vmatpush1.bf16.msra.mxu0 %v694
      %754 = vmatprep.subr.bf16.mxu0 %v699
      %755 = vmatpush1.bf16.msra.mxu0 %v698
      %756 = vmatprep.subr.bf16.mxu0 %v703
      %757 = vmatpush1.bf16.msra.mxu0 %v702
      %758 = vmatprep.subr.bf16.mxu0 %v707
      %759 = vmatpush1.bf16.msra.mxu0 %v706
      %760 = vmatprep.subr.bf16.mxu0 %v711
      %761 = vmatpush1.bf16.msra.mxu0 %v710
      %762 = vmatprep.subr.bf16.mxu0 0
      %763 = vmatpush1.bf16.msra.mxu0 0
      %764 = vmatprep.subr.bf16.mxu0 0
      %765 = vmatpush1.bf16.msra.mxu0 0
      %766 = vmatprep.subr.bf16.mxu0 0
      %767 = vmatpush1.bf16.msra.mxu0 0
      %768 = vmatprep.subr.bf16.mxu0 0
      %769 = vmatpush1.bf16.msra.mxu0 0
      %770 = vmatprep.subr.bf16.mxu0 0
      %771 = vmatpush1.bf16.msra.mxu0 0
      %772 = vmatprep.subr.bf16.mxu0 0
      %773 = vmatpush1.bf16.msra.mxu0 0
      %774 = vmatprep.subr.bf16.mxu0 0
      %775 = vmatpush1.bf16.msra.mxu0 0
      %776 = vmatprep.subr.bf16.mxu0 0
      %777 = vmatpush1.bf16.msra.mxu0 0
      %778 = vmatprep.mubr.bf16.mxu0 0
      %779 = vmatmul.mubr.bf16.gmra.mrb[0].mxu0 %v528
      %v780 = vpop.f32.mrb[0].mxu0
      %v781 = vadd.f32 %v569, %v780
      %v782 = vpop.f32.mrb[0].mxu0
      %v783 = vadd.f32 %v573, %v782
      %v784 = vpop.f32.mrb[0].mxu0
      %v785 = vadd.f32 %v569, %v784
      %v786 = vpop.f32.mrb[0].mxu0
      %v787 = vadd.f32 %v573, %v786
      %788 = vmatprep.mubr.bf16.mxu0 0
      %789 = vmatmul.mubr.bf16.gmra.mrb[0].mxu0 %v529
      %v790 = vpop.f32.mrb[0].mxu0
      %v791 = vadd.f32 %v569, %v790
      %v792 = vpop.f32.mrb[0].mxu0
      %v793 = vadd.f32 %v573, %v792
      %v794 = vpop.f32.mrb[0].mxu0
      %v795 = vadd.f32 %v569, %v794
      %v796 = vpop.f32.mrb[0].mxu0
      %v797 = vadd.f32 %v573, %v796
      %798 = vmatprep.mubr.bf16.mxu0 0
      %799 = vmatmul.mubr.bf16.gmra.mrb[0].mxu0 %v530
      %v800 = vpop.f32.mrb[0].mxu0
      %v801 = vadd.f32 %v569, %v800
      %v802 = vpop.f32.mrb[0].mxu0
      %v803 = vadd.f32 %v573, %v802
      %v804 = vpop.f32.mrb[0].mxu0
      %v805 = vadd.f32 %v569, %v804
      %v806 = vpop.f32.mrb[0].mxu0
      %v807 = vadd.f32 %v573, %v806
      %808 = vmatprep.mubr.bf16.mxu0 0
      %809 = vmatmul.mubr.bf16.gmra.mrb[0].mxu0 %v531
      %v810 = vpop.f32.mrb[0].mxu0
      %v811 = vadd.f32 %v569, %v810
      %v812 = vpop.f32.mrb[0].mxu0
      %v813 = vadd.f32 %v573, %v812
      %v814 = vpop.f32.mrb[0].mxu0
      %v815 = vadd.f32 %v569, %v814
      %v816 = vpop.f32.mrb[0].mxu0
      %v817 = vadd.f32 %v573, %v816
      %818 = vdwg.mxu0
      %819 = vmatprep.subr.bf16.mxu0 %v685
      %820 = vmatpush1.bf16.msra.mxu0 %v684
      %821 = vmatprep.subr.bf16.mxu0 %v689
      %822 = vmatpush1.bf16.msra.mxu0 %v688
      %823 = vmatprep.subr.bf16.mxu0 %v693
      %824 = vmatpush1.bf16.msra.mxu0 %v692
      %825 = vmatprep.subr.bf16.mxu0 %v697
      %826 = vmatpush1.bf16.msra.mxu0 %v696
      %827 = vmatprep.subr.bf16.mxu0 %v701
      %828 = vmatpush1.bf16.msra.mxu0 %v700
      %829 = vmatprep.subr.bf16.mxu0 %v705
      %830 = vmatpush1.bf16.msra.mxu0 %v704
      %831 = vmatprep.subr.bf16.mxu0 %v709
      %832 = vmatpush1.bf16.msra.mxu0 %v708
      %833 = vmatprep.subr.bf16.mxu0 %v713
      %834 = vmatpush1.bf16.msra.mxu0 %v712
      %835 = vmatprep.subr.bf16.mxu0 0
      %836 = vmatpush1.bf16.msra.mxu0 0
      %837 = vmatprep.subr.bf16.mxu0 0
      %838 = vmatpush1.bf16.msra.mxu0 0
      %839 = vmatprep.subr.bf16.mxu0 0
      %840 = vmatpush1.bf16.msra.mxu0 0
      %841 = vmatprep.subr.bf16.mxu0 0
      %842 = vmatpush1.bf16.msra.mxu0 0
      %843 = vmatprep.subr.bf16.mxu0 0
      %844 = vmatpush1.bf16.msra.mxu0 0
      %845 = vmatprep.subr.bf16.mxu0 0
      %846 = vmatpush1.bf16.msra.mxu0 0
      %847 = vmatprep.subr.bf16.mxu0 0
      %848 = vmatpush1.bf16.msra.mxu0 0
      %849 = vmatprep.subr.bf16.mxu0 0
      %850 = vmatpush1.bf16.msra.mxu0 0
      %851 = vmatprep.mubr.bf16.mxu0 0
      %852 = vmatmul.mubr.bf16.gmra.mrb[0].mxu0 %v528
      %v853 = vpop.f32.mrb[0].mxu0
      %v854 = vadd.f32 %v577, %v853
      %v855 = vpop.f32.mrb[0].mxu0
      %v856 = vadd.f32 %v581, %v855
      %v857 = vpop.f32.mrb[0].mxu0
      %v858 = vadd.f32 %v577, %v857
      %v859 = vpop.f32.mrb[0].mxu0
      %v860 = vadd.f32 %v581, %v859
      %861 = vmatprep.mubr.bf16.mxu0 0
      %862 = vmatmul.mubr.bf16.gmra.mrb[0].mxu0 %v529
      %v863 = vpop.f32.mrb[0].mxu0
      %v864 = vadd.f32 %v577, %v863
      %v865 = vpop.f32.mrb[0].mxu0
      %v866 = vadd.f32 %v581, %v865
      %v867 = vpop.f32.mrb[0].mxu0
      %v868 = vadd.f32 %v577, %v867
      %v869 = vpop.f32.mrb[0].mxu0
      %v870 = vadd.f32 %v581, %v869
      %871 = vmatprep.mubr.bf16.mxu0 0
      %872 = vmatmul.mubr.bf16.gmra.mrb[0].mxu0 %v530
      %v873 = vpop.f32.mrb[0].mxu0
      %v874 = vadd.f32 %v577, %v873
      %v875 = vpop.f32.mrb[0].mxu0
      %v876 = vadd.f32 %v581, %v875
      %v877 = vpop.f32.mrb[0].mxu0
      %v878 = vadd.f32 %v577, %v877
      %v879 = vpop.f32.mrb[0].mxu0
      %v880 = vadd.f32 %v581, %v879
      %881 = vmatprep.mubr.bf16.mxu0 0
      %882 = vmatmul.mubr.bf16.gmra.mrb[0].mxu0 %v531
      %v883 = vpop.f32.mrb[0].mxu0
      %v884 = vadd.f32 %v577, %v883
      %v885 = vpop.f32.mrb[0].mxu0
      %v886 = vadd.f32 %v581, %v885
      %v887 = vpop.f32.mrb[0].mxu0
      %v888 = vadd.f32 %v577, %v887
      %v889 = vpop.f32.mrb[0].mxu0
      %v890 = vadd.f32 %v581, %v889
      %891 = vdwg.mxu0
      %v892 = vmul.f32 %v781, 1.702
      %v893 = vmul.f32 %v783, 1.702
      %v894 = vmul.f32 %v854, 1.702
      %v895 = vmul.f32 %v856, 1.702
      %v896 = vmul.f32 %v785, 1.702
      %v897 = vmul.f32 %v787, 1.702
      %v898 = vmul.f32 %v858, 1.702
      %v899 = vmul.f32 %v860, 1.702
      %v900 = vmul.f32 %v791, 1.702
      %v901 = vmul.f32 %v793, 1.702
      %v902 = vmul.f32 %v864, 1.702
      %v903 = vmul.f32 %v866, 1.702
      %v904 = vmul.f32 %v795, 1.702
      %v905 = vmul.f32 %v797, 1.702
      %v906 = vmul.f32 %v868, 1.702
      %v907 = vmul.f32 %v870, 1.702
      %v908 = vmul.f32 %v801, 1.702
      %v909 = vmul.f32 %v803, 1.702
      %v910 = vmul.f32 %v874, 1.702
      %v911 = vmul.f32 %v876, 1.702
      %v912 = vmul.f32 %v805, 1.702
      %v913 = vmul.f32 %v807, 1.702
      %v914 = vmul.f32 %v878, 1.702
      %v915 = vmul.f32 %v880, 1.702
      %v916 = vmul.f32 %v811, 1.702
      %v917 = vmul.f32 %v813, 1.702
      %v918 = vmul.f32 %v884, 1.702
      %v919 = vmul.f32 %v886, 1.702
      %v920 = vmul.f32 %v815, 1.702
      %v921 = vmul.f32 %v817, 1.702
      %v922 = vmul.f32 %v888, 1.702
      %v923 = vmul.f32 %v890, 1.702
      %v924 = vxor.u32 %v892, 2147483648
      %v925 = vxor.u32 %v893, 2147483648
      %v926 = vxor.u32 %v894, 2147483648
      %v927 = vxor.u32 %v895, 2147483648
      %v928 = vxor.u32 %v896, 2147483648
      %v929 = vxor.u32 %v897, 2147483648
      %v930 = vxor.u32 %v898, 2147483648
      %v931 = vxor.u32 %v899, 2147483648
      %v932 = vxor.u32 %v900, 2147483648
      %v933 = vxor.u32 %v901, 2147483648
      %v934 = vxor.u32 %v902, 2147483648
      %v935 = vxor.u32 %v903, 2147483648
      %v936 = vxor.u32 %v904, 2147483648
      %v937 = vxor.u32 %v905, 2147483648
      %v938 = vxor.u32 %v906, 2147483648
      %v939 = vxor.u32 %v907, 2147483648
      %v940 = vxor.u32 %v908, 2147483648
      %v941 = vxor.u32 %v909, 2147483648
      %v942 = vxor.u32 %v910, 2147483648
      %v943 = vxor.u32 %v911, 2147483648
      %v944 = vxor.u32 %v912, 2147483648
      %v945 = vxor.u32 %v913, 2147483648
      %v946 = vxor.u32 %v914, 2147483648
      %v947 = vxor.u32 %v915, 2147483648
      %v948 = vxor.u32 %v916, 2147483648
      %v949 = vxor.u32 %v917, 2147483648
      %v950 = vxor.u32 %v918, 2147483648
      %v951 = vxor.u32 %v919, 2147483648
      %v952 = vxor.u32 %v920, 2147483648
      %v953 = vxor.u32 %v921, 2147483648
      %v954 = vxor.u32 %v922, 2147483648
      %v955 = vxor.u32 %v923, 2147483648
      %v956 = vmul.f32 %v924, 1.442695
      %v957 = vpow.pop %v956
      %v958 = vmul.f32 %v925, 1.442695
      %v959 = vpow.pop %v958
      %v960 = vmul.f32 %v926, 1.442695
      %v961 = vpow.pop %v960
      %v962 = vmul.f32 %v927, 1.442695
      %v963 = vpow.pop %v962
      %v964 = vmul.f32 %v928, 1.442695
      %v965 = vpow.pop %v964
      %v966 = vmul.f32 %v929, 1.442695
      %v967 = vpow.pop %v966
      %v968 = vmul.f32 %v930, 1.442695
      %v969 = vpow.pop %v968
      %v970 = vmul.f32 %v931, 1.442695
      %v971 = vpow.pop %v970
      %v972 = vmul.f32 %v932, 1.442695
      %v973 = vpow.pop %v972
      %v974 = vmul.f32 %v933, 1.442695
      %v975 = vpow.pop %v974
      %v976 = vmul.f32 %v934, 1.442695
      %v977 = vpow.pop %v976
      %v978 = vmul.f32 %v935, 1.442695
      %v979 = vpow.pop %v978
      %v980 = vmul.f32 %v936, 1.442695
      %v981 = vpow.pop %v980
      %v982 = vmul.f32 %v937, 1.442695
      %v983 = vpow.pop %v982
      %v984 = vmul.f32 %v938, 1.442695
      %v985 = vpow.pop %v984
      %v986 = vmul.f32 %v939, 1.442695
      %v987 = vpow.pop %v986
      %v988 = vmul.f32 %v940, 1.442695
      %v989 = vpow.pop %v988
      %v990 = vmul.f32 %v941, 1.442695
      %v991 = vpow.pop %v990
      %v992 = vmul.f32 %v942, 1.442695
      %v993 = vpow.pop %v992
      %v994 = vmul.f32 %v943, 1.442695
      %v995 = vpow.pop %v994
      %v996 = vmul.f32 %v944, 1.442695
      %v997 = vpow.pop %v996
      %v998 = vmul.f32 %v945, 1.442695
      %v999 = vpow.pop %v998
      %v1000 = vmul.f32 %v946, 1.442695
      %v1001 = vpow.pop %v1000
      %v1002 = vmul.f32 %v947, 1.442695
      %v1003 = vpow.pop %v1002
      %v1004 = vmul.f32 %v948, 1.442695
      %v1005 = vpow.pop %v1004
      %v1006 = vmul.f32 %v949, 1.442695
      %v1007 = vpow.pop %v1006
      %v1008 = vmul.f32 %v950, 1.442695
      %v1009 = vpow.pop %v1008
      %v1010 = vmul.f32 %v951, 1.442695
      %v1011 = vpow.pop %v1010
      %v1012 = vmul.f32 %v952, 1.442695
      %v1013 = vpow.pop %v1012
      %v1014 = vmul.f32 %v953, 1.442695
      %v1015 = vpow.pop %v1014
      %v1016 = vmul.f32 %v954, 1.442695
      %v1017 = vpow.pop %v1016
      %v1018 = vmul.f32 %v955, 1.442695
      %v1019 = vpow.pop %v1018
      %v1020 = vadd.f32 %v957, 1.0
      %v1021 = vadd.f32 %v959, 1.0
      %v1022 = vadd.f32 %v961, 1.0
      %v1023 = vadd.f32 %v963, 1.0
      %v1024 = vadd.f32 %v965, 1.0
      %v1025 = vadd.f32 %v967, 1.0
      %v1026 = vadd.f32 %v969, 1.0
      %v1027 = vadd.f32 %v971, 1.0
      %v1028 = vadd.f32 %v973, 1.0
      %v1029 = vadd.f32 %v975, 1.0
      %v1030 = vadd.f32 %v977, 1.0
      %v1031 = vadd.f32 %v979, 1.0
      %v1032 = vadd.f32 %v981, 1.0
      %v1033 = vadd.f32 %v983, 1.0
      %v1034 = vadd.f32 %v985, 1.0
      %v1035 = vadd.f32 %v987, 1.0
      %v1036 = vadd.f32 %v989, 1.0
      %v1037 = vadd.f32 %v991, 1.0
      %v1038 = vadd.f32 %v993, 1.0
      %v1039 = vadd.f32 %v995, 1.0
      %v1040 = vadd.f32 %v997, 1.0
      %v1041 = vadd.f32 %v999, 1.0
      %v1042 = vadd.f32 %v1001, 1.0
      %v1043 = vadd.f32 %v1003, 1.0
      %v1044 = vadd.f32 %v1005, 1.0
      %v1045 = vadd.f32 %v1007, 1.0
      %v1046 = vadd.f32 %v1009, 1.0
      %v1047 = vadd.f32 %v1011, 1.0
      %v1048 = vadd.f32 %v1013, 1.0
      %v1049 = vadd.f32 %v1015, 1.0
      %v1050 = vadd.f32 %v1017, 1.0
      %v1051 = vadd.f32 %v1019, 1.0
      %v1052 = vrcp.pop %v1020
      %v1053 = vmul.f32 1.0, %v1052
      %v1054 = vrcp.pop %v1021
      %v1055 = vmul.f32 1.0, %v1054
      %v1056 = vrcp.pop %v1022
      %v1057 = vmul.f32 1.0, %v1056
      %v1058 = vrcp.pop %v1023
      %v1059 = vmul.f32 1.0, %v1058
      %v1060 = vrcp.pop %v1024
      %v1061 = vmul.f32 1.0, %v1060
      %v1062 = vrcp.pop %v1025
      %v1063 = vmul.f32 1.0, %v1062
      %v1064 = vrcp.pop %v1026
      %v1065 = vmul.f32 1.0, %v1064
      %v1066 = vrcp.pop %v1027
      %v1067 = vmul.f32 1.0, %v1066
      %v1068 = vrcp.pop %v1028
      %v1069 = vmul.f32 1.0, %v1068
      %v1070 = vrcp.pop %v1029
      %v1071 = vmul.f32 1.0, %v1070
      %v1072 = vrcp.pop %v1030
      %v1073 = vmul.f32 1.0, %v1072
      %v1074 = vrcp.pop %v1031
      %v1075 = vmul.f32 1.0, %v1074
      %v1076 = vrcp.pop %v1032
      %v1077 = vmul.f32 1.0, %v1076
      %v1078 = vrcp.pop %v1033
      %v1079 = vmul.f32 1.0, %v1078
      %v1080 = vrcp.pop %v1034
      %v1081 = vmul.f32 1.0, %v1080
      %v1082 = vrcp.pop %v1035
      %v1083 = vmul.f32 1.0, %v1082
      %v1084 = vrcp.pop %v1036
      %v1085 = vmul.f32 1.0, %v1084
      %v1086 = vrcp.pop %v1037
      %v1087 = vmul.f32 1.0, %v1086
      %v1088 = vrcp.pop %v1038
      %v1089 = vmul.f32 1.0, %v1088
      %v1090 = vrcp.pop %v1039
      %v1091 = vmul.f32 1.0, %v1090
      %v1092 = vrcp.pop %v1040
      %v1093 = vmul.f32 1.0, %v1092
      %v1094 = vrcp.pop %v1041
      %v1095 = vmul.f32 1.0, %v1094
      %v1096 = vrcp.pop %v1042
      %v1097 = vmul.f32 1.0, %v1096
      %v1098 = vrcp.pop %v1043
      %v1099 = vmul.f32 1.0, %v1098
      %v1100 = vrcp.pop %v1044
      %v1101 = vmul.f32 1.0, %v1100
      %v1102 = vrcp.pop %v1045
      %v1103 = vmul.f32 1.0, %v1102
      %v1104 = vrcp.pop %v1046
      %v1105 = vmul.f32 1.0, %v1104
      %v1106 = vrcp.pop %v1047
      %v1107 = vmul.f32 1.0, %v1106
      %v1108 = vrcp.pop %v1048
      %v1109 = vmul.f32 1.0, %v1108
      %v1110 = vrcp.pop %v1049
      %v1111 = vmul.f32 1.0, %v1110
      %v1112 = vrcp.pop %v1050
      %v1113 = vmul.f32 1.0, %v1112
      %v1114 = vrcp.pop %v1051
      %v1115 = vmul.f32 1.0, %v1114
      %v1116 = vmul.f32 %v781, %v1053
      %v1117 = vmul.f32 %v783, %v1055
      %v1118 = vmul.f32 %v854, %v1057
      %v1119 = vmul.f32 %v856, %v1059
      %v1120 = vmul.f32 %v785, %v1061
      %v1121 = vmul.f32 %v787, %v1063
      %v1122 = vmul.f32 %v858, %v1065
      %v1123 = vmul.f32 %v860, %v1067
      %v1124 = vmul.f32 %v791, %v1069
      %v1125 = vmul.f32 %v793, %v1071
      %v1126 = vmul.f32 %v864, %v1073
      %v1127 = vmul.f32 %v866, %v1075
      %v1128 = vmul.f32 %v795, %v1077
      %v1129 = vmul.f32 %v797, %v1079
      %v1130 = vmul.f32 %v868, %v1081
      %v1131 = vmul.f32 %v870, %v1083
      %v1132 = vmul.f32 %v801, %v1085
      %v1133 = vmul.f32 %v803, %v1087
      %v1134 = vmul.f32 %v874, %v1089
      %v1135 = vmul.f32 %v876, %v1091
      %v1136 = vmul.f32 %v805, %v1093
      %v1137 = vmul.f32 %v807, %v1095
      %v1138 = vmul.f32 %v878, %v1097
      %v1139 = vmul.f32 %v880, %v1099
      %v1140 = vmul.f32 %v811, %v1101
      %v1141 = vmul.f32 %v813, %v1103
      %v1142 = vmul.f32 %v884, %v1105
      %v1143 = vmul.f32 %v886, %v1107
      %v1144 = vmul.f32 %v815, %v1109
      %v1145 = vmul.f32 %v817, %v1111
      %v1146 = vmul.f32 %v888, %v1113
      %v1147 = vmul.f32 %v890, %v1115
      %v1148 = vld [vmem:[#allocation2] sm:$0xff]
      %v1149 = vld [vmem:[#allocation2 + $0x8] sm:$0xff]
      %v1150 = vld [vmem:[#allocation2 + $0x10] sm:$0xff]
      %v1151 = vld [vmem:[#allocation2 + $0x18] sm:$0xff]
      %v1152 = vld [vmem:[#allocation2 + $0x20] sm:$0xff]
      %v1153 = vld [vmem:[#allocation2 + $0x28] sm:$0xff]
      %v1154 = vld [vmem:[#allocation2 + $0x30] sm:$0xff]
      %v1155 = vld [vmem:[#allocation2 + $0x38] sm:$0xff]
      %v1156 = vpack.c.bf16 %v1120, %v1116
      %v1157 = vpack.c.bf16 %v1121, %v1117
      %v1158 = vpack.c.bf16 %v1122, %v1118
      %v1159 = vpack.c.bf16 %v1123, %v1119
      %v1160 = vpack.c.bf16 %v1128, %v1124
      %v1161 = vpack.c.bf16 %v1129, %v1125
      %v1162 = vpack.c.bf16 %v1130, %v1126
      %v1163 = vpack.c.bf16 %v1131, %v1127
      %v1164 = vpack.c.bf16 %v1136, %v1132
      %v1165 = vpack.c.bf16 %v1137, %v1133
      %v1166 = vpack.c.bf16 %v1138, %v1134
      %v1167 = vpack.c.bf16 %v1139, %v1135
      %v1168 = vpack.c.bf16 %v1144, %v1140
      %v1169 = vpack.c.bf16 %v1145, %v1141
      %v1170 = vpack.c.bf16 %v1146, %v1142
      %v1171 = vpack.c.bf16 %v1147, %v1143
      %v1172 = vld [vmem:[%s349] sm:$0xf]
      %v1173 = vld [vmem:[%s349 + $0x4] sm:$0xf]
      %v1174 = vld [vmem:[%s349 + $0x8] sm:$0xf]
      %v1175 = vld [vmem:[%s349 + $0xc] sm:$0xf]
      %v1176 = vld [vmem:[%s349 + $0x10] sm:$0xf]
      %v1177 = vld [vmem:[%s349 + $0x14] sm:$0xf]
      %v1178 = vld [vmem:[%s349 + $0x18] sm:$0xf]
      %v1179 = vld [vmem:[%s349 + $0x1c] sm:$0xf]
      %v1180 = vld [vmem:[%s349 + $0x20] sm:$0xf]
      %v1181 = vld [vmem:[%s349 + $0x24] sm:$0xf]
      %v1182 = vld [vmem:[%s349 + $0x28] sm:$0xf]
      %v1183 = vld [vmem:[%s349 + $0x2c] sm:$0xf]
      %v1184 = vld [vmem:[%s349 + $0x30] sm:$0xf]
      %v1185 = vld [vmem:[%s349 + $0x34] sm:$0xf]
      %v1186 = vld [vmem:[%s349 + $0x38] sm:$0xf]
      %v1187 = vld [vmem:[%s349 + $0x3c] sm:$0xf]
      %v1188 = vld [vmem:[%s349 + $0x40] sm:$0xf]
      %v1189 = vld [vmem:[%s349 + $0x44] sm:$0xf]
      %v1190 = vld [vmem:[%s349 + $0x48] sm:$0xf]
      %v1191 = vld [vmem:[%s349 + $0x4c] sm:$0xf]
      %v1192 = vld [vmem:[%s349 + $0x50] sm:$0xf]
      %v1193 = vld [vmem:[%s349 + $0x54] sm:$0xf]
      %v1194 = vld [vmem:[%s349 + $0x58] sm:$0xf]
      %v1195 = vld [vmem:[%s349 + $0x5c] sm:$0xf]
      %v1196 = vld [vmem:[%s349 + $0x60] sm:$0xf]
      %v1197 = vld [vmem:[%s349 + $0x64] sm:$0xf]
      %v1198 = vld [vmem:[%s349 + $0x68] sm:$0xf]
      %v1199 = vld [vmem:[%s349 + $0x6c] sm:$0xf]
      %v1200 = vld [vmem:[%s349 + $0x70] sm:$0xf]
      %v1201 = vld [vmem:[%s349 + $0x74] sm:$0xf]
      %v1202 = vld [vmem:[%s349 + $0x78] sm:$0xf]
      %v1203 = vld [vmem:[%s349 + $0x7c] sm:$0xf]
      %v1204 = vld [vmem:[%s349 + $0x80] sm:$0xf]
      %v1205 = vld [vmem:[%s349 + $0x84] sm:$0xf]
      %v1206 = vld [vmem:[%s349 + $0x88] sm:$0xf]
      %v1207 = vld [vmem:[%s349 + $0x8c] sm:$0xf]
      %v1208 = vld [vmem:[%s349 + $0x90] sm:$0xf]
      %v1209 = vld [vmem:[%s349 + $0x94] sm:$0xf]
      %v1210 = vld [vmem:[%s349 + $0x98] sm:$0xf]
      %v1211 = vld [vmem:[%s349 + $0x9c] sm:$0xf]
      %v1212 = vld [vmem:[%s349 + $0xa0] sm:$0xf]
      %v1213 = vld [vmem:[%s349 + $0xa4] sm:$0xf]
      %v1214 = vld [vmem:[%s349 + $0xa8] sm:$0xf]
      %v1215 = vld [vmem:[%s349 + $0xac] sm:$0xf]
      %v1216 = vld [vmem:[%s349 + $0xb0] sm:$0xf]
      %v1217 = vld [vmem:[%s349 + $0xb4] sm:$0xf]
      %v1218 = vld [vmem:[%s349 + $0xb8] sm:$0xf]
      %v1219 = vld [vmem:[%s349 + $0xbc] sm:$0xf]
      %v1220 = vld [vmem:[%s349 + $0xc0] sm:$0xf]
      %v1221 = vld [vmem:[%s349 + $0xc4] sm:$0xf]
      %v1222 = vld [vmem:[%s349 + $0xc8] sm:$0xf]
      %v1223 = vld [vmem:[%s349 + $0xcc] sm:$0xf]
      %v1224 = vld [vmem:[%s349 + $0xd0] sm:$0xf]
      %v1225 = vld [vmem:[%s349 + $0xd4] sm:$0xf]
      %v1226 = vld [vmem:[%s349 + $0xd8] sm:$0xf]
      %v1227 = vld [vmem:[%s349 + $0xdc] sm:$0xf]
      %v1228 = vld [vmem:[%s349 + $0xe0] sm:$0xf]
      %v1229 = vld [vmem:[%s349 + $0xe4] sm:$0xf]
      %v1230 = vld [vmem:[%s349 + $0xe8] sm:$0xf]
      %v1231 = vld [vmem:[%s349 + $0xec] sm:$0xf]
      %v1232 = vld [vmem:[%s349 + $0xf0] sm:$0xf]
      %v1233 = vld [vmem:[%s349 + $0xf4] sm:$0xf]
      %v1234 = vld [vmem:[%s349 + $0xf8] sm:$0xf]
      %v1235 = vld [vmem:[%s349 + $0xfc] sm:$0xf]
      %v1300 = vunpack.c.l.b16 %v1172
      %v1301 = vunpack.c.l.b16 %v1173
      %v1302 = vunpack.c.l.b16 %v1174
      %v1303 = vunpack.c.l.b16 %v1175
      %v1304 = vunpack.c.l.b16 %v1176
      %v1305 = vunpack.c.l.b16 %v1177
      %v1306 = vunpack.c.l.b16 %v1178
      %v1307 = vunpack.c.l.b16 %v1179
      %v1308 = vunpack.c.l.b16 %v1180
      %v1309 = vunpack.c.l.b16 %v1181
      %v1310 = vunpack.c.l.b16 %v1182
      %v1311 = vunpack.c.l.b16 %v1183
      %v1312 = vunpack.c.l.b16 %v1184
      %v1313 = vunpack.c.l.b16 %v1185
      %v1314 = vunpack.c.l.b16 %v1186
      %v1315 = vunpack.c.l.b16 %v1187
      %v1316 = vunpack.c.l.b16 %v1188
      %v1317 = vunpack.c.l.b16 %v1189
      %v1318 = vunpack.c.l.b16 %v1190
      %v1319 = vunpack.c.l.b16 %v1191
      %v1320 = vunpack.c.l.b16 %v1192
      %v1321 = vunpack.c.l.b16 %v1193
      %v1322 = vunpack.c.l.b16 %v1194
      %v1323 = vunpack.c.l.b16 %v1195
      %v1324 = vunpack.c.l.b16 %v1196
      %v1325 = vunpack.c.l.b16 %v1197
      %v1326 = vunpack.c.l.b16 %v1198
      %v1327 = vunpack.c.l.b16 %v1199
      %v1328 = vunpack.c.l.b16 %v1200
      %v1329 = vunpack.c.l.b16 %v1201
      %v1330 = vunpack.c.l.b16 %v1202
      %v1331 = vunpack.c.l.b16 %v1203
      %v1332 = vunpack.c.l.b16 %v1204
      %v1333 = vunpack.c.l.b16 %v1205
      %v1334 = vunpack.c.l.b16 %v1206
      %v1335 = vunpack.c.l.b16 %v1207
      %v1336 = vunpack.c.l.b16 %v1208
      %v1337 = vunpack.c.l.b16 %v1209
      %v1338 = vunpack.c.l.b16 %v1210
      %v1339 = vunpack.c.l.b16 %v1211
      %v1340 = vunpack.c.l.b16 %v1212
      %v1341 = vunpack.c.l.b16 %v1213
      %v1342 = vunpack.c.l.b16 %v1214
      %v1343 = vunpack.c.l.b16 %v1215
      %v1344 = vunpack.c.l.b16 %v1216
      %v1345 = vunpack.c.l.b16 %v1217
      %v1346 = vunpack.c.l.b16 %v1218
      %v1347 = vunpack.c.l.b16 %v1219
      %v1348 = vunpack.c.l.b16 %v1220
      %v1349 = vunpack.c.l.b16 %v1221
      %v1350 = vunpack.c.l.b16 %v1222
      %v1351 = vunpack.c.l.b16 %v1223
      %v1352 = vunpack.c.l.b16 %v1224
      %v1353 = vunpack.c.l.b16 %v1225
      %v1354 = vunpack.c.l.b16 %v1226
      %v1355 = vunpack.c.l.b16 %v1227
      %v1356 = vunpack.c.l.b16 %v1228
      %v1357 = vunpack.c.l.b16 %v1229
      %v1358 = vunpack.c.l.b16 %v1230
      %v1359 = vunpack.c.l.b16 %v1231
      %v1360 = vunpack.c.l.b16 %v1232
      %v1361 = vunpack.c.l.b16 %v1233
      %v1362 = vunpack.c.l.b16 %v1234
      %v1363 = vunpack.c.l.b16 %v1235
      %v1364 = vpack.c.b16 %v1301, %v1300
      %v1365 = vpack.c.b16 %v1303, %v1302
      %v1366 = vpack.c.b16 %v1305, %v1304
      %v1367 = vpack.c.b16 %v1307, %v1306
      %v1368 = vpack.c.b16 %v1309, %v1308
      %v1369 = vpack.c.b16 %v1311, %v1310
      %v1370 = vpack.c.b16 %v1313, %v1312
      %v1371 = vpack.c.b16 %v1315, %v1314
      %v1372 = vpack.c.b16 %v1317, %v1316
      %v1373 = vpack.c.b16 %v1319, %v1318
      %v1374 = vpack.c.b16 %v1321, %v1320
      %v1375 = vpack.c.b16 %v1323, %v1322
      %v1376 = vpack.c.b16 %v1325, %v1324
      %v1377 = vpack.c.b16 %v1327, %v1326
      %v1378 = vpack.c.b16 %v1329, %v1328
      %v1379 = vpack.c.b16 %v1331, %v1330
      %v1380 = vpack.c.b16 %v1333, %v1332
      %v1381 = vpack.c.b16 %v1335, %v1334
      %v1382 = vpack.c.b16 %v1337, %v1336
      %v1383 = vpack.c.b16 %v1339, %v1338
      %v1384 = vpack.c.b16 %v1341, %v1340
      %v1385 = vpack.c.b16 %v1343, %v1342
      %v1386 = vpack.c.b16 %v1345, %v1344
      %v1387 = vpack.c.b16 %v1347, %v1346
      %v1388 = vpack.c.b16 %v1349, %v1348
      %v1389 = vpack.c.b16 %v1351, %v1350
      %v1390 = vpack.c.b16 %v1353, %v1352
      %v1391 = vpack.c.b16 %v1355, %v1354
      %v1392 = vpack.c.b16 %v1357, %v1356
      %v1393 = vpack.c.b16 %v1359, %v1358
      %v1394 = vpack.c.b16 %v1361, %v1360
      %v1395 = vpack.c.b16 %v1363, %v1362
      %1428 = vmatprep.subr.bf16.mxu0 0
      %1429 = vmatpush1.bf16.msra.mxu0 %v1364
      %1430 = vmatprep.subr.bf16.mxu0 0
      %1431 = vmatpush1.bf16.msra.mxu0 %v1365
      %1432 = vmatprep.subr.bf16.mxu0 0
      %1433 = vmatpush1.bf16.msra.mxu0 %v1366
      %1434 = vmatprep.subr.bf16.mxu0 0
      %1435 = vmatpush1.bf16.msra.mxu0 %v1367
      %1436 = vmatprep.subr.bf16.mxu0 0
      %1437 = vmatpush1.bf16.msra.mxu0 %v1368
      %1438 = vmatprep.subr.bf16.mxu0 0
      %1439 = vmatpush1.bf16.msra.mxu0 %v1369
      %1440 = vmatprep.subr.bf16.mxu0 0
      %1441 = vmatpush1.bf16.msra.mxu0 %v1370
      %1442 = vmatprep.subr.bf16.mxu0 0
      %1443 = vmatpush1.bf16.msra.mxu0 %v1371
      %1444 = vmatprep.subr.bf16.mxu0 0
      %1445 = vmatpush1.bf16.msra.mxu0 %v1372
      %1446 = vmatprep.subr.bf16.mxu0 0
      %1447 = vmatpush1.bf16.msra.mxu0 %v1373
      %1448 = vmatprep.subr.bf16.mxu0 0
      %1449 = vmatpush1.bf16.msra.mxu0 %v1374
      %1450 = vmatprep.subr.bf16.mxu0 0
      %1451 = vmatpush1.bf16.msra.mxu0 %v1375
      %1452 = vmatprep.subr.bf16.mxu0 0
      %1453 = vmatpush1.bf16.msra.mxu0 %v1376
      %1454 = vmatprep.subr.bf16.mxu0 0
      %1455 = vmatpush1.bf16.msra.mxu0 %v1377
      %1456 = vmatprep.subr.bf16.mxu0 0
      %1457 = vmatpush1.bf16.msra.mxu0 %v1378
      %1458 = vmatprep.subr.bf16.mxu0 0
      %1459 = vmatpush1.bf16.msra.mxu0 %v1379
      %1460 = vmatprep.mubr.bf16.mxu0 %v1157
      %1461 = vmatmul.mubr.bf16.gmra.mrb[0].mxu0 %v1156
      %v1462 = vpop.f32.mrb[0].mxu0
      %v1463 = vadd.f32 0.0, %v1462
      %v1464 = vpop.f32.mrb[0].mxu0
      %v1465 = vpop.f32.mrb[0].mxu0
      %v1466 = vadd.f32 0.0, %v1465
      %v1467 = vpop.f32.mrb[0].mxu0
      %1468 = vmatprep.mubr.bf16.mxu0 %v1161
      %1469 = vmatmul.mubr.bf16.gmra.mrb[0].mxu0 %v1160
      %v1470 = vpop.f32.mrb[0].mxu0
      %v1471 = vadd.f32 0.0, %v1470
      %v1472 = vpop.f32.mrb[0].mxu0
      %v1473 = vpop.f32.mrb[0].mxu0
      %v1474 = vadd.f32 0.0, %v1473
      %v1475 = vpop.f32.mrb[0].mxu0
      %1476 = vmatprep.mubr.bf16.mxu0 %v1165
      %1477 = vmatmul.mubr.bf16.gmra.mrb[0].mxu0 %v1164
      %v1478 = vpop.f32.mrb[0].mxu0
      %v1479 = vadd.f32 0.0, %v1478
      %v1480 = vpop.f32.mrb[0].mxu0
      %v1481 = vpop.f32.mrb[0].mxu0
      %v1482 = vadd.f32 0.0, %v1481
      %v1483 = vpop.f32.mrb[0].mxu0
      %1484 = vmatprep.mubr.bf16.mxu0 %v1169
      %1485 = vmatmul.mubr.bf16.gmra.mrb[0].mxu0 %v1168
      %v1486 = vpop.f32.mrb[0].mxu0
      %v1487 = vadd.f32 0.0, %v1486
      %v1488 = vpop.f32.mrb[0].mxu0
      %v1489 = vpop.f32.mrb[0].mxu0
      %v1490 = vadd.f32 0.0, %v1489
      %v1491 = vpop.f32.mrb[0].mxu0
      %1492 = vdwg.mxu0
      %1493 = vmatprep.subr.bf16.mxu0 0
      %1494 = vmatpush1.bf16.msra.mxu0 %v1380
      %1495 = vmatprep.subr.bf16.mxu0 0
      %1496 = vmatpush1.bf16.msra.mxu0 %v1381
      %1497 = vmatprep.subr.bf16.mxu0 0
      %1498 = vmatpush1.bf16.msra.mxu0 %v1382
      %1499 = vmatprep.subr.bf16.mxu0 0
      %1500 = vmatpush1.bf16.msra.mxu0 %v1383
      %1501 = vmatprep.subr.bf16.mxu0 0
      %1502 = vmatpush1.bf16.msra.mxu0 %v1384
      %1503 = vmatprep.subr.bf16.mxu0 0
      %1504 = vmatpush1.bf16.msra.mxu0 %v1385
      %1505 = vmatprep.subr.bf16.mxu0 0
      %1506 = vmatpush1.bf16.msra.mxu0 %v1386
      %1507 = vmatprep.subr.bf16.mxu0 0
      %1508 = vmatpush1.bf16.msra.mxu0 %v1387
      %1509 = vmatprep.subr.bf16.mxu0 0
      %1510 = vmatpush1.bf16.msra.mxu0 %v1388
      %1511 = vmatprep.subr.bf16.mxu0 0
      %1512 = vmatpush1.bf16.msra.mxu0 %v1389
      %1513 = vmatprep.subr.bf16.mxu0 0
      %1514 = vmatpush1.bf16.msra.mxu0 %v1390
      %1515 = vmatprep.subr.bf16.mxu0 0
      %1516 = vmatpush1.bf16.msra.mxu0 %v1391
      %1517 = vmatprep.subr.bf16.mxu0 0
      %1518 = vmatpush1.bf16.msra.mxu0 %v1392
      %1519 = vmatprep.subr.bf16.mxu0 0
      %1520 = vmatpush1.bf16.msra.mxu0 %v1393
      %1521 = vmatprep.subr.bf16.mxu0 0
      %1522 = vmatpush1.bf16.msra.mxu0 %v1394
      %1523 = vmatprep.subr.bf16.mxu0 0
      %1524 = vmatpush1.bf16.msra.mxu0 %v1395
      %1525 = vmatprep.mubr.bf16.mxu0 %v1159
      %1526 = vmatmul.mubr.bf16.gmra.mrb[0].mxu0 %v1158
      %v1527 = vpop.f32.mrb[0].mxu0
      %v1528 = vadd.f32 %v1463, %v1527
      %v1529 = vpop.f32.mrb[0].mxu0
      %v1530 = vpop.f32.mrb[0].mxu0
      %v1531 = vadd.f32 %v1466, %v1530
      %v1532 = vpop.f32.mrb[0].mxu0
      %1533 = vmatprep.mubr.bf16.mxu0 %v1163
      %1534 = vmatmul.mubr.bf16.gmra.mrb[0].mxu0 %v1162
      %v1535 = vpop.f32.mrb[0].mxu0
      %v1536 = vadd.f32 %v1471, %v1535
      %v1537 = vpop.f32.mrb[0].mxu0
      %v1538 = vpop.f32.mrb[0].mxu0
      %v1539 = vadd.f32 %v1474, %v1538
      %v1540 = vpop.f32.mrb[0].mxu0
      %1541 = vmatprep.mubr.bf16.mxu0 %v1167
      %1542 = vmatmul.mubr.bf16.gmra.mrb[0].mxu0 %v1166
      %v1543 = vpop.f32.mrb[0].mxu0
      %v1544 = vadd.f32 %v1479, %v1543
      %v1545 = vpop.f32.mrb[0].mxu0
      %v1546 = vpop.f32.mrb[0].mxu0
      %v1547 = vadd.f32 %v1482, %v1546
      %v1548 = vpop.f32.mrb[0].mxu0
      %1549 = vmatprep.mubr.bf16.mxu0 %v1171
      %1550 = vmatmul.mubr.bf16.gmra.mrb[0].mxu0 %v1170
      %v1551 = vpop.f32.mrb[0].mxu0
      %v1552 = vadd.f32 %v1487, %v1551
      %v1553 = vpop.f32.mrb[0].mxu0
      %v1554 = vpop.f32.mrb[0].mxu0
      %v1555 = vadd.f32 %v1490, %v1554
      %v1556 = vpop.f32.mrb[0].mxu0
      %1557 = vdwg.mxu0
      %v1558 = vadd.f32 %v1148, %v1528
      %v1559 = vadd.f32 %v1149, %v1531
      %v1560 = vadd.f32 %v1150, %v1536
      %v1561 = vadd.f32 %v1151, %v1539
      %v1562 = vadd.f32 %v1152, %v1544
      %v1563 = vadd.f32 %v1153, %v1547
      %v1564 = vadd.f32 %v1154, %v1552
      %v1565 = vadd.f32 %v1155, %v1555
      %1566 = vst [vmem:[#allocation2] sm:$0xff] %v1558
      %1567 = vst [vmem:[#allocation2 + $0x8] sm:$0xff] %v1559
      %1568 = vst [vmem:[#allocation2 + $0x10] sm:$0xff] %v1560
      %1569 = vst [vmem:[#allocation2 + $0x18] sm:$0xff] %v1561
      %1570 = vst [vmem:[#allocation2 + $0x20] sm:$0xff] %v1562
      %1571 = vst [vmem:[#allocation2 + $0x28] sm:$0xff] %v1563
      %1572 = vst [vmem:[#allocation2 + $0x30] sm:$0xff] %v1564
      %1573 = vst [vmem:[#allocation2 + $0x38] sm:$0xff] %v1565
      // Predicated region
      $region53: #{transformer_forward.5} parent=47 // pred_check
        %p1574 = pneg %p358
      $region54: #{transformer_forward.5} parent=47 // pred_check_branch
        %1576 = sbr.rel (%p1574) target = $region56
      $region55: #{transformer_forward.5} parent=47 // pred_region
        %v1577 = vld [vmem:[#allocation2] sm:$0xff]
        %v1578 = vld [vmem:[#allocation2 + $0x8] sm:$0xff]
        %v1579 = vld [vmem:[#allocation2 + $0x10] sm:$0xff]
        %v1580 = vld [vmem:[#allocation2 + $0x18] sm:$0xff]
        %v1581 = vld [vmem:[#allocation2 + $0x20] sm:$0xff]
        %v1582 = vld [vmem:[#allocation2 + $0x28] sm:$0xff]
        %v1583 = vld [vmem:[#allocation2 + $0x30] sm:$0xff]
        %v1584 = vld [vmem:[#allocation2 + $0x38] sm:$0xff]
        %v1585 = vpack.c.bf16 %v1578, %v1577
        %v1586 = vpack.c.bf16 %v1580, %v1579
        %v1587 = vpack.c.bf16 %v1582, %v1581
        %v1588 = vpack.c.bf16 %v1584, %v1583
        %v1593 = vunpack.c.l.b16 %v1585
        %v1594 = vunpack.c.h.b16 %v1585
        %v1595 = vunpack.c.l.b16 %v1586
        %v1596 = vunpack.c.h.b16 %v1586
        %v1597 = vunpack.c.l.b16 %v1587
        %v1598 = vunpack.c.h.b16 %v1587
        %v1599 = vunpack.c.l.b16 %v1588
        %v1600 = vunpack.c.h.b16 %v1588
        %v1601 = vpack.c.b16 %v1593, %v1593
        %v1602 = vpack.c.b16 %v1594, %v1594
        %v1603 = vpack.c.b16 %v1595, %v1595
        %v1604 = vpack.c.b16 %v1596, %v1596
        %v1605 = vpack.c.b16 %v1597, %v1597
        %v1606 = vpack.c.b16 %v1598, %v1598
        %v1607 = vpack.c.b16 %v1599, %v1599
        %v1608 = vpack.c.b16 %v1600, %v1600
        %1617 = vst [vmem:[%s355] sm:$0xf] %v1601
        %1618 = vst [vmem:[%s355 + $0x4] sm:$0xf] %v1602
        %1619 = vst [vmem:[%s355 + $0x8] sm:$0xf] %v1603
        %1620 = vst [vmem:[%s355 + $0xc] sm:$0xf] %v1604
        %1621 = vst [vmem:[%s355 + $0x10] sm:$0xf] %v1605
        %1622 = vst [vmem:[%s355 + $0x14] sm:$0xf] %v1606
        %1623 = vst [vmem:[%s355 + $0x18] sm:$0xf] %v1607
        %1624 = vst [vmem:[%s355 + $0x1c] sm:$0xf] %v1608
      $region56: #{transformer_forward.5} parent=47 // pred_fallthru
        _
      %s1625 = smul.u32 8, %s22
      %p1626 = scmp.lt.s32.totalorder %s1625, 31
      %s1627 = scalar_select %p1626, %s1625, 31
      %s1628 = smul.addr %s1627, 4
      %s1629 = scalar_lea.vmem %s7, %s1628
      // Predicated region
      $region57: #{transformer_forward.5} parent=47 // pred_check
        %p1630 = pneg %p215
      $region58: #{transformer_forward.5} parent=47 // pred_check_branch
        %1632 = sbr.rel (%p1630) target = $region60
      $region59: #{transformer_forward.5} parent=47 // pred_region
        %s1633 = smul.u32 8, %s22
      $region60: #{transformer_forward.5} parent=47 // pred_fallthru
        _
    $region48: #{transformer_forward.5} parent=5 // pred_fallthru
      _
    %p1634 = scmp.le.s32.totalorder 2, %s13
    // Predicated region
    $region61: #{transformer_forward.5} parent=5 // pred_check
      %p1635 = pneg %p1634
    $region62: #{transformer_forward.5} parent=5 // pred_check_branch
      %1637 = sbr.rel (%p1635) target = $region64
    $region63: #{transformer_forward.5} parent=5 // pred_region
      %s1638 = ssub.s32 %s13, 2
      // Predicated region
      $region65: #{transformer_forward.5} parent=63 // pred_check
        %p1639 = pneg %p221
      $region66: #{transformer_forward.5} parent=63 // pred_check_branch
        %1641 = sbr.rel (%p1639) target = $region68
      $region67: #{transformer_forward.5} parent=63 // pred_region
        %s1642 = smul.u32 8, %s24
        %p1643 = scmp.lt.s32.totalorder %s1642, 31
        %s1644 = scalar_select %p1643, %s1642, 31
        %s1645 = smul.addr %s1644, 4
        %s1646 = scalar_lea.vmem %s7, %s1645
      $region68: #{transformer_forward.5} parent=63 // pred_fallthru
        _
    $region64: #{transformer_forward.5} parent=5 // pred_fallthru
      _
  $region6: #{transformer_forward.5} parent=0 // loop_footer
    %s17 = sadd.s32 1, %s13
  $region7: #{transformer_forward.5} parent=0 // loop_footer_branch
    %12 = sbr.rel target = $region3
  $region8: #{transformer_forward.5} parent=0 // loop_exit
    _

// kernel: transformer_forward.4
$region0: #{transformer_forward.4}
  #allocation0 [shape = 'u32[]', space=smem, size = 0x4, offset = 0x4, fixed_abs, tag = 'smem constant byte address 0x4 - core index']
  #allocation1 [shape = 'u32[144,128]{1,0:T(1,128)}', space=vmem, size = 0x12000, scoped, tag = 'internal scratch']
  %s0 = inlined_call_operand.vmem [shape: bf16[4,64,128], index: 0, kind: input, shape index: {}]
  %s1 = inlined_call_operand.vmem [shape: f32[1,128], index: 1, kind: input, shape index: {}]
  %s2 = inlined_call_operand.vmem [shape: f32[1,128], index: 2, kind: input, shape index: {}]
  %s3 = inlined_call_operand.vmem [shape: bf16[128,384], index: 3, kind: input, shape index: {}]
  %s4 = inlined_call_operand.vmem [shape: f32[1,384], index: 4, kind: input, shape index: {}]
  %s5 = inlined_call_operand.vmem [shape: bf16[128,128], index: 5, kind: input, shape index: {}]
  %s6 = inlined_call_operand.vmem [shape: f32[1,128], index: 6, kind: input, shape index: {}]
  %s7 = inlined_call_operand.vmem [shape: bf16[4,64,128], index: 7, kind: output, shape index: {}]
  %s8 = sld [smem:[#allocation0]]
  $region61: #{transformer_forward.4} parent=0
    _
  %s10 = ssub.s32 1, %s8
  %s11 = scalar_select 0, %s10, %s8
  loop: start=0, step=1, limit=6
  $region2: #{transformer_forward.4} parent=0 // loop_pre_header
    _
  $region3: #{transformer_forward.4} parent=0 // loop_header
    %s13 = sphi 0, %s17
    %p14 = scmp.ge.s32.totalorder %s13, 6
    %s23 = sphi 0, %s25
    %s26 = sphi 0, %s23
    %s27 = sphi 0, %s26
    %s43 = sphi 0, %s27
    %s47 = sphi 0, %s47
    %s49 = sphi 0, %s47
    %s50 = sphi 0, %s49
    %s64 = sphi 0, %s50
    %s68 = sphi 0, %s68
    %s70 = sphi 0, %s68
    %s71 = sphi 0, %s70
    %s85 = sphi 0, %s71
    %s89 = sphi 0, %s89
    %s91 = sphi 0, %s89
    %s92 = sphi 0, %s91
    %s106 = sphi 0, %s92
    %s110 = sphi 0, %s110
    %s112 = sphi 0, %s110
    %s113 = sphi 0, %s112
    %s127 = sphi 0, %s113
    %s131 = sphi 0, %s131
    %s133 = sphi 0, %s131
    %s134 = sphi 0, %s133
    %s148 = sphi 0, %s134
    %s152 = sphi 0, %s152
    %s154 = sphi 0, %s152
    %s155 = sphi 0, %s154
    %s169 = sphi 0, %s155
    %s175 = sphi 0, %s177
    %s178 = sphi 0, %s175
    %s179 = sphi 0, %s178
    %s195 = sphi 0, %s179
  $region4: #{transformer_forward.4} parent=0 // loop_header_branch
    %16 = sbr.rel (%p14) target = $region8
  $region5: #{transformer_forward.4} parent=0 // loop_body
    %s18 = ssub.s32 %s13, 1
    %s19 = ssub.s32 %s13, 2
    %s20 = sadd.s32 %s13, 1
    %s21 = ssub.s32 %s13, %s20
    %p22 = scmp.eq.s32.totalorder %s21, 0
    %s24 = sadd.s32 %s23, 1
    %s25 = scalar_select %p22, %s23, %s24
    %p28 = pneg %p22
    %p29 = scmp.eq.s32.totalorder %s13, 3
    %p30 = por %p28, %p29
    %p31 = scmp.ne.s32.totalorder %s23, %s26
    %p32 = scmp.eq.s32.totalorder %s13, 0
    %p33 = por %p31, %p32
    %p34 = scmp.ne.s32.totalorder %s23, %s26
    %p35 = scmp.eq.s32.totalorder %s18, 3
    %p36 = por %p34, %p35
    %p37 = scmp.ne.s32.totalorder %s26, %s27
    %p38 = scmp.eq.s32.totalorder %s18, 0
    %p39 = por %p37, %p38
    %p40 = scmp.ne.s32.totalorder %s26, %s27
    %p41 = scmp.eq.s32.totalorder %s19, 3
    %p42 = por %p40, %p41
    %p44 = scmp.ne.s32.totalorder %s27, %s43
    %p45 = scmp.eq.s32.totalorder %s19, 0
    %p46 = por %p44, %p45
    %s48 = sadd.s32 %s47, 1
    %p51 = scmp.eq.s32.totalorder %s13, 3
    %p52 = scmp.ne.s32.totalorder %s47, %s49
    %p53 = scmp.eq.s32.totalorder %s13, 0
    %p54 = por %p52, %p53
    %p55 = scmp.ne.s32.totalorder %s47, %s49
    %p56 = scmp.eq.s32.totalorder %s18, 3
    %p57 = por %p55, %p56
    %p58 = scmp.ne.s32.totalorder %s49, %s50
    %p59 = scmp.eq.s32.totalorder %s18, 0
    %p60 = por %p58, %p59
    %p61 = scmp.ne.s32.totalorder %s49, %s50
    %p62 = scmp.eq.s32.totalorder %s19, 3
    %p63 = por %p61, %p62
    %p65 = scmp.ne.s32.totalorder %s50, %s64
    %p66 = scmp.eq.s32.totalorder %s19, 0
    %p67 = por %p65, %p66
    %s69 = sadd.s32 %s68, 1
    %p72 = scmp.eq.s32.totalorder %s13, 3
    %p73 = scmp.ne.s32.totalorder %s68, %s70
    %p74 = scmp.eq.s32.totalorder %s13, 0
    %p75 = por %p73, %p74
    %p76 = scmp.ne.s32.totalorder %s68, %s70
    %p77 = scmp.eq.s32.totalorder %s18, 3
    %p78 = por %p76, %p77
    %p79 = scmp.ne.s32.totalorder %s70, %s71
    %p80 = scmp.eq.s32.totalorder %s18, 0
    %p81 = por %p79, %p80
    %p82 = scmp.ne.s32.totalorder %s70, %s71
    %p83 = scmp.eq.s32.totalorder %s19, 3
    %p84 = por %p82, %p83
    %p86 = scmp.ne.s32.totalorder %s71, %s85
    %p87 = scmp.eq.s32.totalorder %s19, 0
    %p88 = por %p86, %p87
    %s90 = sadd.s32 %s89, 1
    %p93 = scmp.eq.s32.totalorder %s13, 3
    %p94 = scmp.ne.s32.totalorder %s89, %s91
    %p95 = scmp.eq.s32.totalorder %s13, 0
    %p96 = por %p94, %p95
    %p97 = scmp.ne.s32.totalorder %s89, %s91
    %p98 = scmp.eq.s32.totalorder %s18, 3
    %p99 = por %p97, %p98
    %p100 = scmp.ne.s32.totalorder %s91, %s92
    %p101 = scmp.eq.s32.totalorder %s18, 0
    %p102 = por %p100, %p101
    %p103 = scmp.ne.s32.totalorder %s91, %s92
    %p104 = scmp.eq.s32.totalorder %s19, 3
    %p105 = por %p103, %p104
    %p107 = scmp.ne.s32.totalorder %s92, %s106
    %p108 = scmp.eq.s32.totalorder %s19, 0
    %p109 = por %p107, %p108
    %s111 = sadd.s32 %s110, 1
    %p114 = scmp.eq.s32.totalorder %s13, 3
    %p115 = scmp.ne.s32.totalorder %s110, %s112
    %p116 = scmp.eq.s32.totalorder %s13, 0
    %p117 = por %p115, %p116
    %p118 = scmp.ne.s32.totalorder %s110, %s112
    %p119 = scmp.eq.s32.totalorder %s18, 3
    %p120 = por %p118, %p119
    %p121 = scmp.ne.s32.totalorder %s112, %s113
    %p122 = scmp.eq.s32.totalorder %s18, 0
    %p123 = por %p121, %p122
    %p124 = scmp.ne.s32.totalorder %s112, %s113
    %p125 = scmp.eq.s32.totalorder %s19, 3
    %p126 = por %p124, %p125
    %p128 = scmp.ne.s32.totalorder %s113, %s127
    %p129 = scmp.eq.s32.totalorder %s19, 0
    %p130 = por %p128, %p129
    %s132 = sadd.s32 %s131, 1
    %p135 = scmp.eq.s32.totalorder %s13, 3
    %p136 = scmp.ne.s32.totalorder %s131, %s133
    %p137 = scmp.eq.s32.totalorder %s13, 0
    %p138 = por %p136, %p137
    %p139 = scmp.ne.s32.totalorder %s131, %s133
    %p140 = scmp.eq.s32.totalorder %s18, 3
    %p141 = por %p139, %p140
    %p142 = scmp.ne.s32.totalorder %s133, %s134
    %p143 = scmp.eq.s32.totalorder %s18, 0
    %p144 = por %p142, %p143
    %p145 = scmp.ne.s32.totalorder %s133, %s134
    %p146 = scmp.eq.s32.totalorder %s19, 3
    %p147 = por %p145, %p146
    %p149 = scmp.ne.s32.totalorder %s134, %s148
    %p150 = scmp.eq.s32.totalorder %s19, 0
    %p151 = por %p149, %p150
    %s153 = sadd.s32 %s152, 1
    %p156 = scmp.eq.s32.totalorder %s13, 3
    %p157 = scmp.ne.s32.totalorder %s152, %s154
    %p158 = scmp.eq.s32.totalorder %s13, 0
    %p159 = por %p157, %p158
    %p160 = scmp.ne.s32.totalorder %s152, %s154
    %p161 = scmp.eq.s32.totalorder %s18, 3
    %p162 = por %p160, %p161
    %p163 = scmp.ne.s32.totalorder %s154, %s155
    %p164 = scmp.eq.s32.totalorder %s18, 0
    %p165 = por %p163, %p164
    %p166 = scmp.ne.s32.totalorder %s154, %s155
    %p167 = scmp.eq.s32.totalorder %s19, 3
    %p168 = por %p166, %p167
    %p170 = scmp.ne.s32.totalorder %s155, %s169
    %p171 = scmp.eq.s32.totalorder %s19, 0
    %p172 = por %p170, %p171
    %s173 = ssub.s32 %s13, %s20
    %p174 = scmp.eq.s32.totalorder %s173, 0
    %s176 = sadd.s32 %s175, 1
    %s177 = scalar_select %p174, %s175, %s176
    %p180 = pneg %p174
    %p181 = scmp.eq.s32.totalorder %s13, 3
    %p182 = por %p180, %p181
    %p183 = scmp.ne.s32.totalorder %s175, %s178
    %p184 = scmp.eq.s32.totalorder %s13, 0
    %p185 = por %p183, %p184
    %p186 = scmp.ne.s32.totalorder %s175, %s178
    %p187 = scmp.eq.s32.totalorder %s18, 3
    %p188 = por %p186, %p187
    %p189 = scmp.ne.s32.totalorder %s178, %s179
    %p190 = scmp.eq.s32.totalorder %s18, 0
    %p191 = por %p189, %p190
    %p192 = scmp.ne.s32.totalorder %s178, %s179
    %p193 = scmp.eq.s32.totalorder %s19, 3
    %p194 = por %p192, %p193
    %p196 = scmp.ne.s32.totalorder %s179, %s195
    %p197 = scmp.eq.s32.totalorder %s19, 0
    %p198 = por %p196, %p197
    %p199 = scmp.le.s32.totalorder 1, %s13
    %p200 = scmp.lt.s32.totalorder %s13, 5
    %p201 = pnand %p199, %p200
    %p202 = pneg %p201
    // Predicated region
    $region9: #{transformer_forward.4} parent=5 // pred_check
      _
    $region10: #{transformer_forward.4} parent=5 // pred_check_branch
      %204 = sbr.rel (%p201) target = $region12
    $region11: #{transformer_forward.4} parent=5 // pred_region
      %s205 = ssub.s32 %s13, 1
      // Predicated region
      $region13: #{transformer_forward.4} parent=11 // pred_check
        %p206 = pneg %p60
      $region14: #{transformer_forward.4} parent=11 // pred_check_branch
        %208 = sbr.rel (%p206) target = $region16
      $region15: #{transformer_forward.4} parent=11 // pred_region
        _
      $region16: #{transformer_forward.4} parent=11 // pred_fallthru
        _
      // Predicated region
      $region17: #{transformer_forward.4} parent=11 // pred_check
        %p209 = pneg %p81
      $region18: #{transformer_forward.4} parent=11 // pred_check_branch
        %211 = sbr.rel (%p209) target = $region20
      $region19: #{transformer_forward.4} parent=11 // pred_region
        _
      $region20: #{transformer_forward.4} parent=11 // pred_fallthru
        _
      // Predicated region
      $region21: #{transformer_forward.4} parent=11 // pred_check
        %p212 = pneg %p102
      $region22: #{transformer_forward.4} parent=11 // pred_check_branch
        %214 = sbr.rel (%p212) target = $region24
      $region23: #{transformer_forward.4} parent=11 // pred_region
        _
      $region24: #{transformer_forward.4} parent=11 // pred_fallthru
        _
      // Predicated region
      $region25: #{transformer_forward.4} parent=11 // pred_check
        %p215 = pneg %p123
      $region26: #{transformer_forward.4} parent=11 // pred_check_branch
        %217 = sbr.rel (%p215) target = $region28
      $region27: #{transformer_forward.4} parent=11 // pred_region
        _
      $region28: #{transformer_forward.4} parent=11 // pred_fallthru
        _
      // Predicated region
      $region29: #{transformer_forward.4} parent=11 // pred_check
        %p218 = pneg %p144
      $region30: #{transformer_forward.4} parent=11 // pred_check_branch
        %220 = sbr.rel (%p218) target = $region32
      $region31: #{transformer_forward.4} parent=11 // pred_region
        _
      $region32: #{transformer_forward.4} parent=11 // pred_fallthru
        _
      // Predicated region
      $region33: #{transformer_forward.4} parent=11 // pred_check
        %p221 = pneg %p165
      $region34: #{transformer_forward.4} parent=11 // pred_check_branch
        %223 = sbr.rel (%p221) target = $region36
      $region35: #{transformer_forward.4} parent=11 // pred_region
        _
      $region36: #{transformer_forward.4} parent=11 // pred_fallthru
        _
    $region12: #{transformer_forward.4} parent=5 // pred_fallthru
      _
    %p224 = scmp.lt.s32.totalorder %s13, 4
    // Predicated region
    $region37: #{transformer_forward.4} parent=5 // pred_check
      %p225 = pneg %p224
    $region38: #{transformer_forward.4} parent=5 // pred_check_branch
      %227 = sbr.rel (%p225) target = $region40
    $region39: #{transformer_forward.4} parent=5 // pred_region
      // Predicated region
      $region41: #{transformer_forward.4} parent=39 // pred_check
        %p228 = pneg %p33
      $region42: #{transformer_forward.4} parent=39 // pred_check_branch
        %230 = sbr.rel (%p228) target = $region44
      $region43: #{transformer_forward.4} parent=39 // pred_region
        %p231 = scmp.lt.s32.totalorder %s13, 3
        %s232 = scalar_select %p231, %s13, 3
        %s233 = smul.addr %s232, 8
        %s234 = smul.addr %s233, 4
        %s235 = scalar_lea.vmem %s0, %s234
      $region44: #{transformer_forward.4} parent=39 // pred_fallthru
        _
    $region40: #{transformer_forward.4} parent=5 // pred_fallthru
      _
    %p236 = scmp.le.s32.totalorder 1, %s13
    %p237 = scmp.lt.s32.totalorder %s13, 5
    %p238 = pnand %p236, %p237
    %p239 = pneg %p238
    // Predicated region
    $region45: #{transformer_forward.4} parent=5 // pred_check
      _
    $region46: #{transformer_forward.4} parent=5 // pred_check_branch
      %241 = sbr.rel (%p238) target = $region48
    $region47: #{transformer_forward.4} parent=5 // pred_region
      %s242 = ssub.s32 %s13, 1
      %p243 = scmp.lt.s32.totalorder %s18, 3
      %s244 = scalar_select %p243, %s18, 3
      %s245 = smul.addr %s244, 8
      %s246 = smul.addr %s245, 4
      %s247 = scalar_lea.vmem %s0, %s246
      %p248 = pneg %p39
      %p249 = pneg %p36
      %p250 = pneg %p60
      %p251 = pneg %p57
      %p252 = pneg %p81
      %p253 = pneg %p78
      %p254 = pneg %p102
      %p255 = pneg %p99
      %p256 = pneg %p123
      %p257 = pneg %p120
      %p258 = pneg %p144
      %p259 = pneg %p141
      %p260 = pneg %p165
      %p261 = pneg %p162
      %p262 = pneg %p191
      %p263 = pneg %p188
      %p264 = scmp.lt.s32.totalorder %s18, 3
      %s265 = scalar_select %p264, %s18, 3
      %s266 = smul.addr %s265, 8
      %s267 = smul.addr %s266, 4
      %s268 = scalar_lea.vmem %s7, %s267
      %p269 = scmp.lt.s32.totalorder %s18, 3
      %s270 = scalar_select %p269, %s18, 3
      %s271 = smul.addr %s270, 8
      %s272 = smul.addr %s271, 4
      %s273 = scalar_lea.vmem %s0, %s272
      %p274 = scmp.lt.s32.totalorder %s18, 3
      %s275 = scalar_select %p274, %s18, 3
      %s276 = smul.addr %s275, 8
      %s277 = smul.addr %s276, 4
      %s278 = scalar_lea.vmem %s7, %s277
      %v280 = vld [vmem:[%s273] sm:$0xf]
      %v281 = vld [vmem:[%s273 + $0x4] sm:$0xf]
      %v282 = vld [vmem:[%s273 + $0x8] sm:$0xf]
      %v283 = vld [vmem:[%s273 + $0xc] sm:$0xf]
      %v284 = vld [vmem:[%s273 + $0x10] sm:$0xf]
      %v285 = vld [vmem:[%s273 + $0x14] sm:$0xf]
      %v286 = vld [vmem:[%s273 + $0x18] sm:$0xf]
      %v287 = vld [vmem:[%s273 + $0x1c] sm:$0xf]
      %v288 = vunpack.c.l.bf16 %v280
      %v289 = vunpack.c.l.bf16 %v281
      %v290 = vunpack.c.l.bf16 %v282
      %v291 = vunpack.c.l.bf16 %v283
      %v292 = vunpack.c.l.bf16 %v284
      %v293 = vunpack.c.l.bf16 %v285
      %v294 = vunpack.c.l.bf16 %v286
      %v295 = vunpack.c.l.bf16 %v287
      %296 = vadd.xlane.f32.xlu0 %v288
      %v297 = vpop.xlane.xlu0 %296
      %298 = vadd.xlane.f32.xlu0 %v289
      %v299 = vpop.xlane.xlu0 %298
      %300 = vadd.xlane.f32.xlu0 %v290
      %v301 = vpop.xlane.xlu0 %300
      %302 = vadd.xlane.f32.xlu0 %v291
      %v303 = vpop.xlane.xlu0 %302
      %304 = vadd.xlane.f32.xlu0 %v292
      %v305 = vpop.xlane.xlu0 %304
      %306 = vadd.xlane.f32.xlu0 %v293
      %v307 = vpop.xlane.xlu0 %306
      %308 = vadd.xlane.f32.xlu0 %v294
      %v309 = vpop.xlane.xlu0 %308
      %310 = vadd.xlane.f32.xlu0 %v295
      %v311 = vpop.xlane.xlu0 %310
      %v312 = vrcp.pop 128.0
      %v313 = vmul.f32 %v297, %v312
      %v314 = vmul.f32 %v299, %v312
      %v315 = vmul.f32 %v301, %v312
      %v316 = vmul.f32 %v303, %v312
      %v317 = vmul.f32 %v305, %v312
      %v318 = vmul.f32 %v307, %v312
      %v319 = vmul.f32 %v309, %v312
      %v320 = vmul.f32 %v311, %v312
      %v321 = vsub.f32 %v288, %v313
      %v322 = vsub.f32 %v289, %v314
      %v323 = vsub.f32 %v290, %v315
      %v324 = vsub.f32 %v291, %v316
      %v325 = vsub.f32 %v292, %v317
      %v326 = vsub.f32 %v293, %v318
      %v327 = vsub.f32 %v294, %v319
      %v328 = vsub.f32 %v295, %v320
      %v329 = vmul.f32 %v321, %v321
      %v330 = vmul.f32 %v322, %v322
      %v331 = vmul.f32 %v323, %v323
      %v332 = vmul.f32 %v324, %v324
      %v333 = vmul.f32 %v325, %v325
      %v334 = vmul.f32 %v326, %v326
      %v335 = vmul.f32 %v327, %v327
      %v336 = vmul.f32 %v328, %v328
      %337 = vadd.xlane.f32.xlu0 %v329
      %v338 = vpop.xlane.xlu0 %337
      %339 = vadd.xlane.f32.xlu0 %v330
      %v340 = vpop.xlane.xlu0 %339
      %341 = vadd.xlane.f32.xlu0 %v331
      %v342 = vpop.xlane.xlu0 %341
      %343 = vadd.xlane.f32.xlu0 %v332
      %v344 = vpop.xlane.xlu0 %343
      %345 = vadd.xlane.f32.xlu0 %v333
      %v346 = vpop.xlane.xlu0 %345
      %347 = vadd.xlane.f32.xlu0 %v334
      %v348 = vpop.xlane.xlu0 %347
      %349 = vadd.xlane.f32.xlu0 %v335
      %v350 = vpop.xlane.xlu0 %349
      %351 = vadd.xlane.f32.xlu0 %v336
      %v352 = vpop.xlane.xlu0 %351
      %v353 = vmul.f32 %v338, %v312
      %v354 = vmul.f32 %v340, %v312
      %v355 = vmul.f32 %v342, %v312
      %v356 = vmul.f32 %v344, %v312
      %v357 = vmul.f32 %v346, %v312
      %v358 = vmul.f32 %v348, %v312
      %v359 = vmul.f32 %v350, %v312
      %v360 = vmul.f32 %v352, %v312
      %v361 = vadd.f32 %v353, 1e-05
      %v362 = vadd.f32 %v354, 1e-05
      %v363 = vadd.f32 %v355, 1e-05
      %v364 = vadd.f32 %v356, 1e-05
      %v365 = vadd.f32 %v357, 1e-05
      %v366 = vadd.f32 %v358, 1e-05
      %v367 = vadd.f32 %v359, 1e-05
      %v368 = vadd.f32 %v360, 1e-05
      %v369 = vrsqrt.pop %v361
      %v370 = vrsqrt.pop %v362
      %v371 = vrsqrt.pop %v363
      %v372 = vrsqrt.pop %v364
      %v373 = vrsqrt.pop %v365
      %v374 = vrsqrt.pop %v366
      %v375 = vrsqrt.pop %v367
      %v376 = vrsqrt.pop %v368
      %v377 = vmul.f32 %v321, %v369
      %v378 = vmul.f32 %v322, %v370
      %v379 = vmul.f32 %v323, %v371
      %v380 = vmul.f32 %v324, %v372
      %v381 = vmul.f32 %v325, %v373
      %v382 = vmul.f32 %v326, %v374
      %v383 = vmul.f32 %v327, %v375
      %v384 = vmul.f32 %v328, %v376
      %v385 = vld [vmem:[%s1] sm:$0x1]
      %v387 = vlaneseq
      %v388 = vshrl.u32 %v387, 7
      %v389 = vsub.s32 0, %v388
      %v390 = vrot.slane %v385, %v389
      %v392 = vmul.f32 %v377, %v390
      %v393 = vmul.f32 %v378, %v390
      %v394 = vmul.f32 %v379, %v390
      %v395 = vmul.f32 %v380, %v390
      %v396 = vmul.f32 %v381, %v390
      %v397 = vmul.f32 %v382, %v390
      %v398 = vmul.f32 %v383, %v390
      %v399 = vmul.f32 %v384, %v390
      %v400 = vld [vmem:[%s2] sm:$0x1]
      %v402 = vlaneseq
      %v403 = vshrl.u32 %v402, 7
      %v404 = vsub.s32 0, %v403
      %v405 = vrot.slane %v400, %v404
      %v407 = vadd.f32 %v392, %v405
      %v408 = vadd.f32 %v393, %v405
      %v409 = vadd.f32 %v394, %v405
      %v410 = vadd.f32 %v395, %v405
      %v411 = vadd.f32 %v396, %v405
      %v412 = vadd.f32 %v397, %v405
      %v413 = vadd.f32 %v398, %v405
      %v414 = vadd.f32 %v399, %v405
      %v415 = vpack.c.bf16 %v408, %v407
      %v416 = vpack.c.bf16 %v410, %v409
      %v417 = vpack.c.bf16 %v412, %v411
      %v418 = vpack.c.bf16 %v414, %v413
      %v419 = vld [vmem:[%s3] sm:$0xff]
      %v420 = vld [vmem:[%s3 + $0x8] sm:$0xf]
      %v421 = vld [vmem:[%s3 + $0xc] sm:$0xff]
      %v422 = vld [vmem:[%s3 + $0x14] sm:$0xf]
      %v423 = vld [vmem:[%s3 + $0x18] sm:$0xff]
      %v424 = vld [vmem:[%s3 + $0x20] sm:$0xf]
      %v425 = vld [vmem:[%s3 + $0x24] sm:$0xff]
      %v426 = vld [vmem:[%s3 + $0x2c] sm:$0xf]
      %v427 = vld [vmem:[%s3 + $0x30] sm:$0xff]
      %v428 = vld [vmem:[%s3 + $0x38] sm:$0xf]
      %v429 = vld [vmem:[%s3 + $0x3c] sm:$0xff]
      %v430 = vld [vmem:[%s3 + $0x44] sm:$0xf]
      %v431 = vld [vmem:[%s3 + $0x48] sm:$0xff]
      %v432 = vld [vmem:[%s3 + $0x50] sm:$0xf]
      %v433 = vld [vmem:[%s3 + $0x54] sm:$0xff]
      %v434 = vld [vmem:[%s3 + $0x5c] sm:$0xf]
      %v435 = vld [vmem:[%s3 + $0x60] sm:$0xff]
      %v436 = vld [vmem:[%s3 + $0x68] sm:$0xf]
      %v437 = vld [vmem:[%s3 + $0x6c] sm:$0xff]
      %v438 = vld [vmem:[%s3 + $0x74] sm:$0xf]
      %v439 = vld [vmem:[%s3 + $0x78] sm:$0xff]
      %v440 = vld [vmem:[%s3 + $0x80] sm:$0xf]
      %v441 = vld [vmem:[%s3 + $0x84] sm:$0xff]
      %v442 = vld [vmem:[%s3 + $0x8c] sm:$0xf]
      %v443 = vld [vmem:[%s3 + $0x90] sm:$0xff]
      %v444 = vld [vmem:[%s3 + $0x98] sm:$0xf]
      %v445 = vld [vmem:[%s3 + $0x9c] sm:$0xff]
      %v446 = vld [vmem:[%s3 + $0xa4] sm:$0xf]
      %v447 = vld [vmem:[%s3 + $0xa8] sm:$0xff]
      %v448 = vld [vmem:[%s3 + $0xb0] sm:$0xf]
      %v449 = vld [vmem:[%s3 + $0xb4] sm:$0xff]
      %v450 = vld [vmem:[%s3 + $0xbc] sm:$0xf]
      %v451 = vld [vmem:[%s4] sm:$0x7]
      %v453 = vlaneseq
      %v454 = vshrl.u32 %v453, 7
      %v455 = vsub.s32 0, %v454
      %v456 = vrot.slane %v451, %v455
      %v457 = vlaneseq
      %v458 = vshrl.u32 %v457, 7
      %v459 = vsub.s32 1, %v458
      %v460 = vrot.slane %v451, %v459
      %v461 = vlaneseq
      %v462 = vshrl.u32 %v461, 7
      %v463 = vsub.s32 2, %v462
      %v464 = vrot.slane %v451, %v463
      %v500 = vunpack.c.l.b16 %v419
      %v501 = vunpack.c.h.b16 %v419
      %v502 = vunpack.c.l.b16 %v420
      %v503 = vunpack.c.l.b16 %v421
      %v504 = vunpack.c.h.b16 %v421
      %v505 = vunpack.c.l.b16 %v422
      %v506 = vunpack.c.l.b16 %v423
      %v507 = vunpack.c.h.b16 %v423
      %v508 = vunpack.c.l.b16 %v424
      %v509 = vunpack.c.l.b16 %v425
      %v510 = vunpack.c.h.b16 %v425
      %v511 = vunpack.c.l.b16 %v426
      %v512 = vunpack.c.l.b16 %v427
      %v513 = vunpack.c.h.b16 %v427
      %v514 = vunpack.c.l.b16 %v428
      %v515 = vunpack.c.l.b16 %v429
      %v516 = vunpack.c.h.b16 %v429
      %v517 = vunpack.c.l.b16 %v430
      %v518 = vunpack.c.l.b16 %v431
      %v519 = vunpack.c.h.b16 %v431
      %v520 = vunpack.c.l.b16 %v432
      %v521 = vunpack.c.l.b16 %v433
      %v522 = vunpack.c.h.b16 %v433
      %v523 = vunpack.c.l.b16 %v434
      %v524 = vunpack.c.l.b16 %v435
      %v525 = vunpack.c.h.b16 %v435
      %v526 = vunpack.c.l.b16 %v436
      %v527 = vunpack.c.l.b16 %v437
      %v528 = vunpack.c.h.b16 %v437
      %v529 = vunpack.c.l.b16 %v438
      %v530 = vunpack.c.l.b16 %v439
      %v531 = vunpack.c.h.b16 %v439
      %v532 = vunpack.c.l.b16 %v440
      %v533 = vunpack.c.l.b16 %v441
      %v534 = vunpack.c.h.b16 %v441
      %v535 = vunpack.c.l.b16 %v442
      %v536 = vunpack.c.l.b16 %v443
      %v537 = vunpack.c.h.b16 %v443
      %v538 = vunpack.c.l.b16 %v444
      %v539 = vunpack.c.l.b16 %v445
      %v540 = vunpack.c.h.b16 %v445
      %v541 = vunpack.c.l.b16 %v446
      %v542 = vunpack.c.l.b16 %v447
      %v543 = vunpack.c.h.b16 %v447
      %v544 = vunpack.c.l.b16 %v448
      %v545 = vunpack.c.l.b16 %v449
      %v546 = vunpack.c.h.b16 %v449
      %v547 = vunpack.c.l.b16 %v450
      %v548 = vpack.c.b16 %v503, %v500
      %v549 = vpack.c.b16 %v504, %v501
      %v550 = vpack.c.b16 %v505, %v502
      %v551 = vpack.c.b16 %v509, %v506
      %v552 = vpack.c.b16 %v510, %v507
      %v553 = vpack.c.b16 %v511, %v508
      %v554 = vpack.c.b16 %v515, %v512
      %v555 = vpack.c.b16 %v516, %v513
      %v556 = vpack.c.b16 %v517, %v514
      %v557 = vpack.c.b16 %v521, %v518
      %v558 = vpack.c.b16 %v522, %v519
      %v559 = vpack.c.b16 %v523, %v520
      %v560 = vpack.c.b16 %v527, %v524
      %v561 = vpack.c.b16 %v528, %v525
      %v562 = vpack.c.b16 %v529, %v526
      %v563 = vpack.c.b16 %v533, %v530
      %v564 = vpack.c.b16 %v534, %v531
      %v565 = vpack.c.b16 %v535, %v532
      %v566 = vpack.c.b16 %v539, %v536
      %v567 = vpack.c.b16 %v540, %v537
      %v568 = vpack.c.b16 %v541, %v538
      %v569 = vpack.c.b16 %v545, %v542
      %v570 = vpack.c.b16 %v546, %v543
      %v571 = vpack.c.b16 %v547, %v544
      %596 = vmatprep.subr.bf16.mxu0 %v549
      %597 = vmatpush1.bf16.msra.mxu0 %v548
      %598 = vmatprep.subr.bf16.mxu0 %v552
      %599 = vmatpush1.bf16.msra.mxu0 %v551
      %600 = vmatprep.subr.bf16.mxu0 %v555
      %601 = vmatpush1.bf16.msra.mxu0 %v554
      %602 = vmatprep.subr.bf16.mxu0 %v558
      %603 = vmatpush1.bf16.msra.mxu0 %v557
      %604 = vmatprep.subr.bf16.mxu0 %v561
      %605 = vmatpush1.bf16.msra.mxu0 %v560
      %606 = vmatprep.subr.bf16.mxu0 %v564
      %607 = vmatpush1.bf16.msra.mxu0 %v563
      %608 = vmatprep.subr.bf16.mxu0 %v567
      %609 = vmatpush1.bf16.msra.mxu0 %v566
      %610 = vmatprep.subr.bf16.mxu0 %v570
      %611 = vmatpush1.bf16.msra.mxu0 %v569
      %612 = vmatprep.subr.bf16.mxu0 0
      %613 = vmatpush1.bf16.msra.mxu0 0
      %614 = vmatprep.subr.bf16.mxu0 0
      %615 = vmatpush1.bf16.msra.mxu0 0
      %616 = vmatprep.subr.bf16.mxu0 0
      %617 = vmatpush1.bf16.msra.mxu0 0
      %618 = vmatprep.subr.bf16.mxu0 0
      %619 = vmatpush1.bf16.msra.mxu0 0
      %620 = vmatprep.subr.bf16.mxu0 0
      %621 = vmatpush1.bf16.msra.mxu0 0
      %622 = vmatprep.subr.bf16.mxu0 0
      %623 = vmatpush1.bf16.msra.mxu0 0
      %624 = vmatprep.subr.bf16.mxu0 0
      %625 = vmatpush1.bf16.msra.mxu0 0
      %626 = vmatprep.subr.bf16.mxu0 0
      %627 = vmatpush1.bf16.msra.mxu0 0
      %628 = vmatprep.mubr.bf16.mxu0 0
      %629 = vmatmul.mubr.bf16.gmra.mrb[0].mxu0 %v415
      %v630 = vpop.f32.mrb[0].mxu0
      %v631 = vadd.f32 %v456, %v630
      %v632 = vpop.f32.mrb[0].mxu0
      %v633 = vadd.f32 %v460, %v632
      %v634 = vpop.f32.mrb[0].mxu0
      %v635 = vadd.f32 %v456, %v634
      %v636 = vpop.f32.mrb[0].mxu0
      %v637 = vadd.f32 %v460, %v636
      %638 = vmatprep.mubr.bf16.mxu0 0
      %639 = vmatmul.mubr.bf16.gmra.mrb[0].mxu0 %v416
      %v640 = vpop.f32.mrb[0].mxu0
      %v641 = vadd.f32 %v456, %v640
      %v642 = vpop.f32.mrb[0].mxu0
      %v643 = vadd.f32 %v460, %v642
      %v644 = vpop.f32.mrb[0].mxu0
      %v645 = vadd.f32 %v456, %v644
      %v646 = vpop.f32.mrb[0].mxu0
      %v647 = vadd.f32 %v460, %v646
      %648 = vmatprep.mubr.bf16.mxu0 0
      %649 = vmatmul.mubr.bf16.gmra.mrb[0].mxu0 %v417
      %v650 = vpop.f32.mrb[0].mxu0
      %v651 = vadd.f32 %v456, %v650
      %v652 = vpop.f32.mrb[0].mxu0
      %v653 = vadd.f32 %v460, %v652
      %v654 = vpop.f32.mrb[0].mxu0
      %v655 = vadd.f32 %v456, %v654
      %v656 = vpop.f32.mrb[0].mxu0
      %v657 = vadd.f32 %v460, %v656
      %658 = vmatprep.mubr.bf16.mxu0 0
      %659 = vmatmul.mubr.bf16.gmra.mrb[0].mxu0 %v418
      %v660 = vpop.f32.mrb[0].mxu0
      %v661 = vadd.f32 %v456, %v660
      %v662 = vpop.f32.mrb[0].mxu0
      %v663 = vadd.f32 %v460, %v662
      %v664 = vpop.f32.mrb[0].mxu0
      %v665 = vadd.f32 %v456, %v664
      %v666 = vpop.f32.mrb[0].mxu0
      %v667 = vadd.f32 %v460, %v666
      %668 = vdwg.mxu0
      %669 = vmatprep.subr.bf16.mxu0 0
      %670 = vmatpush1.bf16.msra.mxu0 %v550
      %671 = vmatprep.subr.bf16.mxu0 0
      %672 = vmatpush1.bf16.msra.mxu0 %v553
      %673 = vmatprep.subr.bf16.mxu0 0
      %674 = vmatpush1.bf16.msra.mxu0 %v556
      %675 = vmatprep.subr.bf16.mxu0 0
      %676 = vmatpush1.bf16.msra.mxu0 %v559
      %677 = vmatprep.subr.bf16.mxu0 0
      %678 = vmatpush1.bf16.msra.mxu0 %v562
      %679 = vmatprep.subr.bf16.mxu0 0
      %680 = vmatpush1.bf16.msra.mxu0 %v565
      %681 = vmatprep.subr.bf16.mxu0 0
      %682 = vmatpush1.bf16.msra.mxu0 %v568
      %683 = vmatprep.subr.bf16.mxu0 0
      %684 = vmatpush1.bf16.msra.mxu0 %v571
      %685 = vmatprep.subr.bf16.mxu0 0
      %686 = vmatpush1.bf16.msra.mxu0 0
      %687 = vmatprep.subr.bf16.mxu0 0
      %688 = vmatpush1.bf16.msra.mxu0 0
      %689 = vmatprep.subr.bf16.mxu0 0
      %690 = vmatpush1.bf16.msra.mxu0 0
      %691 = vmatprep.subr.bf16.mxu0 0
      %692 = vmatpush1.bf16.msra.mxu0 0
      %693 = vmatprep.subr.bf16.mxu0 0
      %694 = vmatpush1.bf16.msra.mxu0 0
      %695 = vmatprep.subr.bf16.mxu0 0
      %696 = vmatpush1.bf16.msra.mxu0 0
      %697 = vmatprep.subr.bf16.mxu0 0
      %698 = vmatpush1.bf16.msra.mxu0 0
      %699 = vmatprep.subr.bf16.mxu0 0
      %700 = vmatpush1.bf16.msra.mxu0 0
      %701 = vmatprep.mubr.bf16.mxu0 0
      %702 = vmatmul.mubr.bf16.gmra.mrb[0].mxu0 %v415
      %v703 = vpop.f32.mrb[0].mxu0
      %v704 = vadd.f32 %v464, %v703
      %v705 = vpop.f32.mrb[0].mxu0
      %v706 = vpop.f32.mrb[0].mxu0
      %v707 = vadd.f32 %v464, %v706
      %v708 = vpop.f32.mrb[0].mxu0
      %709 = vmatprep.mubr.bf16.mxu0 0
      %710 = vmatmul.mubr.bf16.gmra.mrb[0].mxu0 %v416
      %v711 = vpop.f32.mrb[0].mxu0
      %v712 = vadd.f32 %v464, %v711
      %v713 = vpop.f32.mrb[0].mxu0
      %v714 = vpop.f32.mrb[0].mxu0
      %v715 = vadd.f32 %v464, %v714
      %v716 = vpop.f32.mrb[0].mxu0
      %717 = vmatprep.mubr.bf16.mxu0 0
      %718 = vmatmul.mubr.bf16.gmra.mrb[0].mxu0 %v417
      %v719 = vpop.f32.mrb[0].mxu0
      %v720 = vadd.f32 %v464, %v719
      %v721 = vpop.f32.mrb[0].mxu0
      %v722 = vpop.f32.mrb[0].mxu0
      %v723 = vadd.f32 %v464, %v722
      %v724 = vpop.f32.mrb[0].mxu0
      %725 = vmatprep.mubr.bf16.mxu0 0
      %726 = vmatmul.mubr.bf16.gmra.mrb[0].mxu0 %v418
      %v727 = vpop.f32.mrb[0].mxu0
      %v728 = vadd.f32 %v464, %v727
      %v729 = vpop.f32.mrb[0].mxu0
      %v730 = vpop.f32.mrb[0].mxu0
      %v731 = vadd.f32 %v464, %v730
      %v732 = vpop.f32.mrb[0].mxu0
      %733 = vdwg.mxu0
      %v734 = vpack.c.bf16 %v635, %v631
      %v735 = vpack.c.bf16 %v645, %v641
      %v736 = vpack.c.bf16 %v655, %v651
      %v737 = vpack.c.bf16 %v665, %v661
      %v738 = vpack.c.bf16 %v637, %v633
      %v739 = vpack.c.bf16 %v647, %v643
      %v740 = vpack.c.bf16 %v657, %v653
      %v741 = vpack.c.bf16 %v667, %v663
      %v742 = vpack.c.bf16 %v707, %v704
      %v743 = vpack.c.bf16 %v715, %v712
      %v744 = vpack.c.bf16 %v723, %v720
      %v745 = vpack.c.bf16 %v731, %v728
      %vm746 = vcmask 261120
      %v748 = vsel %vm746, %v734, 0
      %v751 = vsel %vm746, %v735, 0
      %v754 = vsel %vm746, %v736, 0
      %v757 = vsel %vm746, %v737, 0
      %v760 = vsel %vm746, %v738, 0
      %v763 = vsel %vm746, %v739, 0
      %v766 = vsel %vm746, %v740, 0
      %v769 = vsel %vm746, %v741, 0
      %771 = vmatprep.subr.bf16.mxu0 0
      %772 = vmatpush1.bf16.xpose.msra.mxu0 %v760
      %773 = vmatprep.subr.bf16.mxu0 0
      %774 = vmatpush1.bf16.xpose.msra.mxu0 %v763
      %775 = vmatprep.subr.bf16.mxu0 0
      %776 = vmatpush1.bf16.xpose.msra.mxu0 %v766
      %777 = vmatprep.subr.bf16.mxu0 0
      %778 = vmatpush1.bf16.xpose.msra.mxu0 %v769
      %779 = vmatprep.subr.bf16.mxu0 0
      %780 = vmatpush1.bf16.xpose.msra.mxu0 0
      %781 = vmatprep.subr.bf16.mxu0 0
      %782 = vmatpush1.bf16.xpose.msra.mxu0 0
      %783 = vmatprep.subr.bf16.mxu0 0
      %784 = vmatpush1.bf16.xpose.msra.mxu0 0
      %785 = vmatprep.subr.bf16.mxu0 0
      %786 = vmatpush1.bf16.xpose.msra.mxu0 0
      %787 = vmatprep.subr.bf16.mxu0 0
      %788 = vmatpush1.bf16.xpose.msra.mxu0 0
      %789 = vmatprep.subr.bf16.mxu0 0
      %790 = vmatpush1.bf16.xpose.msra.mxu0 0
      %791 = vmatprep.subr.bf16.mxu0 0
      %792 = vmatpush1.bf16.xpose.msra.mxu0 0
      %793 = vmatprep.subr.bf16.mxu0 0
      %794 = vmatpush1.bf16.xpose.msra.mxu0 0
      %795 = vmatprep.subr.bf16.mxu0 0
      %796 = vmatpush1.bf16.xpose.msra.mxu0 0
      %797 = vmatprep.subr.bf16.mxu0 0
      %798 = vmatpush1.bf16.xpose.msra.mxu0 0
      %799 = vmatprep.subr.bf16.mxu0 0
      %800 = vmatpush1.bf16.xpose.msra.mxu0 0
      %801 = vmatprep.subr.bf16.mxu0 0
      %802 = vmatpush1.bf16.xpose.msra.mxu0 0
      %803 = vmatprep.mubr.bf16.mxu0 0
      %804 = vmatmul.mubr.bf16.gmra.mrb[0].mxu0 %v748
      %v805 = vpop.f32.mrb[0].mxu0
      %v806 = vadd.f32 0.0, %v805
      %v807 = vpop.f32.mrb[0].mxu0
      %v808 = vpop.f32.mrb[0].mxu0
      %v809 = vadd.f32 0.0, %v808
      %v810 = vpop.f32.mrb[0].mxu0
      %811 = vmatprep.mubr.bf16.mxu0 0
      %812 = vmatmul.mubr.bf16.gmra.mrb[0].mxu0 %v751
      %v813 = vpop.f32.mrb[0].mxu0
      %v814 = vadd.f32 0.0, %v813
      %v815 = vpop.f32.mrb[0].mxu0
      %v816 = vpop.f32.mrb[0].mxu0
      %v817 = vadd.f32 0.0, %v816
      %v818 = vpop.f32.mrb[0].mxu0
      %819 = vmatprep.mubr.bf16.mxu0 0
      %820 = vmatmul.mubr.bf16.gmra.mrb[0].mxu0 %v754
      %v821 = vpop.f32.mrb[0].mxu0
      %v822 = vadd.f32 0.0, %v821
      %v823 = vpop.f32.mrb[0].mxu0
      %v824 = vpop.f32.mrb[0].mxu0
      %v825 = vadd.f32 0.0, %v824
      %v826 = vpop.f32.mrb[0].mxu0
      %827 = vmatprep.mubr.bf16.mxu0 0
      %828 = vmatmul.mubr.bf16.gmra.mrb[0].mxu0 %v757
      %v829 = vpop.f32.mrb[0].mxu0
      %v830 = vadd.f32 0.0, %v829
      %v831 = vpop.f32.mrb[0].mxu0
      %v832 = vpop.f32.mrb[0].mxu0
      %v833 = vadd.f32 0.0, %v832
      %v834 = vpop.f32.mrb[0].mxu0
      %835 = vdwg.mxu0
      %vm836 = vcmask 523264
      %v837 = vsel %vm836, %v806, -inf
      %838 = vmax.xlane.f32.xlu0 %v837
      %v839 = vpop.xlane.xlu0 %838
      %v840 = vsel %vm836, %v809, -inf
      %841 = vmax.xlane.f32.xlu0 %v840
      %v842 = vpop.xlane.xlu0 %841
      %v843 = vsel %vm836, %v814, -inf
      %844 = vmax.xlane.f32.xlu0 %v843
      %v845 = vpop.xlane.xlu0 %844
      %v846 = vsel %vm836, %v817, -inf
      %847 = vmax.xlane.f32.xlu0 %v846
      %v848 = vpop.xlane.xlu0 %847
      %v849 = vsel %vm836, %v822, -inf
      %850 = vmax.xlane.f32.xlu0 %v849
      %v851 = vpop.xlane.xlu0 %850
      %v852 = vsel %vm836, %v825, -inf
      %853 = vmax.xlane.f32.xlu0 %v852
      %v854 = vpop.xlane.xlu0 %853
      %v855 = vsel %vm836, %v830, -inf
      %856 = vmax.xlane.f32.xlu0 %v855
      %v857 = vpop.xlane.xlu0 %856
      %v858 = vsel %vm836, %v833, -inf
      %859 = vmax.xlane.f32.xlu0 %v858
      %v860 = vpop.xlane.xlu0 %859
      %v861 = vsub.f32 %v806, %v839
      %v862 = vsub.f32 %v809, %v842
      %v863 = vsub.f32 %v814, %v845
      %v864 = vsub.f32 %v817, %v848
      %v865 = vsub.f32 %v822, %v851
      %v866 = vsub.f32 %v825, %v854
      %v867 = vsub.f32 %v830, %v857
      %v868 = vsub.f32 %v833, %v860
      %v869 = vmul.f32 %v861, 1.442695
      %v870 = vpow.pop %v869
      %v871 = vmul.f32 %v862, 1.442695
      %v872 = vpow.pop %v871
      %v873 = vmul.f32 %v863, 1.442695
      %v874 = vpow.pop %v873
      %v875 = vmul.f32 %v864, 1.442695
      %v876 = vpow.pop %v875
      %v877 = vmul.f32 %v865, 1.442695
      %v878 = vpow.pop %v877
      %v879 = vmul.f32 %v866, 1.442695
      %v880 = vpow.pop %v879
      %v881 = vmul.f32 %v867, 1.442695
      %v882 = vpow.pop %v881
      %v883 = vmul.f32 %v868, 1.442695
      %v884 = vpow.pop %v883
      %v885 = vsel %vm836, %v870, 0.0
      %886 = vadd.xlane.f32.xlu0 %v885
      %v887 = vpop.xlane.xlu0 %886
      %v888 = vsel %vm836, %v872, 0.0
      %889 = vadd.xlane.f32.xlu0 %v888
      %v890 = vpop.xlane.xlu0 %889
      %v891 = vsel %vm836, %v874, 0.0
      %892 = vadd.xlane.f32.xlu0 %v891
      %v893 = vpop.xlane.xlu0 %892
      %v894 = vsel %vm836, %v876, 0.0
      %895 = vadd.xlane.f32.xlu0 %v894
      %v896 = vpop.xlane.xlu0 %895
      %v897 = vsel %vm836, %v878, 0.0
      %898 = vadd.xlane.f32.xlu0 %v897
      %v899 = vpop.xlane.xlu0 %898
      %v900 = vsel %vm836, %v880, 0.0
      %901 = vadd.xlane.f32.xlu0 %v900
      %v902 = vpop.xlane.xlu0 %901
      %v903 = vsel %vm836, %v882, 0.0
      %904 = vadd.xlane.f32.xlu0 %v903
      %v905 = vpop.xlane.xlu0 %904
      %v906 = vsel %vm836, %v884, 0.0
      %907 = vadd.xlane.f32.xlu0 %v906
      %v908 = vpop.xlane.xlu0 %907
      %v909 = vrcp.pop %v887
      %v910 = vrcp.pop %v890
      %v911 = vrcp.pop %v893
      %v912 = vrcp.pop %v896
      %v913 = vrcp.pop %v899
      %v914 = vrcp.pop %v902
      %v915 = vrcp.pop %v905
      %v916 = vrcp.pop %v908
      %v917 = vmul.f32 %v870, %v909
      %v918 = vmul.f32 %v872, %v910
      %v919 = vmul.f32 %v874, %v911
      %v920 = vmul.f32 %v876, %v912
      %v921 = vmul.f32 %v878, %v913
      %v922 = vmul.f32 %v880, %v914
      %v923 = vmul.f32 %v882, %v915
      %v924 = vmul.f32 %v884, %v916
      %v925 = vpack.c.bf16 %v918, %v917
      %v926 = vpack.c.bf16 %v920, %v919
      %v927 = vpack.c.bf16 %v922, %v921
      %v928 = vpack.c.bf16 %v924, %v923
      %v930 = vsel %vm836, %v925, 0
      %v933 = vsel %vm836, %v926, 0
      %v936 = vsel %vm836, %v927, 0
      %v939 = vsel %vm836, %v928, 0
      %941 = vmatprep.subr.bf16.mxu0 0
      %942 = vmatpush1.bf16.msra.mxu0 %v742
      %943 = vmatprep.subr.bf16.mxu0 0
      %944 = vmatpush1.bf16.msra.mxu0 %v743
      %945 = vmatprep.subr.bf16.mxu0 0
      %946 = vmatpush1.bf16.msra.mxu0 %v744
      %947 = vmatprep.subr.bf16.mxu0 0
      %948 = vmatpush1.bf16.msra.mxu0 %v745
      %949 = vmatprep.subr.bf16.mxu0 0
      %950 = vmatpush1.bf16.msra.mxu0 0
      %951 = vmatprep.subr.bf16.mxu0 0
      %952 = vmatpush1.bf16.msra.mxu0 0
      %953 = vmatprep.subr.bf16.mxu0 0
      %954 = vmatpush1.bf16.msra.mxu0 0
      %955 = vmatprep.subr.bf16.mxu0 0
      %956 = vmatpush1.bf16.msra.mxu0 0
      %957 = vmatprep.subr.bf16.mxu0 0
      %958 = vmatpush1.bf16.msra.mxu0 0
      %959 = vmatprep.subr.bf16.mxu0 0
      %960 = vmatpush1.bf16.msra.mxu0 0
      %961 = vmatprep.subr.bf16.mxu0 0
      %962 = vmatpush1.bf16.msra.mxu0 0
      %963 = vmatprep.subr.bf16.mxu0 0
      %964 = vmatpush1.bf16.msra.mxu0 0
      %965 = vmatprep.subr.bf16.mxu0 0
      %966 = vmatpush1.bf16.msra.mxu0 0
      %967 = vmatprep.subr.bf16.mxu0 0
      %968 = vmatpush1.bf16.msra.mxu0 0
      %969 = vmatprep.subr.bf16.mxu0 0
      %970 = vmatpush1.bf16.msra.mxu0 0
      %971 = vmatprep.subr.bf16.mxu0 0
      %972 = vmatpush1.bf16.msra.mxu0 0
      %973 = vmatprep.mubr.bf16.mxu0 0
      %974 = vmatmul.mubr.bf16.gmra.mrb[0].mxu0 %v930
      %v975 = vpop.f32.mrb[0].mxu0
      %v976 = vadd.f32 0.0, %v975
      %v977 = vpop.f32.mrb[0].mxu0
      %v978 = vpop.f32.mrb[0].mxu0
      %v979 = vadd.f32 0.0, %v978
      %v980 = vpop.f32.mrb[0].mxu0
      %981 = vmatprep.mubr.bf16.mxu0 0
      %982 = vmatmul.mubr.bf16.gmra.mrb[0].mxu0 %v933
      %v983 = vpop.f32.mrb[0].mxu0
      %v984 = vadd.f32 0.0, %v983
      %v985 = vpop.f32.mrb[0].mxu0
      %v986 = vpop.f32.mrb[0].mxu0
      %v987 = vadd.f32 0.0, %v986
      %v988 = vpop.f32.mrb[0].mxu0
      %989 = vmatprep.mubr.bf16.mxu0 0
      %990 = vmatmul.mubr.bf16.gmra.mrb[0].mxu0 %v936
      %v991 = vpop.f32.mrb[0].mxu0
      %v992 = vadd.f32 0.0, %v991
      %v993 = vpop.f32.mrb[0].mxu0
      %v994 = vpop.f32.mrb[0].mxu0
      %v995 = vadd.f32 0.0, %v994
      %v996 = vpop.f32.mrb[0].mxu0
      %997 = vmatprep.mubr.bf16.mxu0 0
      %998 = vmatmul.mubr.bf16.gmra.mrb[0].mxu0 %v939
      %v999 = vpop.f32.mrb[0].mxu0
      %v1000 = vadd.f32 0.0, %v999
      %v1001 = vpop.f32.mrb[0].mxu0
      %v1002 = vpop.f32.mrb[0].mxu0
      %v1003 = vadd.f32 0.0, %v1002
      %v1004 = vpop.f32.mrb[0].mxu0
      %1005 = vdwg.mxu0
      %1010 = vrot.lane.b32.xlu0 %v734, 96
      %v1011 = vpop.permute.xlu0 %1010
      %1012 = vrot.lane.b32.xlu0 %v735, 96
      %v1013 = vpop.permute.xlu0 %1012
      %1014 = vrot.lane.b32.xlu0 %v736, 96
      %v1015 = vpop.permute.xlu0 %1014
      %1016 = vrot.lane.b32.xlu0 %v737, 96
      %v1017 = vpop.permute.xlu0 %1016
      %1022 = vrot.lane.b32.xlu0 %v738, 96
      %v1023 = vpop.permute.xlu0 %1022
      %1024 = vrot.lane.b32.xlu0 %v739, 96
      %v1025 = vpop.permute.xlu0 %1024
      %1026 = vrot.lane.b32.xlu0 %v740, 96
      %v1027 = vpop.permute.xlu0 %1026
      %1028 = vrot.lane.b32.xlu0 %v741, 96
      %v1029 = vpop.permute.xlu0 %1028
      %v1031 = vsel %vm746, %v1011, 0
      %v1034 = vsel %vm746, %v1013, 0
      %v1037 = vsel %vm746, %v1015, 0
      %v1040 = vsel %vm746, %v1017, 0
      %v1043 = vsel %vm746, %v1023, 0
      %v1046 = vsel %vm746, %v1025, 0
      %v1049 = vsel %vm746, %v1027, 0
      %v1052 = vsel %vm746, %v1029, 0
      %1054 = vmatprep.subr.bf16.mxu0 0
      %1055 = vmatpush1.bf16.xpose.msra.mxu0 %v1043
      %1056 = vmatprep.subr.bf16.mxu0 0
      %1057 = vmatpush1.bf16.xpose.msra.mxu0 %v1046
      %1058 = vmatprep.subr.bf16.mxu0 0
      %1059 = vmatpush1.bf16.xpose.msra.mxu0 %v1049
      %1060 = vmatprep.subr.bf16.mxu0 0
      %1061 = vmatpush1.bf16.xpose.msra.mxu0 %v1052
      %1062 = vmatprep.subr.bf16.mxu0 0
      %1063 = vmatpush1.bf16.xpose.msra.mxu0 0
      %1064 = vmatprep.subr.bf16.mxu0 0
      %1065 = vmatpush1.bf16.xpose.msra.mxu0 0
      %1066 = vmatprep.subr.bf16.mxu0 0
      %1067 = vmatpush1.bf16.xpose.msra.mxu0 0
      %1068 = vmatprep.subr.bf16.mxu0 0
      %1069 = vmatpush1.bf16.xpose.msra.mxu0 0
      %1070 = vmatprep.subr.bf16.mxu0 0
      %1071 = vmatpush1.bf16.xpose.msra.mxu0 0
      %1072 = vmatprep.subr.bf16.mxu0 0
      %1073 = vmatpush1.bf16.xpose.msra.mxu0 0
      %1074 = vmatprep.subr.bf16.mxu0 0
      %1075 = vmatpush1.bf16.xpose.msra.mxu0 0
      %1076 = vmatprep.subr.bf16.mxu0 0
      %1077 = vmatpush1.bf16.xpose.msra.mxu0 0
      %1078 = vmatprep.subr.bf16.mxu0 0
      %1079 = vmatpush1.bf16.xpose.msra.mxu0 0
      %1080 = vmatprep.subr.bf16.mxu0 0
      %1081 = vmatpush1.bf16.xpose.msra.mxu0 0
      %1082 = vmatprep.subr.bf16.mxu0 0
      %1083 = vmatpush1.bf16.xpose.msra.mxu0 0
      %1084 = vmatprep.subr.bf16.mxu0 0
      %1085 = vmatpush1.bf16.xpose.msra.mxu0 0
      %1086 = vmatprep.mubr.bf16.mxu0 0
      %1087 = vmatmul.mubr.bf16.gmra.mrb[0].mxu0 %v1031
      %v1088 = vpop.f32.mrb[0].mxu0
      %v1089 = vadd.f32 0.0, %v1088
      %v1090 = vpop.f32.mrb[0].mxu0
      %v1091 = vpop.f32.mrb[0].mxu0
      %v1092 = vadd.f32 0.0, %v1091
      %v1093 = vpop.f32.mrb[0].mxu0
      %1094 = vmatprep.mubr.bf16.mxu0 0
      %1095 = vmatmul.mubr.bf16.gmra.mrb[0].mxu0 %v1034
      %v1096 = vpop.f32.mrb[0].mxu0
      %v1097 = vadd.f32 0.0, %v1096
      %v1098 = vpop.f32.mrb[0].mxu0
      %v1099 = vpop.f32.mrb[0].mxu0
      %v1100 = vadd.f32 0.0, %v1099
      %v1101 = vpop.f32.mrb[0].mxu0
      %1102 = vmatprep.mubr.bf16.mxu0 0
      %1103 = vmatmul.mubr.bf16.gmra.mrb[0].mxu0 %v1037
      %v1104 = vpop.f32.mrb[0].mxu0
      %v1105 = vadd.f32 0.0, %v1104
      %v1106 = vpop.f32.mrb[0].mxu0
      %v1107 = vpop.f32.mrb[0].mxu0
      %v1108 = vadd.f32 0.0, %v1107
      %v1109 = vpop.f32.mrb[0].mxu0
      %1110 = vmatprep.mubr.bf16.mxu0 0
      %1111 = vmatmul.mubr.bf16.gmra.mrb[0].mxu0 %v1040
      %v1112 = vpop.f32.mrb[0].mxu0
      %v1113 = vadd.f32 0.0, %v1112
      %v1114 = vpop.f32.mrb[0].mxu0
      %v1115 = vpop.f32.mrb[0].mxu0
      %v1116 = vadd.f32 0.0, %v1115
      %v1117 = vpop.f32.mrb[0].mxu0
      %1118 = vdwg.mxu0
      %v1119 = vsel %vm836, %v1089, -inf
      %1120 = vmax.xlane.f32.xlu0 %v1119
      %v1121 = vpop.xlane.xlu0 %1120
      %v1122 = vsel %vm836, %v1092, -inf
      %1123 = vmax.xlane.f32.xlu0 %v1122
      %v1124 = vpop.xlane.xlu0 %1123
      %v1125 = vsel %vm836, %v1097, -inf
      %1126 = vmax.xlane.f32.xlu0 %v1125
      %v1127 = vpop.xlane.xlu0 %1126
      %v1128 = vsel %vm836, %v1100, -inf
      %1129 = vmax.xlane.f32.xlu0 %v1128
      %v1130 = vpop.xlane.xlu0 %1129
      %v1131 = vsel %vm836, %v1105, -inf
      %1132 = vmax.xlane.f32.xlu0 %v1131
      %v1133 = vpop.xlane.xlu0 %1132
      %v1134 = vsel %vm836, %v1108, -inf
      %1135 = vmax.xlane.f32.xlu0 %v1134
      %v1136 = vpop.xlane.xlu0 %1135
      %v1137 = vsel %vm836, %v1113, -inf
      %1138 = vmax.xlane.f32.xlu0 %v1137
      %v1139 = vpop.xlane.xlu0 %1138
      %v1140 = vsel %vm836, %v1116, -inf
      %1141 = vmax.xlane.f32.xlu0 %v1140
      %v1142 = vpop.xlane.xlu0 %1141
      %v1143 = vsub.f32 %v1089, %v1121
      %v1144 = vsub.f32 %v1092, %v1124
      %v1145 = vsub.f32 %v1097, %v1127
      %v1146 = vsub.f32 %v1100, %v1130
      %v1147 = vsub.f32 %v1105, %v1133
      %v1148 = vsub.f32 %v1108, %v1136
      %v1149 = vsub.f32 %v1113, %v1139
      %v1150 = vsub.f32 %v1116, %v1142
      %v1151 = vmul.f32 %v1143, 1.442695
      %v1152 = vpow.pop %v1151
      %v1153 = vmul.f32 %v1144, 1.442695
      %v1154 = vpow.pop %v1153
      %v1155 = vmul.f32 %v1145, 1.442695
      %v1156 = vpow.pop %v1155
      %v1157 = vmul.f32 %v1146, 1.442695
      %v1158 = vpow.pop %v1157
      %v1159 = vmul.f32 %v1147, 1.442695
      %v1160 = vpow.pop %v1159
      %v1161 = vmul.f32 %v1148, 1.442695
      %v1162 = vpow.pop %v1161
      %v1163 = vmul.f32 %v1149, 1.442695
      %v1164 = vpow.pop %v1163
      %v1165 = vmul.f32 %v1150, 1.442695
      %v1166 = vpow.pop %v1165
      %v1167 = vsel %vm836, %v1152, 0.0
      %1168 = vadd.xlane.f32.xlu0 %v1167
      %v1169 = vpop.xlane.xlu0 %1168
      %v1170 = vsel %vm836, %v1154, 0.0
      %1171 = vadd.xlane.f32.xlu0 %v1170
      %v1172 = vpop.xlane.xlu0 %1171
      %v1173 = vsel %vm836, %v1156, 0.0
      %1174 = vadd.xlane.f32.xlu0 %v1173
      %v1175 = vpop.xlane.xlu0 %1174
      %v1176 = vsel %vm836, %v1158, 0.0
      %1177 = vadd.xlane.f32.xlu0 %v1176
      %v1178 = vpop.xlane.xlu0 %1177
      %v1179 = vsel %vm836, %v1160, 0.0
      %1180 = vadd.xlane.f32.xlu0 %v1179
      %v1181 = vpop.xlane.xlu0 %1180
      %v1182 = vsel %vm836, %v1162, 0.0
      %1183 = vadd.xlane.f32.xlu0 %v1182
      %v1184 = vpop.xlane.xlu0 %1183
      %v1185 = vsel %vm836, %v1164, 0.0
      %1186 = vadd.xlane.f32.xlu0 %v1185
      %v1187 = vpop.xlane.xlu0 %1186
      %v1188 = vsel %vm836, %v1166, 0.0
      %1189 = vadd.xlane.f32.xlu0 %v1188
      %v1190 = vpop.xlane.xlu0 %1189
      %v1191 = vrcp.pop %v1169
      %v1192 = vrcp.pop %v1172
      %v1193 = vrcp.pop %v1175
      %v1194 = vrcp.pop %v1178
      %v1195 = vrcp.pop %v1181
      %v1196 = vrcp.pop %v1184
      %v1197 = vrcp.pop %v1187
      %v1198 = vrcp.pop %v1190
      %v1199 = vmul.f32 %v1152, %v1191
      %v1200 = vmul.f32 %v1154, %v1192
      %v1201 = vmul.f32 %v1156, %v1193
      %v1202 = vmul.f32 %v1158, %v1194
      %v1203 = vmul.f32 %v1160, %v1195
      %v1204 = vmul.f32 %v1162, %v1196
      %v1205 = vmul.f32 %v1164, %v1197
      %v1206 = vmul.f32 %v1166, %v1198
      %v1207 = vpack.c.bf16 %v1200, %v1199
      %v1208 = vpack.c.bf16 %v1202, %v1201
      %v1209 = vpack.c.bf16 %v1204, %v1203
      %v1210 = vpack.c.bf16 %v1206, %v1205
      %1215 = vrot.lane.b32.xlu0 %v742, 96
      %v1216 = vpop.permute.xlu0 %1215
      %1217 = vrot.lane.b32.xlu0 %v743, 96
      %v1218 = vpop.permute.xlu0 %1217
      %1219 = vrot.lane.b32.xlu0 %v744, 96
      %v1220 = vpop.permute.xlu0 %1219
      %1221 = vrot.lane.b32.xlu0 %v745, 96
      %v1222 = vpop.permute.xlu0 %1221
      %v1228 = vsel %vm836, %v1207, 0
      %v1231 = vsel %vm836, %v1208, 0
      %v1234 = vsel %vm836, %v1209, 0
      %v1237 = vsel %vm836, %v1210, 0
      %1239 = vmatprep.subr.bf16.mxu0 0
      %1240 = vmatpush1.bf16.msra.mxu0 %v1216
      %1241 = vmatprep.subr.bf16.mxu0 0
      %1242 = vmatpush1.bf16.msra.mxu0 %v1218
      %1243 = vmatprep.subr.bf16.mxu0 0
      %1244 = vmatpush1.bf16.msra.mxu0 %v1220
      %1245 = vmatprep.subr.bf16.mxu0 0
      %1246 = vmatpush1.bf16.msra.mxu0 %v1222
      %1247 = vmatprep.subr.bf16.mxu0 0
      %1248 = vmatpush1.bf16.msra.mxu0 0
      %1249 = vmatprep.subr.bf16.mxu0 0
      %1250 = vmatpush1.bf16.msra.mxu0 0
      %1251 = vmatprep.subr.bf16.mxu0 0
      %1252 = vmatpush1.bf16.msra.mxu0 0
      %1253 = vmatprep.subr.bf16.mxu0 0
      %1254 = vmatpush1.bf16.msra.mxu0 0
      %1255 = vmatprep.subr.bf16.mxu0 0
      %1256 = vmatpush1.bf16.msra.mxu0 0
      %1257 = vmatprep.subr.bf16.mxu0 0
      %1258 = vmatpush1.bf16.msra.mxu0 0
      %1259 = vmatprep.subr.bf16.mxu0 0
      %1260 = vmatpush1.bf16.msra.mxu0 0
      %1261 = vmatprep.subr.bf16.mxu0 0
      %1262 = vmatpush1.bf16.msra.mxu0 0
      %1263 = vmatprep.subr.bf16.mxu0 0
      %1264 = vmatpush1.bf16.msra.mxu0 0
      %1265 = vmatprep.subr.bf16.mxu0 0
      %1266 = vmatpush1.bf16.msra.mxu0 0
      %1267 = vmatprep.subr.bf16.mxu0 0
      %1268 = vmatpush1.bf16.msra.mxu0 0
      %1269 = vmatprep.subr.bf16.mxu0 0
      %1270 = vmatpush1.bf16.msra.mxu0 0
      %1271 = vmatprep.mubr.bf16.mxu0 0
      %1272 = vmatmul.mubr.bf16.gmra.mrb[0].mxu0 %v1228
      %v1273 = vpop.f32.mrb[0].mxu0
      %v1274 = vadd.f32 0.0, %v1273
      %v1275 = vpop.f32.mrb[0].mxu0
      %v1276 = vpop.f32.mrb[0].mxu0
      %v1277 = vadd.f32 0.0, %v1276
      %v1278 = vpop.f32.mrb[0].mxu0
      %1279 = vmatprep.mubr.bf16.mxu0 0
      %1280 = vmatmul.mubr.bf16.gmra.mrb[0].mxu0 %v1231
      %v1281 = vpop.f32.mrb[0].mxu0
      %v1282 = vadd.f32 0.0, %v1281
      %v1283 = vpop.f32.mrb[0].mxu0
      %v1284 = vpop.f32.mrb[0].mxu0
      %v1285 = vadd.f32 0.0, %v1284
      %v1286 = vpop.f32.mrb[0].mxu0
      %1287 = vmatprep.mubr.bf16.mxu0 0
      %1288 = vmatmul.mubr.bf16.gmra.mrb[0].mxu0 %v1234
      %v1289 = vpop.f32.mrb[0].mxu0
      %v1290 = vadd.f32 0.0, %v1289
      %v1291 = vpop.f32.mrb[0].mxu0
      %v1292 = vpop.f32.mrb[0].mxu0
      %v1293 = vadd.f32 0.0, %v1292
      %v1294 = vpop.f32.mrb[0].mxu0
      %1295 = vmatprep.mubr.bf16.mxu0 0
      %1296 = vmatmul.mubr.bf16.gmra.mrb[0].mxu0 %v1237
      %v1297 = vpop.f32.mrb[0].mxu0
      %v1298 = vadd.f32 0.0, %v1297
      %v1299 = vpop.f32.mrb[0].mxu0
      %v1300 = vpop.f32.mrb[0].mxu0
      %v1301 = vadd.f32 0.0, %v1300
      %v1302 = vpop.f32.mrb[0].mxu0
      %1303 = vdwg.mxu0
      %1304 = vrot.lane.b32.xlu0 %v734, 64
      %v1305 = vpop.permute.xlu0 %1304
      %1306 = vrot.lane.b32.xlu0 %v735, 64
      %v1307 = vpop.permute.xlu0 %1306
      %1308 = vrot.lane.b32.xlu0 %v736, 64
      %v1309 = vpop.permute.xlu0 %1308
      %1310 = vrot.lane.b32.xlu0 %v737, 64
      %v1311 = vpop.permute.xlu0 %1310
      %1312 = vrot.lane.b32.xlu0 %v738, 64
      %v1313 = vpop.permute.xlu0 %1312
      %1314 = vrot.lane.b32.xlu0 %v739, 64
      %v1315 = vpop.permute.xlu0 %1314
      %1316 = vrot.lane.b32.xlu0 %v740, 64
      %v1317 = vpop.permute.xlu0 %1316
      %1318 = vrot.lane.b32.xlu0 %v741, 64
      %v1319 = vpop.permute.xlu0 %1318
      %v1321 = vsel %vm746, %v1305, 0
      %v1324 = vsel %vm746, %v1307, 0
      %v1327 = vsel %vm746, %v1309, 0
      %v1330 = vsel %vm746, %v1311, 0
      %v1333 = vsel %vm746, %v1313, 0
      %v1336 = vsel %vm746, %v1315, 0
      %v1339 = vsel %vm746, %v1317, 0
      %v1342 = vsel %vm746, %v1319, 0
      %1344 = vmatprep.subr.bf16.mxu0 0
      %1345 = vmatpush1.bf16.xpose.msra.mxu0 %v1333
      %1346 = vmatprep.subr.bf16.mxu0 0
      %1347 = vmatpush1.bf16.xpose.msra.mxu0 %v1336
      %1348 = vmatprep.subr.bf16.mxu0 0
      %1349 = vmatpush1.bf16.xpose.msra.mxu0 %v1339
      %1350 = vmatprep.subr.bf16.mxu0 0
      %1351 = vmatpush1.bf16.xpose.msra.mxu0 %v1342
      %1352 = vmatprep.subr.bf16.mxu0 0
      %1353 = vmatpush1.bf16.xpose.msra.mxu0 0
      %1354 = vmatprep.subr.bf16.mxu0 0
      %1355 = vmatpush1.bf16.xpose.msra.mxu0 0
      %1356 = vmatprep.subr.bf16.mxu0 0
      %1357 = vmatpush1.bf16.xpose.msra.mxu0 0
      %1358 = vmatprep.subr.bf16.mxu0 0
      %1359 = vmatpush1.bf16.xpose.msra.mxu0 0
      %1360 = vmatprep.subr.bf16.mxu0 0
      %1361 = vmatpush1.bf16.xpose.msra.mxu0 0
      %1362 = vmatprep.subr.bf16.mxu0 0
      %1363 = vmatpush1.bf16.xpose.msra.mxu0 0
      %1364 = vmatprep.subr.bf16.mxu0 0
      %1365 = vmatpush1.bf16.xpose.msra.mxu0 0
      %1366 = vmatprep.subr.bf16.mxu0 0
      %1367 = vmatpush1.bf16.xpose.msra.mxu0 0
      %1368 = vmatprep.subr.bf16.mxu0 0
      %1369 = vmatpush1.bf16.xpose.msra.mxu0 0
      %1370 = vmatprep.subr.bf16.mxu0 0
      %1371 = vmatpush1.bf16.xpose.msra.mxu0 0
      %1372 = vmatprep.subr.bf16.mxu0 0
      %1373 = vmatpush1.bf16.xpose.msra.mxu0 0
      %1374 = vmatprep.subr.bf16.mxu0 0
      %1375 = vmatpush1.bf16.xpose.msra.mxu0 0
      %1376 = vmatprep.mubr.bf16.mxu0 0
      %1377 = vmatmul.mubr.bf16.gmra.mrb[0].mxu0 %v1321
      %v1378 = vpop.f32.mrb[0].mxu0
      %v1379 = vadd.f32 0.0, %v1378
      %v1380 = vpop.f32.mrb[0].mxu0
      %v1381 = vpop.f32.mrb[0].mxu0
      %v1382 = vadd.f32 0.0, %v1381
      %v1383 = vpop.f32.mrb[0].mxu0
      %1384 = vmatprep.mubr.bf16.mxu0 0
      %1385 = vmatmul.mubr.bf16.gmra.mrb[0].mxu0 %v1324
      %v1386 = vpop.f32.mrb[0].mxu0
      %v1387 = vadd.f32 0.0, %v1386
      %v1388 = vpop.f32.mrb[0].mxu0
      %v1389 = vpop.f32.mrb[0].mxu0
      %v1390 = vadd.f32 0.0, %v1389
      %v1391 = vpop.f32.mrb[0].mxu0
      %1392 = vmatprep.mubr.bf16.mxu0 0
      %1393 = vmatmul.mubr.bf16.gmra.mrb[0].mxu0 %v1327
      %v1394 = vpop.f32.mrb[0].mxu0
      %v1395 = vadd.f32 0.0, %v1394
      %v1396 = vpop.f32.mrb[0].mxu0
      %v1397 = vpop.f32.mrb[0].mxu0
      %v1398 = vadd.f32 0.0, %v1397
      %v1399 = vpop.f32.mrb[0].mxu0
      %1400 = vmatprep.mubr.bf16.mxu0 0
      %1401 = vmatmul.mubr.bf16.gmra.mrb[0].mxu0 %v1330
      %v1402 = vpop.f32.mrb[0].mxu0
      %v1403 = vadd.f32 0.0, %v1402
      %v1404 = vpop.f32.mrb[0].mxu0
      %v1405 = vpop.f32.mrb[0].mxu0
      %v1406 = vadd.f32 0.0, %v1405
      %v1407 = vpop.f32.mrb[0].mxu0
      %1408 = vdwg.mxu0
      %v1409 = vsel %vm836, %v1379, -inf
      %1410 = vmax.xlane.f32.xlu0 %v1409
      %v1411 = vpop.xlane.xlu0 %1410
      %v1412 = vsel %vm836, %v1382, -inf
      %1413 = vmax.xlane.f32.xlu0 %v1412
      %v1414 = vpop.xlane.xlu0 %1413
      %v1415 = vsel %vm836, %v1387, -inf
      %1416 = vmax.xlane.f32.xlu0 %v1415
      %v1417 = vpop.xlane.xlu0 %1416
      %v1418 = vsel %vm836, %v1390, -inf
      %1419 = vmax.xlane.f32.xlu0 %v1418
      %v1420 = vpop.xlane.xlu0 %1419
      %v1421 = vsel %vm836, %v1395, -inf
      %1422 = vmax.xlane.f32.xlu0 %v1421
      %v1423 = vpop.xlane.xlu0 %1422
      %v1424 = vsel %vm836, %v1398, -inf
      %1425 = vmax.xlane.f32.xlu0 %v1424
      %v1426 = vpop.xlane.xlu0 %1425
      %v1427 = vsel %vm836, %v1403, -inf
      %1428 = vmax.xlane.f32.xlu0 %v1427
      %v1429 = vpop.xlane.xlu0 %1428
      %v1430 = vsel %vm836, %v1406, -inf
      %1431 = vmax.xlane.f32.xlu0 %v1430
      %v1432 = vpop.xlane.xlu0 %1431
      %v1433 = vsub.f32 %v1379, %v1411
      %v1434 = vsub.f32 %v1382, %v1414
      %v1435 = vsub.f32 %v1387, %v1417
      %v1436 = vsub.f32 %v1390, %v1420
      %v1437 = vsub.f32 %v1395, %v1423
      %v1438 = vsub.f32 %v1398, %v1426
      %v1439 = vsub.f32 %v1403, %v1429
      %v1440 = vsub.f32 %v1406, %v1432
      %v1441 = vmul.f32 %v1433, 1.442695
      %v1442 = vpow.pop %v1441
      %v1443 = vmul.f32 %v1434, 1.442695
      %v1444 = vpow.pop %v1443
      %v1445 = vmul.f32 %v1435, 1.442695
      %v1446 = vpow.pop %v1445
      %v1447 = vmul.f32 %v1436, 1.442695
      %v1448 = vpow.pop %v1447
      %v1449 = vmul.f32 %v1437, 1.442695
      %v1450 = vpow.pop %v1449
      %v1451 = vmul.f32 %v1438, 1.442695
      %v1452 = vpow.pop %v1451
      %v1453 = vmul.f32 %v1439, 1.442695
      %v1454 = vpow.pop %v1453
      %v1455 = vmul.f32 %v1440, 1.442695
      %v1456 = vpow.pop %v1455
      %v1457 = vsel %vm836, %v1442, 0.0
      %1458 = vadd.xlane.f32.xlu0 %v1457
      %v1459 = vpop.xlane.xlu0 %1458
      %v1460 = vsel %vm836, %v1444, 0.0
      %1461 = vadd.xlane.f32.xlu0 %v1460
      %v1462 = vpop.xlane.xlu0 %1461
      %v1463 = vsel %vm836, %v1446, 0.0
      %1464 = vadd.xlane.f32.xlu0 %v1463
      %v1465 = vpop.xlane.xlu0 %1464
      %v1466 = vsel %vm836, %v1448, 0.0
      %1467 = vadd.xlane.f32.xlu0 %v1466
      %v1468 = vpop.xlane.xlu0 %1467
      %v1469 = vsel %vm836, %v1450, 0.0
      %1470 = vadd.xlane.f32.xlu0 %v1469
      %v1471 = vpop.xlane.xlu0 %1470
      %v1472 = vsel %vm836, %v1452, 0.0
      %1473 = vadd.xlane.f32.xlu0 %v1472
      %v1474 = vpop.xlane.xlu0 %1473
      %v1475 = vsel %vm836, %v1454, 0.0
      %1476 = vadd.xlane.f32.xlu0 %v1475
      %v1477 = vpop.xlane.xlu0 %1476
      %v1478 = vsel %vm836, %v1456, 0.0
      %1479 = vadd.xlane.f32.xlu0 %v1478
      %v1480 = vpop.xlane.xlu0 %1479
      %v1481 = vrcp.pop %v1459
      %v1482 = vrcp.pop %v1462
      %v1483 = vrcp.pop %v1465
      %v1484 = vrcp.pop %v1468
      %v1485 = vrcp.pop %v1471
      %v1486 = vrcp.pop %v1474
      %v1487 = vrcp.pop %v1477
      %v1488 = vrcp.pop %v1480
      %v1489 = vmul.f32 %v1442, %v1481
      %v1490 = vmul.f32 %v1444, %v1482
      %v1491 = vmul.f32 %v1446, %v1483
      %v1492 = vmul.f32 %v1448, %v1484
      %v1493 = vmul.f32 %v1450, %v1485
      %v1494 = vmul.f32 %v1452, %v1486
      %v1495 = vmul.f32 %v1454, %v1487
      %v1496 = vmul.f32 %v1456, %v1488
      %v1497 = vpack.c.bf16 %v1490, %v1489
      %v1498 = vpack.c.bf16 %v1492, %v1491
      %v1499 = vpack.c.bf16 %v1494, %v1493
      %v1500 = vpack.c.bf16 %v1496, %v1495
      %1501 = vrot.lane.b32.xlu0 %v742, 64
      %v1502 = vpop.permute.xlu0 %1501
      %1503 = vrot.lane.b32.xlu0 %v743, 64
      %v1504 = vpop.permute.xlu0 %1503
      %1505 = vrot.lane.b32.xlu0 %v744, 64
      %v1506 = vpop.permute.xlu0 %1505
      %1507 = vrot.lane.b32.xlu0 %v745, 64
      %v1508 = vpop.permute.xlu0 %1507
      %v1514 = vsel %vm836, %v1497, 0
      %v1517 = vsel %vm836, %v1498, 0
      %v1520 = vsel %vm836, %v1499, 0
      %v1523 = vsel %vm836, %v1500, 0
      %1525 = vmatprep.subr.bf16.mxu0 0
      %1526 = vmatpush1.bf16.msra.mxu0 %v1502
      %1527 = vmatprep.subr.bf16.mxu0 0
      %1528 = vmatpush1.bf16.msra.mxu0 %v1504
      %1529 = vmatprep.subr.bf16.mxu0 0
      %1530 = vmatpush1.bf16.msra.mxu0 %v1506
      %1531 = vmatprep.subr.bf16.mxu0 0
      %1532 = vmatpush1.bf16.msra.mxu0 %v1508
      %1533 = vmatprep.subr.bf16.mxu0 0
      %1534 = vmatpush1.bf16.msra.mxu0 0
      %1535 = vmatprep.subr.bf16.mxu0 0
      %1536 = vmatpush1.bf16.msra.mxu0 0
      %1537 = vmatprep.subr.bf16.mxu0 0
      %1538 = vmatpush1.bf16.msra.mxu0 0
      %1539 = vmatprep.subr.bf16.mxu0 0
      %1540 = vmatpush1.bf16.msra.mxu0 0
      %1541 = vmatprep.subr.bf16.mxu0 0
      %1542 = vmatpush1.bf16.msra.mxu0 0
      %1543 = vmatprep.subr.bf16.mxu0 0
      %1544 = vmatpush1.bf16.msra.mxu0 0
      %1545 = vmatprep.subr.bf16.mxu0 0
      %1546 = vmatpush1.bf16.msra.mxu0 0
      %1547 = vmatprep.subr.bf16.mxu0 0
      %1548 = vmatpush1.bf16.msra.mxu0 0
      %1549 = vmatprep.subr.bf16.mxu0 0
      %1550 = vmatpush1.bf16.msra.mxu0 0
      %1551 = vmatprep.subr.bf16.mxu0 0
      %1552 = vmatpush1.bf16.msra.mxu0 0
      %1553 = vmatprep.subr.bf16.mxu0 0
      %1554 = vmatpush1.bf16.msra.mxu0 0
      %1555 = vmatprep.subr.bf16.mxu0 0
      %1556 = vmatpush1.bf16.msra.mxu0 0
      %1557 = vmatprep.mubr.bf16.mxu0 0
      %1558 = vmatmul.mubr.bf16.gmra.mrb[0].mxu0 %v1514
      %v1559 = vpop.f32.mrb[0].mxu0
      %v1560 = vadd.f32 0.0, %v1559
      %v1561 = vpop.f32.mrb[0].mxu0
      %v1562 = vpop.f32.mrb[0].mxu0
      %v1563 = vadd.f32 0.0, %v1562
      %v1564 = vpop.f32.mrb[0].mxu0
      %1565 = vmatprep.mubr.bf16.mxu0 0
      %1566 = vmatmul.mubr.bf16.gmra.mrb[0].mxu0 %v1517
      %v1567 = vpop.f32.mrb[0].mxu0
      %v1568 = vadd.f32 0.0, %v1567
      %v1569 = vpop.f32.mrb[0].mxu0
      %v1570 = vpop.f32.mrb[0].mxu0
      %v1571 = vadd.f32 0.0, %v1570
      %v1572 = vpop.f32.mrb[0].mxu0
      %1573 = vmatprep.mubr.bf16.mxu0 0
      %1574 = vmatmul.mubr.bf16.gmra.mrb[0].mxu0 %v1520
      %v1575 = vpop.f32.mrb[0].mxu0
      %v1576 = vadd.f32 0.0, %v1575
      %v1577 = vpop.f32.mrb[0].mxu0
      %v1578 = vpop.f32.mrb[0].mxu0
      %v1579 = vadd.f32 0.0, %v1578
      %v1580 = vpop.f32.mrb[0].mxu0
      %1581 = vmatprep.mubr.bf16.mxu0 0
      %1582 = vmatmul.mubr.bf16.gmra.mrb[0].mxu0 %v1523
      %v1583 = vpop.f32.mrb[0].mxu0
      %v1584 = vadd.f32 0.0, %v1583
      %v1585 = vpop.f32.mrb[0].mxu0
      %v1586 = vpop.f32.mrb[0].mxu0
      %v1587 = vadd.f32 0.0, %v1586
      %v1588 = vpop.f32.mrb[0].mxu0
      %1589 = vdwg.mxu0
      %1590 = vrot.lane.b32.xlu0 %v734, 32
      %v1591 = vpop.permute.xlu0 %1590
      %1592 = vrot.lane.b32.xlu0 %v735, 32
      %v1593 = vpop.permute.xlu0 %1592
      %1594 = vrot.lane.b32.xlu0 %v736, 32
      %v1595 = vpop.permute.xlu0 %1594
      %1596 = vrot.lane.b32.xlu0 %v737, 32
      %v1597 = vpop.permute.xlu0 %1596
      %1598 = vrot.lane.b32.xlu0 %v738, 32
      %v1599 = vpop.permute.xlu0 %1598
      %1600 = vrot.lane.b32.xlu0 %v739, 32
      %v1601 = vpop.permute.xlu0 %1600
      %1602 = vrot.lane.b32.xlu0 %v740, 32
      %v1603 = vpop.permute.xlu0 %1602
      %1604 = vrot.lane.b32.xlu0 %v741, 32
      %v1605 = vpop.permute.xlu0 %1604
      %v1607 = vsel %vm746, %v1591, 0
      %v1610 = vsel %vm746, %v1593, 0
      %v1613 = vsel %vm746, %v1595, 0
      %v1616 = vsel %vm746, %v1597, 0
      %v1619 = vsel %vm746, %v1599, 0
      %v1622 = vsel %vm746, %v1601, 0
      %v1625 = vsel %vm746, %v1603, 0
      %v1628 = vsel %vm746, %v1605, 0
      %1630 = vmatprep.subr.bf16.mxu0 0
      %1631 = vmatpush1.bf16.xpose.msra.mxu0 %v1619
      %1632 = vmatprep.subr.bf16.mxu0 0
      %1633 = vmatpush1.bf16.xpose.msra.mxu0 %v1622
      %1634 = vmatprep.subr.bf16.mxu0 0
      %1635 = vmatpush1.bf16.xpose.msra.mxu0 %v1625
      %1636 = vmatprep.subr.bf16.mxu0 0
      %1637 = vmatpush1.bf16.xpose.msra.mxu0 %v1628
      %1638 = vmatprep.subr.bf16.mxu0 0
      %1639 = vmatpush1.bf16.xpose.msra.mxu0 0
      %1640 = vmatprep.subr.bf16.mxu0 0
      %1641 = vmatpush1.bf16.xpose.msra.mxu0 0
      %1642 = vmatprep.subr.bf16.mxu0 0
      %1643 = vmatpush1.bf16.xpose.msra.mxu0 0
      %1644 = vmatprep.subr.bf16.mxu0 0
      %1645 = vmatpush1.bf16.xpose.msra.mxu0 0
      %1646 = vmatprep.subr.bf16.mxu0 0
      %1647 = vmatpush1.bf16.xpose.msra.mxu0 0
      %1648 = vmatprep.subr.bf16.mxu0 0
      %1649 = vmatpush1.bf16.xpose.msra.mxu0 0
      %1650 = vmatprep.subr.bf16.mxu0 0
      %1651 = vmatpush1.bf16.xpose.msra.mxu0 0
      %1652 = vmatprep.subr.bf16.mxu0 0
      %1653 = vmatpush1.bf16.xpose.msra.mxu0 0
      %1654 = vmatprep.subr.bf16.mxu0 0
      %1655 = vmatpush1.bf16.xpose.msra.mxu0 0
      %1656 = vmatprep.subr.bf16.mxu0 0
      %1657 = vmatpush1.bf16.xpose.msra.mxu0 0
      %1658 = vmatprep.subr.bf16.mxu0 0
      %1659 = vmatpush1.bf16.xpose.msra.mxu0 0
      %1660 = vmatprep.subr.bf16.mxu0 0
      %1661 = vmatpush1.bf16.xpose.msra.mxu0 0
      %1662 = vmatprep.mubr.bf16.mxu0 0
      %1663 = vmatmul.mubr.bf16.gmra.mrb[0].mxu0 %v1607
      %v1664 = vpop.f32.mrb[0].mxu0
      %v1665 = vadd.f32 0.0, %v1664
      %v1666 = vpop.f32.mrb[0].mxu0
      %v1667 = vpop.f32.mrb[0].mxu0
      %v1668 = vadd.f32 0.0, %v1667
      %v1669 = vpop.f32.mrb[0].mxu0
      %1670 = vmatprep.mubr.bf16.mxu0 0
      %1671 = vmatmul.mubr.bf16.gmra.mrb[0].mxu0 %v1610
      %v1672 = vpop.f32.mrb[0].mxu0
      %v1673 = vadd.f32 0.0, %v1672
      %v1674 = vpop.f32.mrb[0].mxu0
      %v1675 = vpop.f32.mrb[0].mxu0
      %v1676 = vadd.f32 0.0, %v1675
      %v1677 = vpop.f32.mrb[0].mxu0
      %1678 = vmatprep.mubr.bf16.mxu0 0
      %1679 = vmatmul.mubr.bf16.gmra.mrb[0].mxu0 %v1613
      %v1680 = vpop.f32.mrb[0].mxu0
      %v1681 = vadd.f32 0.0, %v1680
      %v1682 = vpop.f32.mrb[0].mxu0
      %v1683 = vpop.f32.mrb[0].mxu0
      %v1684 = vadd.f32 0.0, %v1683
      %v1685 = vpop.f32.mrb[0].mxu0
      %1686 = vmatprep.mubr.bf16.mxu0 0
      %1687 = vmatmul.mubr.bf16.gmra.mrb[0].mxu0 %v1616
      %v1688 = vpop.f32.mrb[0].mxu0
      %v1689 = vadd.f32 0.0, %v1688
      %v1690 = vpop.f32.mrb[0].mxu0
      %v1691 = vpop.f32.mrb[0].mxu0
      %v1692 = vadd.f32 0.0, %v1691
      %v1693 = vpop.f32.mrb[0].mxu0
      %1694 = vdwg.mxu0
      %v1695 = vsel %vm836, %v1665, -inf
      %1696 = vmax.xlane.f32.xlu0 %v1695
      %v1697 = vpop.xlane.xlu0 %1696
      %v1698 = vsel %vm836, %v1668, -inf
      %1699 = vmax.xlane.f32.xlu0 %v1698
      %v1700 = vpop.xlane.xlu0 %1699
      %v1701 = vsel %vm836, %v1673, -inf
      %1702 = vmax.xlane.f32.xlu0 %v1701
      %v1703 = vpop.xlane.xlu0 %1702
      %v1704 = vsel %vm836, %v1676, -inf
      %1705 = vmax.xlane.f32.xlu0 %v1704
      %v1706 = vpop.xlane.xlu0 %1705
      %v1707 = vsel %vm836, %v1681, -inf
      %1708 = vmax.xlane.f32.xlu0 %v1707
      %v1709 = vpop.xlane.xlu0 %1708
      %v1710 = vsel %vm836, %v1684, -inf
      %1711 = vmax.xlane.f32.xlu0 %v1710
      %v1712 = vpop.xlane.xlu0 %1711
      %v1713 = vsel %vm836, %v1689, -inf
      %1714 = vmax.xlane.f32.xlu0 %v1713
      %v1715 = vpop.xlane.xlu0 %1714
      %v1716 = vsel %vm836, %v1692, -inf
      %1717 = vmax.xlane.f32.xlu0 %v1716
      %v1718 = vpop.xlane.xlu0 %1717
      %v1719 = vsub.f32 %v1665, %v1697
      %v1720 = vsub.f32 %v1668, %v1700
      %v1721 = vsub.f32 %v1673, %v1703
      %v1722 = vsub.f32 %v1676, %v1706
      %v1723 = vsub.f32 %v1681, %v1709
      %v1724 = vsub.f32 %v1684, %v1712
      %v1725 = vsub.f32 %v1689, %v1715
      %v1726 = vsub.f32 %v1692, %v1718
      %v1727 = vmul.f32 %v1719, 1.442695
      %v1728 = vpow.pop %v1727
      %v1729 = vmul.f32 %v1720, 1.442695
      %v1730 = vpow.pop %v1729
      %v1731 = vmul.f32 %v1721, 1.442695
      %v1732 = vpow.pop %v1731
      %v1733 = vmul.f32 %v1722, 1.442695
      %v1734 = vpow.pop %v1733
      %v1735 = vmul.f32 %v1723, 1.442695
      %v1736 = vpow.pop %v1735
      %v1737 = vmul.f32 %v1724, 1.442695
      %v1738 = vpow.pop %v1737
      %v1739 = vmul.f32 %v1725, 1.442695
      %v1740 = vpow.pop %v1739
      %v1741 = vmul.f32 %v1726, 1.442695
      %v1742 = vpow.pop %v1741
      %v1743 = vsel %vm836, %v1728, 0.0
      %1744 = vadd.xlane.f32.xlu0 %v1743
      %v1745 = vpop.xlane.xlu0 %1744
      %v1746 = vsel %vm836, %v1730, 0.0
      %1747 = vadd.xlane.f32.xlu0 %v1746
      %v1748 = vpop.xlane.xlu0 %1747
      %v1749 = vsel %vm836, %v1732, 0.0
      %1750 = vadd.xlane.f32.xlu0 %v1749
      %v1751 = vpop.xlane.xlu0 %1750
      %v1752 = vsel %vm836, %v1734, 0.0
      %1753 = vadd.xlane.f32.xlu0 %v1752
      %v1754 = vpop.xlane.xlu0 %1753
      %v1755 = vsel %vm836, %v1736, 0.0
      %1756 = vadd.xlane.f32.xlu0 %v1755
      %v1757 = vpop.xlane.xlu0 %1756
      %v1758 = vsel %vm836, %v1738, 0.0
      %1759 = vadd.xlane.f32.xlu0 %v1758
      %v1760 = vpop.xlane.xlu0 %1759
      %v1761 = vsel %vm836, %v1740, 0.0
      %1762 = vadd.xlane.f32.xlu0 %v1761
      %v1763 = vpop.xlane.xlu0 %1762
      %v1764 = vsel %vm836, %v1742, 0.0
      %1765 = vadd.xlane.f32.xlu0 %v1764
      %v1766 = vpop.xlane.xlu0 %1765
      %v1767 = vrcp.pop %v1745
      %v1768 = vrcp.pop %v1748
      %v1769 = vrcp.pop %v1751
      %v1770 = vrcp.pop %v1754
      %v1771 = vrcp.pop %v1757
      %v1772 = vrcp.pop %v1760
      %v1773 = vrcp.pop %v1763
      %v1774 = vrcp.pop %v1766
      %v1775 = vmul.f32 %v1728, %v1767
      %v1776 = vmul.f32 %v1730, %v1768
      %v1777 = vmul.f32 %v1732, %v1769
      %v1778 = vmul.f32 %v1734, %v1770
      %v1779 = vmul.f32 %v1736, %v1771
      %v1780 = vmul.f32 %v1738, %v1772
      %v1781 = vmul.f32 %v1740, %v1773
      %v1782 = vmul.f32 %v1742, %v1774
      %v1783 = vpack.c.bf16 %v1776, %v1775
      %v1784 = vpack.c.bf16 %v1778, %v1777
      %v1785 = vpack.c.bf16 %v1780, %v1779
      %v1786 = vpack.c.bf16 %v1782, %v1781
      %1787 = vrot.lane.b32.xlu0 %v742, 32
      %v1788 = vpop.permute.xlu0 %1787
      %1789 = vrot.lane.b32.xlu0 %v743, 32
      %v1790 = vpop.permute.xlu0 %1789
      %1791 = vrot.lane.b32.xlu0 %v744, 32
      %v1792 = vpop.permute.xlu0 %1791
      %1793 = vrot.lane.b32.xlu0 %v745, 32
      %v1794 = vpop.permute.xlu0 %1793
      %v1800 = vsel %vm836, %v1783, 0
      %v1803 = vsel %vm836, %v1784, 0
      %v1806 = vsel %vm836, %v1785, 0
      %v1809 = vsel %vm836, %v1786, 0
      %1811 = vmatprep.subr.bf16.mxu0 0
      %1812 = vmatpush1.bf16.msra.mxu0 %v1788
      %1813 = vmatprep.subr.bf16.mxu0 0
      %1814 = vmatpush1.bf16.msra.mxu0 %v1790
      %1815 = vmatprep.subr.bf16.mxu0 0
      %1816 = vmatpush1.bf16.msra.mxu0 %v1792
      %1817 = vmatprep.subr.bf16.mxu0 0
      %1818 = vmatpush1.bf16.msra.mxu0 %v1794
      %1819 = vmatprep.subr.bf16.mxu0 0
      %1820 = vmatpush1.bf16.msra.mxu0 0
      %1821 = vmatprep.subr.bf16.mxu0 0
      %1822 = vmatpush1.bf16.msra.mxu0 0
      %1823 = vmatprep.subr.bf16.mxu0 0
      %1824 = vmatpush1.bf16.msra.mxu0 0
      %1825 = vmatprep.subr.bf16.mxu0 0
      %1826 = vmatpush1.bf16.msra.mxu0 0
      %1827 = vmatprep.subr.bf16.mxu0 0
      %1828 = vmatpush1.bf16.msra.mxu0 0
      %1829 = vmatprep.subr.bf16.mxu0 0
      %1830 = vmatpush1.bf16.msra.mxu0 0
      %1831 = vmatprep.subr.bf16.mxu0 0
      %1832 = vmatpush1.bf16.msra.mxu0 0
      %1833 = vmatprep.subr.bf16.mxu0 0
      %1834 = vmatpush1.bf16.msra.mxu0 0
      %1835 = vmatprep.subr.bf16.mxu0 0
      %1836 = vmatpush1.bf16.msra.mxu0 0
      %1837 = vmatprep.subr.bf16.mxu0 0
      %1838 = vmatpush1.bf16.msra.mxu0 0
      %1839 = vmatprep.subr.bf16.mxu0 0
      %1840 = vmatpush1.bf16.msra.mxu0 0
      %1841 = vmatprep.subr.bf16.mxu0 0
      %1842 = vmatpush1.bf16.msra.mxu0 0
      %1843 = vmatprep.mubr.bf16.mxu0 0
      %1844 = vmatmul.mubr.bf16.gmra.mrb[0].mxu0 %v1800
      %v1845 = vpop.f32.mrb[0].mxu0
      %v1846 = vadd.f32 0.0, %v1845
      %v1847 = vpop.f32.mrb[0].mxu0
      %v1848 = vpop.f32.mrb[0].mxu0
      %v1849 = vadd.f32 0.0, %v1848
      %v1850 = vpop.f32.mrb[0].mxu0
      %1851 = vmatprep.mubr.bf16.mxu0 0
      %1852 = vmatmul.mubr.bf16.gmra.mrb[0].mxu0 %v1803
      %v1853 = vpop.f32.mrb[0].mxu0
      %v1854 = vadd.f32 0.0, %v1853
      %v1855 = vpop.f32.mrb[0].mxu0
      %v1856 = vpop.f32.mrb[0].mxu0
      %v1857 = vadd.f32 0.0, %v1856
      %v1858 = vpop.f32.mrb[0].mxu0
      %1859 = vmatprep.mubr.bf16.mxu0 0
      %1860 = vmatmul.mubr.bf16.gmra.mrb[0].mxu0 %v1806
      %v1861 = vpop.f32.mrb[0].mxu0
      %v1862 = vadd.f32 0.0, %v1861
      %v1863 = vpop.f32.mrb[0].mxu0
      %v1864 = vpop.f32.mrb[0].mxu0
      %v1865 = vadd.f32 0.0, %v1864
      %v1866 = vpop.f32.mrb[0].mxu0
      %1867 = vmatprep.mubr.bf16.mxu0 0
      %1868 = vmatmul.mubr.bf16.gmra.mrb[0].mxu0 %v1809
      %v1869 = vpop.f32.mrb[0].mxu0
      %v1870 = vadd.f32 0.0, %v1869
      %v1871 = vpop.f32.mrb[0].mxu0
      %v1872 = vpop.f32.mrb[0].mxu0
      %v1873 = vadd.f32 0.0, %v1872
      %v1874 = vpop.f32.mrb[0].mxu0
      %1875 = vdwg.mxu0
      %1884 = vrot.lane.b32.xlu0 %v1274, 32
      %v1885 = vpop.permute.xlu0 %1884
      %1886 = vrot.lane.b32.xlu0 %v1277, 32
      %v1887 = vpop.permute.xlu0 %1886
      %1888 = vrot.lane.b32.xlu0 %v1282, 32
      %v1889 = vpop.permute.xlu0 %1888
      %1890 = vrot.lane.b32.xlu0 %v1285, 32
      %v1891 = vpop.permute.xlu0 %1890
      %1892 = vrot.lane.b32.xlu0 %v1290, 32
      %v1893 = vpop.permute.xlu0 %1892
      %1894 = vrot.lane.b32.xlu0 %v1293, 32
      %v1895 = vpop.permute.xlu0 %1894
      %1896 = vrot.lane.b32.xlu0 %v1298, 32
      %v1897 = vpop.permute.xlu0 %1896
      %1898 = vrot.lane.b32.xlu0 %v1301, 32
      %v1899 = vpop.permute.xlu0 %1898
      %1916 = vrot.lane.b32.xlu0 %v1560, 64
      %v1917 = vpop.permute.xlu0 %1916
      %1918 = vrot.lane.b32.xlu0 %v1563, 64
      %v1919 = vpop.permute.xlu0 %1918
      %1920 = vrot.lane.b32.xlu0 %v1568, 64
      %v1921 = vpop.permute.xlu0 %1920
      %1922 = vrot.lane.b32.xlu0 %v1571, 64
      %v1923 = vpop.permute.xlu0 %1922
      %1924 = vrot.lane.b32.xlu0 %v1576, 64
      %v1925 = vpop.permute.xlu0 %1924
      %1926 = vrot.lane.b32.xlu0 %v1579, 64
      %v1927 = vpop.permute.xlu0 %1926
      %1928 = vrot.lane.b32.xlu0 %v1584, 64
      %v1929 = vpop.permute.xlu0 %1928
      %1930 = vrot.lane.b32.xlu0 %v1587, 64
      %v1931 = vpop.permute.xlu0 %1930
      %1948 = vrot.lane.b32.xlu0 %v1846, 96
      %v1949 = vpop.permute.xlu0 %1948
      %1950 = vrot.lane.b32.xlu0 %v1849, 96
      %v1951 = vpop.permute.xlu0 %1950
      %1952 = vrot.lane.b32.xlu0 %v1854, 96
      %v1953 = vpop.permute.xlu0 %1952
      %1954 = vrot.lane.b32.xlu0 %v1857, 96
      %v1955 = vpop.permute.xlu0 %1954
      %1956 = vrot.lane.b32.xlu0 %v1862, 96
      %v1957 = vpop.permute.xlu0 %1956
      %1958 = vrot.lane.b32.xlu0 %v1865, 96
      %v1959 = vpop.permute.xlu0 %1958
      %1960 = vrot.lane.b32.xlu0 %v1870, 96
      %v1961 = vpop.permute.xlu0 %1960
      %1962 = vrot.lane.b32.xlu0 %v1873, 96
      %v1963 = vpop.permute.xlu0 %1962
      %v1972 = vsel %vm746, %v976, %v1885
      %v1973 = vsel %vm746, %v979, %v1887
      %v1974 = vsel %vm746, %v984, %v1889
      %v1975 = vsel %vm746, %v987, %v1891
      %v1976 = vsel %vm746, %v992, %v1893
      %v1977 = vsel %vm746, %v995, %v1895
      %v1978 = vsel %vm746, %v1000, %v1897
      %v1979 = vsel %vm746, %v1003, %v1899
      %v1980 = vsel %vm836, %v1972, %v1917
      %v1981 = vsel %vm836, %v1973, %v1919
      %v1982 = vsel %vm836, %v1974, %v1921
      %v1983 = vsel %vm836, %v1975, %v1923
      %v1984 = vsel %vm836, %v1976, %v1925
      %v1985 = vsel %vm836, %v1977, %v1927
      %v1986 = vsel %vm836, %v1978, %v1929
      %v1987 = vsel %vm836, %v1979, %v1931
      %vm1988 = vcmask 785408
      %v1989 = vsel %vm1988, %v1980, %v1949
      %v1990 = vsel %vm1988, %v1981, %v1951
      %v1991 = vsel %vm1988, %v1982, %v1953
      %v1992 = vsel %vm1988, %v1983, %v1955
      %v1993 = vsel %vm1988, %v1984, %v1957
      %v1994 = vsel %vm1988, %v1985, %v1959
      %v1995 = vsel %vm1988, %v1986, %v1961
      %v1996 = vsel %vm1988, %v1987, %v1963
      %v1997 = vpack.c.bf16 %v1990, %v1989
      %v1998 = vpack.c.bf16 %v1992, %v1991
      %v1999 = vpack.c.bf16 %v1994, %v1993
      %v2000 = vpack.c.bf16 %v1996, %v1995
      %v2001 = vld [vmem:[%s5] sm:$0xf]
      %v2002 = vld [vmem:[%s5 + $0x4] sm:$0xf]
      %v2003 = vld [vmem:[%s5 + $0x8] sm:$0xf]
      %v2004 = vld [vmem:[%s5 + $0xc] sm:$0xf]
      %v2005 = vld [vmem:[%s5 + $0x10] sm:$0xf]
      %v2006 = vld [vmem:[%s5 + $0x14] sm:$0xf]
      %v2007 = vld [vmem:[%s5 + $0x18] sm:$0xf]
      %v2008 = vld [vmem:[%s5 + $0x1c] sm:$0xf]
      %v2009 = vld [vmem:[%s5 + $0x20] sm:$0xf]
      %v2010 = vld [vmem:[%s5 + $0x24] sm:$0xf]
      %v2011 = vld [vmem:[%s5 + $0x28] sm:$0xf]
      %v2012 = vld [vmem:[%s5 + $0x2c] sm:$0xf]
      %v2013 = vld [vmem:[%s5 + $0x30] sm:$0xf]
      %v2014 = vld [vmem:[%s5 + $0x34] sm:$0xf]
      %v2015 = vld [vmem:[%s5 + $0x38] sm:$0xf]
      %v2016 = vld [vmem:[%s5 + $0x3c] sm:$0xf]
      %v2017 = vld [vmem:[%s6] sm:$0x1]
      %v2019 = vlaneseq
      %v2020 = vshrl.u32 %v2019, 7
      %v2021 = vsub.s32 0, %v2020
      %v2022 = vrot.slane %v2017, %v2021
      %v2040 = vunpack.c.l.b16 %v2001
      %v2041 = vunpack.c.l.b16 %v2002
      %v2042 = vunpack.c.l.b16 %v2003
      %v2043 = vunpack.c.l.b16 %v2004
      %v2044 = vunpack.c.l.b16 %v2005
      %v2045 = vunpack.c.l.b16 %v2006
      %v2046 = vunpack.c.l.b16 %v2007
      %v2047 = vunpack.c.l.b16 %v2008
      %v2048 = vunpack.c.l.b16 %v2009
      %v2049 = vunpack.c.l.b16 %v2010
      %v2050 = vunpack.c.l.b16 %v2011
      %v2051 = vunpack.c.l.b16 %v2012
      %v2052 = vunpack.c.l.b16 %v2013
      %v2053 = vunpack.c.l.b16 %v2014
      %v2054 = vunpack.c.l.b16 %v2015
      %v2055 = vunpack.c.l.b16 %v2016
      %v2056 = vpack.c.b16 %v2041, %v2040
      %v2057 = vpack.c.b16 %v2043, %v2042
      %v2058 = vpack.c.b16 %v2045, %v2044
      %v2059 = vpack.c.b16 %v2047, %v2046
      %v2060 = vpack.c.b16 %v2049, %v2048
      %v2061 = vpack.c.b16 %v2051, %v2050
      %v2062 = vpack.c.b16 %v2053, %v2052
      %v2063 = vpack.c.b16 %v2055, %v2054
      %2072 = vmatprep.subr.bf16.mxu0 0
      %2073 = vmatpush1.bf16.msra.mxu0 %v2056
      %2074 = vmatprep.subr.bf16.mxu0 0
      %2075 = vmatpush1.bf16.msra.mxu0 %v2057
      %2076 = vmatprep.subr.bf16.mxu0 0
      %2077 = vmatpush1.bf16.msra.mxu0 %v2058
      %2078 = vmatprep.subr.bf16.mxu0 0
      %2079 = vmatpush1.bf16.msra.mxu0 %v2059
      %2080 = vmatprep.subr.bf16.mxu0 0
      %2081 = vmatpush1.bf16.msra.mxu0 %v2060
      %2082 = vmatprep.subr.bf16.mxu0 0
      %2083 = vmatpush1.bf16.msra.mxu0 %v2061
      %2084 = vmatprep.subr.bf16.mxu0 0
      %2085 = vmatpush1.bf16.msra.mxu0 %v2062
      %2086 = vmatprep.subr.bf16.mxu0 0
      %2087 = vmatpush1.bf16.msra.mxu0 %v2063
      %2088 = vmatprep.subr.bf16.mxu0 0
      %2089 = vmatpush1.bf16.msra.mxu0 0
      %2090 = vmatprep.subr.bf16.mxu0 0
      %2091 = vmatpush1.bf16.msra.mxu0 0
      %2092 = vmatprep.subr.bf16.mxu0 0
      %2093 = vmatpush1.bf16.msra.mxu0 0
      %2094 = vmatprep.subr.bf16.mxu0 0
      %2095 = vmatpush1.bf16.msra.mxu0 0
      %2096 = vmatprep.subr.bf16.mxu0 0
      %2097 = vmatpush1.bf16.msra.mxu0 0
      %2098 = vmatprep.subr.bf16.mxu0 0
      %2099 = vmatpush1.bf16.msra.mxu0 0
      %2100 = vmatprep.subr.bf16.mxu0 0
      %2101 = vmatpush1.bf16.msra.mxu0 0
      %2102 = vmatprep.subr.bf16.mxu0 0
      %2103 = vmatpush1.bf16.msra.mxu0 0
      %2104 = vmatprep.mubr.bf16.mxu0 0
      %2105 = vmatmul.mubr.bf16.gmra.mrb[0].mxu0 %v1997
      %v2106 = vpop.f32.mrb[0].mxu0
      %v2107 = vadd.f32 %v2022, %v2106
      %v2108 = vpop.f32.mrb[0].mxu0
      %v2109 = vpop.f32.mrb[0].mxu0
      %v2110 = vadd.f32 %v2022, %v2109
      %v2111 = vpop.f32.mrb[0].mxu0
      %2112 = vmatprep.mubr.bf16.mxu0 0
      %2113 = vmatmul.mubr.bf16.gmra.mrb[0].mxu0 %v1998
      %v2114 = vpop.f32.mrb[0].mxu0
      %v2115 = vadd.f32 %v2022, %v2114
      %v2116 = vpop.f32.mrb[0].mxu0
      %v2117 = vpop.f32.mrb[0].mxu0
      %v2118 = vadd.f32 %v2022, %v2117
      %v2119 = vpop.f32.mrb[0].mxu0
      %2120 = vmatprep.mubr.bf16.mxu0 0
      %2121 = vmatmul.mubr.bf16.gmra.mrb[0].mxu0 %v1999
      %v2122 = vpop.f32.mrb[0].mxu0
      %v2123 = vadd.f32 %v2022, %v2122
      %v2124 = vpop.f32.mrb[0].mxu0
      %v2125 = vpop.f32.mrb[0].mxu0
      %v2126 = vadd.f32 %v2022, %v2125
      %v2127 = vpop.f32.mrb[0].mxu0
      %2128 = vmatprep.mubr.bf16.mxu0 0
      %2129 = vmatmul.mubr.bf16.gmra.mrb[0].mxu0 %v2000
      %v2130 = vpop.f32.mrb[0].mxu0
      %v2131 = vadd.f32 %v2022, %v2130
      %v2132 = vpop.f32.mrb[0].mxu0
      %v2133 = vpop.f32.mrb[0].mxu0
      %v2134 = vadd.f32 %v2022, %v2133
      %v2135 = vpop.f32.mrb[0].mxu0
      %2136 = vdwg.mxu0
      %v2137 = vadd.f32 %v288, %v2107
      %v2138 = vadd.f32 %v289, %v2110
      %v2139 = vadd.f32 %v290, %v2115
      %v2140 = vadd.f32 %v291, %v2118
      %v2141 = vadd.f32 %v292, %v2123
      %v2142 = vadd.f32 %v293, %v2126
      %v2143 = vadd.f32 %v294, %v2131
      %v2144 = vadd.f32 %v295, %v2134
      %v2145 = vpack.c.bf16 %v2138, %v2137
      %v2146 = vpack.c.bf16 %v2140, %v2139
      %v2147 = vpack.c.bf16 %v2142, %v2141
      %v2148 = vpack.c.bf16 %v2144, %v2143
      %v2153 = vunpack.c.l.b16 %v2145
      %v2154 = vunpack.c.h.b16 %v2145
      %v2155 = vunpack.c.l.b16 %v2146
      %v2156 = vunpack.c.h.b16 %v2146
      %v2157 = vunpack.c.l.b16 %v2147
      %v2158 = vunpack.c.h.b16 %v2147
      %v2159 = vunpack.c.l.b16 %v2148
      %v2160 = vunpack.c.h.b16 %v2148
      %v2161 = vpack.c.b16 %v2153, %v2153
      %v2162 = vpack.c.b16 %v2154, %v2154
      %v2163 = vpack.c.b16 %v2155, %v2155
      %v2164 = vpack.c.b16 %v2156, %v2156
      %v2165 = vpack.c.b16 %v2157, %v2157
      %v2166 = vpack.c.b16 %v2158, %v2158
      %v2167 = vpack.c.b16 %v2159, %v2159
      %v2168 = vpack.c.b16 %v2160, %v2160
      %2177 = vst [vmem:[%s278] sm:$0xf] %v2161
      %2178 = vst [vmem:[%s278 + $0x4] sm:$0xf] %v2162
      %2179 = vst [vmem:[%s278 + $0x8] sm:$0xf] %v2163
      %2180 = vst [vmem:[%s278 + $0xc] sm:$0xf] %v2164
      %2181 = vst [vmem:[%s278 + $0x10] sm:$0xf] %v2165
      %2182 = vst [vmem:[%s278 + $0x14] sm:$0xf] %v2166
      %2183 = vst [vmem:[%s278 + $0x18] sm:$0xf] %v2167
      %2184 = vst [vmem:[%s278 + $0x1c] sm:$0xf] %v2168
      %p2185 = scmp.lt.s32.totalorder %s18, 3
      %s2186 = scalar_select %p2185, %s18, 3
      %s2187 = smul.addr %s2186, 8
      %s2188 = smul.addr %s2187, 4
      %s2189 = scalar_lea.vmem %s7, %s2188
      // Predicated region
      $region49: #{transformer_forward.4} parent=47 // pred_check
        %p2190 = pneg %p188
      $region50: #{transformer_forward.4} parent=47 // pred_check_branch
        %2192 = sbr.rel (%p2190) target = $region52
      $region51: #{transformer_forward.4} parent=47 // pred_region
        _
      $region52: #{transformer_forward.4} parent=47 // pred_fallthru
        _
    $region48: #{transformer_forward.4} parent=5 // pred_fallthru
      _
    %p2193 = scmp.le.s32.totalorder 2, %s13
    // Predicated region
    $region53: #{transformer_forward.4} parent=5 // pred_check
      %p2194 = pneg %p2193
    $region54: #{transformer_forward.4} parent=5 // pred_check_branch
      %2196 = sbr.rel (%p2194) target = $region56
    $region55: #{transformer_forward.4} parent=5 // pred_region
      %s2197 = ssub.s32 %s13, 2
      // Predicated region
      $region57: #{transformer_forward.4} parent=55 // pred_check
        %p2198 = pneg %p194
      $region58: #{transformer_forward.4} parent=55 // pred_check_branch
        %2200 = sbr.rel (%p2198) target = $region60
      $region59: #{transformer_forward.4} parent=55 // pred_region
        %p2201 = scmp.lt.s32.totalorder %s19, 3
        %s2202 = scalar_select %p2201, %s19, 3
        %s2203 = smul.addr %s2202, 8
        %s2204 = smul.addr %s2203, 4
        %s2205 = scalar_lea.vmem %s7, %s2204
      $region60: #{transformer_forward.4} parent=55 // pred_fallthru
        _
    $region56: #{transformer_forward.4} parent=5 // pred_fallthru
      _
  $region6: #{transformer_forward.4} parent=0 // loop_footer
    %s17 = sadd.s32 1, %s13
  $region7: #{transformer_forward.4} parent=0 // loop_footer_branch
    %12 = sbr.rel target = $region3
  $region8: #{transformer_forward.4} parent=0 // loop_exit
    _

</llo_original>
